<compile_context>
chip_gen: v6e
topology: v6e:2x2x1
jax: 0.10.0
libtpu: 0.0.40
codegen_flags: <defaults>
</compile_context>

<pallas_src>
import jax
import jax.numpy as jnp
from jax import lax
from jax.experimental import pallas as pl
from jax.experimental.pallas import tpu as pltpu


def _round_up(x, m):
    return ((x + m - 1) // m) * m


def _pad_gate_cols(wt, h, hp):
    """(rows, 4*h) -> (rows, 4*hp); gate g's columns placed at [g*hp, g*hp+h)."""
    rows = wt.shape[0]
    out = jnp.zeros((rows, 4 * hp), wt.dtype)
    for g in range(4):
        out = out.at[:, g * hp: g * hp + h].set(wt[:, g * h:(g + 1) * h])
    return out


# ----------------------------------------------------------------------------
# Fused kernel: all layers, all timesteps, one invocation.
# ----------------------------------------------------------------------------
def _make_fused_lstm_kernel(T, Bp, Hp, L):
    def kernel(xg0_ref, w_hh_ref, w_ih_ref, b_ref,
               out_ref, hT_ref, cT_ref,
               h_all_sc, gates_sc):
        # xg0_ref  : (T, Bp, 4Hp)  layer-0 input projection (bias included)
        # w_hh_ref : (L, Hp, 4Hp)
        # w_ih_ref : (max(L-1,1), Hp, 4Hp)   layers >= 1
        # b_ref    : (max(L-1,1), 1, 4Hp)    layers >= 1
        # out_ref  : (T, Bp, Hp)   time-major last-layer output (VMEM-resident)
        # hT/cT    : (L, Bp, Hp)   final states
        # h_all_sc : (T, Bp, Hp)   previous layer's full output (VMEM)
        # gates_sc : (T, Bp, 4Hp)  hoisted gate slab for layers >= 1 (VMEM)

        def run_layer(layer, read_gates, write_h):
            def step(t, carry):
                h, c = carry
                g = read_gates(t) + jnp.dot(
                    h, w_hh_ref[layer], preferred_element_type=jnp.float32)
                # Gate slices are 128-lane aligned (Hp = 128*k): no relayouts.
                i = jax.nn.sigmoid(g[:, 0 * Hp:1 * Hp])
                f = jax.nn.sigmoid(g[:, 1 * Hp:2 * Hp])
                gg = jnp.tanh(g[:, 2 * Hp:3 * Hp])
                o = jax.nn.sigmoid(g[:, 3 * Hp:4 * Hp])
                c_new = f * c + i * gg
                h_new = o * jnp.tanh(c_new)
                write_h(t, h_new)
                return (h_new, c_new)

            init = (jnp.zeros((Bp, Hp), jnp.float32),   # rnn(xes, None): zero init
                    jnp.zeros((Bp, Hp), jnp.float32))
            h_T, c_T = lax.fori_loop(0, T, step, init, unroll=True)
            # Final states written exactly once per layer (no per-step stores).
            hT_ref[layer] = h_T.astype(hT_ref.dtype)
            cT_ref[layer] = c_T.astype(cT_ref.dtype)

        def make_write_h(is_last):
            def write_h(t, h):
                if is_last:
                    out_ref[t] = h.astype(out_ref.dtype)   # (Bp,Hp)=(8,128) dense
                else:
                    h_all_sc[t] = h
            return write_h

        # ---- layer 0: gates were precomputed outside the kernel -------------
        run_layer(0, lambda t: xg0_ref[t], make_write_h(L == 1))

        # ---- layers 1..L-1: hoist input projection as ONE MXU matmul --------
        for l in range(1, L):
            prev = h_all_sc[...].reshape(T * Bp, Hp)          # layout no-op
            gates_sc[...] = (
                jnp.dot(prev, w_ih_ref[l - 1],
                        preferred_element_type=jnp.float32)
                + b_ref[l - 1]
            ).reshape(T, Bp, 4 * Hp)
            run_layer(l, lambda t: gates_sc[t], make_write_h(l == L - 1))

    return kernel


def _fused_lstm_call(xg0, w_hh, w_ih_rest, b_rest, *, T, Bp, Hp, L):
    kernel = _make_fused_lstm_kernel(T, Bp, Hp, L)
    Lr = max(L - 1, 1)
    out_shape = (
        jax.ShapeDtypeStruct((T, Bp, Hp), jnp.float32),   # outputs (time-major)
        jax.ShapeDtypeStruct((L, Bp, Hp), jnp.float32),   # final h per layer
        jax.ShapeDtypeStruct((L, Bp, Hp), jnp.float32),   # final c per layer
    )
    return pl.pallas_call(
        kernel,
        out_shape=out_shape,
        grid_spec=pltpu.PrefetchScalarGridSpec(
            num_scalar_prefetch=0,
            grid=(1,),                                    # single invocation
            in_specs=[
                pl.BlockSpec((T, Bp, 4 * Hp), lambda i: (0, 0, 0)),
                pl.BlockSpec((L, Hp, 4 * Hp), lambda i: (0, 0, 0)),
                pl.BlockSpec((Lr, Hp, 4 * Hp), lambda i: (0, 0, 0)),
                pl.BlockSpec((Lr, 1, 4 * Hp), lambda i: (0, 0, 0)),
            ],
            out_specs=[
                pl.BlockSpec((T, Bp, Hp), lambda i: (0, 0, 0)),
                pl.BlockSpec((L, Bp, Hp), lambda i: (0, 0, 0)),
                pl.BlockSpec((L, Bp, Hp), lambda i: (0, 0, 0)),
            ],
            scratch_shapes=[
                pltpu.VMEM((T, Bp, Hp), jnp.float32),       # inter-layer h slab
                pltpu.VMEM((T, Bp, 4 * Hp), jnp.float32),   # hoisted gate slab
            ],
        ),
        compiler_params=pltpu.CompilerParams(
            dimension_semantics=("arbitrary",)),
    )(xg0, w_hh, w_ih_rest, b_rest)


# ----------------------------------------------------------------------------
# HredDecoder forward (inference / eval mode: dropout is identity).
# ----------------------------------------------------------------------------
def hred_decoder_forward(params, xs, encoder_output):
    enc_state, (hidden_state, cell_state), attn_mask, context_hidden = encoder_output
    del enc_state, hidden_state, cell_state, attn_mask

    B, T = xs.shape
    hsz = params["hsz"]
    L = params["numlayers"]
    Hp = params["Hp"]
    Bp = max(_round_up(B, 8), 8)

    # Embedding lookup (+ eval-mode dropout == identity).
    xes = jnp.take(params["embedding"], xs, axis=0)            # (B, T, esz)
    # TODO(synk): training-mode nn.Dropout(p=0.1) not applied (eval semantics).

    # context_hidden[:, -1, :].unsqueeze(1).expand(-1, seqlen, -1)
    ctx = jnp.broadcast_to(context_hidden[:, -1, :][:, None, :], (B, T, hsz))
    x = jnp.concatenate([xes, ctx], axis=-1)                   # (B, T, esz+hsz)

    # Hoisted, time-independent layer-0 input projection as ONE matmul.
    # 'btd,dg->tbg' emits the result directly time-major, so no separate
    # full-tensor HBM transpose pass is materialized.
    xg0 = jnp.einsum(
        "btd,dg->tbg", x, params["w_ih0_pad"],
        precision=lax.Precision.HIGHEST,
        preferred_element_type=jnp.float32) + params["b0_pad"]  # (T, B, 4Hp)
    xg0 = jnp.pad(xg0, ((0, 0), (0, Bp - B), (0, 0)))           # pad batch to 8

    out_tm, hT, cT = _fused_lstm_call(
        xg0, params["w_hh_pad"], params["w_ih_rest_pad"], params["b_rest_pad"],
        T=T, Bp=Bp, Hp=Hp, L=L)

    output = jnp.transpose(out_tm[:, :B, :hsz], (1, 0, 2))      # (B, T, H)
    # _transpose_hidden_state: (layers, batch, H) -> (batch, layers, H)
    new_h = jnp.transpose(hT[:, :B, :hsz], (1, 0, 2))           # (B, L, H)
    new_c = jnp.transpose(cT[:, :B, :hsz], (1, 0, 2))
    return output, (new_h, new_c)


# ----------------------------------------------------------------------------
# Pure-JAX reference (mirrors torch nn.LSTM batch_first, gate order i,f,g,o).
# ----------------------------------------------------------------------------
def hred_decoder_reference(params, xs, encoder_output):
    _, (_, _), _, context_hidden = encoder_output
    B, T = xs.shape
    hsz = params["hsz"]
    L = params["numlayers"]

    xes = jnp.take(params["embedding"], xs, axis=0)
    ctx = jnp.broadcast_to(context_hidden[:, -1, :][:, None, :], (B, T, hsz))
    inp = jnp.concatenate([xes, ctx], axis=-1)

    hs, cs = [], []
    for l in range(L):
        w_ih = params["raw_w_ih"][l]
        w_hh = params["raw_w_hh"][l]
        b = params["raw_b"][l]

        def step(carry, x_t, w_ih=w_ih, w_hh=w_hh, b=b):
            h, c = carry
            g = (jnp.dot(x_t, w_ih.T, precision=lax.Precision.HIGHEST)
                 + jnp.dot(h, w_hh.T, precision=lax.Precision.HIGHEST) + b)
            i = jax.nn.sigmoid(g[:, 0 * hsz:1 * hsz])
            f = jax.nn.sigmoid(g[:, 1 * hsz:2 * hsz])
            gg = jnp.tanh(g[:, 2 * hsz:3 * hsz])
            o = jax.nn.sigmoid(g[:, 3 * hsz:4 * hsz])
            c = f * c + i * gg
            h = o * jnp.tanh(c)
            return (h, c), h

        init = (jnp.zeros((B, hsz), jnp.float32), jnp.zeros((B, hsz), jnp.float32))
        (h_T, c_T), outs = lax.scan(step, init, jnp.transpose(inp, (1, 0, 2)))
        inp = jnp.transpose(outs, (1, 0, 2))
        hs.append(h_T)
        cs.append(c_T)

    new_h = jnp.transpose(jnp.stack(hs, 0), (1, 0, 2))
    new_c = jnp.transpose(jnp.stack(cs, 0), (1, 0, 2))
    return inp, (new_h, new_c)


# ----------------------------------------------------------------------------
# Deterministic parameter construction (shapes from HredDecoder.__init__).
# ----------------------------------------------------------------------------
def make_params(key, num_features, esz, hsz, numlayers, padding_idx=0):
    keys = jax.random.split(key, 1 + 4 * numlayers)
    scale = 1.0 / jnp.sqrt(hsz)

    emb = jax.random.normal(keys[0], (num_features, esz), jnp.float32) * 0.02
    emb = emb.at[padding_idx].set(0.0)

    raw_w_ih, raw_w_hh, raw_b = [], [], []
    for layer in range(numlayers):
        in_dim = (esz + hsz) if layer == 0 else hsz
        k = keys[1 + 4 * layer: 1 + 4 * (layer + 1)]
        w_ih = jax.random.uniform(k[0], (4 * hsz, in_dim), jnp.float32, -scale, scale)
        w_hh = jax.random.uniform(k[1], (4 * hsz, hsz), jnp.float32, -scale, scale)
        b_ih = jax.random.uniform(k[2], (4 * hsz,), jnp.float32, -scale, scale)
        b_hh = jax.random.uniform(k[3], (4 * hsz,), jnp.float32, -scale, scale)
        raw_w_ih.append(w_ih)
        raw_w_hh.append(w_hh)
        raw_b.append(b_ih + b_hh)

    Hp = _round_up(hsz, 128)   # 128-lane aligned hidden; each gate gets its own tile

    w_ih0_pad = _pad_gate_cols(raw_w_ih[0].T, hsz, Hp)          # (esz+hsz, 4Hp)
    b0_pad = _pad_gate_cols(raw_b[0][None, :], hsz, Hp)         # (1, 4Hp)
    w_hh_pad = jnp.stack([
        jnp.pad(_pad_gate_cols(raw_w_hh[l].T, hsz, Hp), ((0, Hp - hsz), (0, 0)))
        for l in range(numlayers)])                             # (L, Hp, 4Hp)
    if numlayers > 1:
        w_ih_rest_pad = jnp.stack([
            jnp.pad(_pad_gate_cols(raw_w_ih[l].T, hsz, Hp), ((0, Hp - hsz), (0, 0)))
            for l in range(1, numlayers)])                      # (L-1, Hp, 4Hp)
        b_rest_pad = jnp.stack([_pad_gate_cols(raw_b[l][None, :], hsz, Hp)
                                for l in range(1, numlayers)])  # (L-1, 1, 4Hp)
    else:  # unused dummies so the kernel signature stays fixed
        w_ih_rest_pad = jnp.zeros((1, Hp, 4 * Hp), jnp.float32)
        b_rest_pad = jnp.zeros((1, 1, 4 * Hp), jnp.float32)

    return {
        "embedding": emb,
        "raw_w_ih": raw_w_ih, "raw_w_hh": raw_w_hh, "raw_b": raw_b,
        "w_ih0_pad": w_ih0_pad, "b0_pad": b0_pad,
        "w_hh_pad": w_hh_pad, "w_ih_rest_pad": w_ih_rest_pad,
        "b_rest_pad": b_rest_pad,
        "hsz": hsz, "esz": esz, "numlayers": numlayers, "Hp": Hp,
    }


if __name__ == "__main__":
    num_features = 50
    esz = 32
    hsz = 32
    numlayers = 2
    B, T = 2, 8

    key = jax.random.PRNGKey(0)
    k_param, k_xs, k_ctx, k_enc, k_h, k_c = jax.random.split(key, 6)

    params = make_params(k_param, num_features, esz, hsz, numlayers)

    xs = jax.random.randint(k_xs, (B, T), 0, num_features, dtype=jnp.int32)

    # Synthetic encoder output tuple (enc_out, (h, c), attn_mask, context_hidden)
    enc_out = jax.random.normal(k_enc, (B, T, hsz), jnp.float32)
    enc_h = jax.random.normal(k_h, (numlayers, B, hsz), jnp.float32)
    enc_c = jax.random.normal(k_c, (numlayers, B, hsz), jnp.float32)
    attn_mask = jnp.ones((B, T), jnp.float32)
    context_hidden = jax.random.normal(k_ctx, (B, numlayers, hsz), jnp.float32)
    encoder_output = (enc_out, (enc_h, enc_c), attn_mask, context_hidden)

    output, (new_h, new_c) = hred_decoder_forward(params, xs, encoder_output)
    jax.block_until_ready((output, new_h, new_c))

    assert output.shape == (B, T, hsz)
    assert new_h.shape == (B, numlayers, hsz)
    assert new_c.shape == (B, numlayers, hsz)

    # Correctness check against a pure-JAX LSTM reference.
    ref_out, (ref_h, ref_c) = hred_decoder_reference(params, xs, encoder_output)
    assert jnp.allclose(output, ref_out, atol=1e-3, rtol=1e-3)
    assert jnp.allclose(new_h, ref_h, atol=1e-3, rtol=1e-3)
    assert jnp.allclose(new_c, ref_c, atol=1e-3, rtol=1e-3)

    print("KERNEL_OK")
</pallas_src>

<mosaic_0001>
module attributes {stable_mosaic.version = 11 : i64} {
  func.func @kernel(%arg0: i32, %arg1: memref<8x8x512xf32, #tpu.memory_space<vmem>>, %arg2: memref<2x128x512xf32, #tpu.memory_space<vmem>>, %arg3: memref<1x128x512xf32, #tpu.memory_space<vmem>>, %arg4: memref<1x1x512xf32, #tpu.memory_space<vmem>>, %arg5: memref<8x8x128xf32, #tpu.memory_space<vmem>>, %arg6: memref<2x8x128xf32, #tpu.memory_space<vmem>>, %arg7: memref<2x8x128xf32, #tpu.memory_space<vmem>>, %arg8: memref<8x8x128xf32, #tpu.memory_space<vmem>>, %arg9: memref<8x8x512xf32, #tpu.memory_space<vmem>>) attributes {dimension_semantics = [#tpu.dimension_semantics<arbitrary>], iteration_bounds = array<i64: 1>, scalar_prefetch = 0 : i64, scratch_operands = 2 : i64, tpu.core_type = #tpu.core_type<tc>, window_params = [{pipeline_mode = #tpu.pipeline_mode<synchronous>, transform_indices = @transform_0, window_bounds = array<i64: 8, 8, 512>}, {pipeline_mode = #tpu.pipeline_mode<synchronous>, transform_indices = @transform_1, window_bounds = array<i64: 2, 128, 512>}, {pipeline_mode = #tpu.pipeline_mode<synchronous>, transform_indices = @transform_2, window_bounds = array<i64: 1, 128, 512>}, {pipeline_mode = #tpu.pipeline_mode<synchronous>, transform_indices = @transform_3, window_bounds = array<i64: 1, 1, 512>}, {pipeline_mode = #tpu.pipeline_mode<synchronous>, transform_indices = @transform_4, window_bounds = array<i64: 8, 8, 128>}, {pipeline_mode = #tpu.pipeline_mode<synchronous>, transform_indices = @transform_5, window_bounds = array<i64: 2, 8, 128>}, {pipeline_mode = #tpu.pipeline_mode<synchronous>, transform_indices = @transform_6, window_bounds = array<i64: 2, 8, 128>}]} {
    %cst = arith.constant 0.000000e+00 : f32
    %0 = vector.broadcast %cst : f32 to vector<8x128xf32>
    %cst_0 = arith.constant 0.000000e+00 : f32
    %1 = vector.broadcast %cst_0 : f32 to vector<8x128xf32>
    %c0_i32 = arith.constant 0 : i32
    %2 = arith.index_cast %c0_i32 : i32 to index
    %c0 = arith.constant 0 : index
    %c0_1 = arith.constant 0 : index
    %3 = vector.load %arg1[%2, %c0, %c0_1] : memref<8x8x512xf32, #tpu.memory_space<vmem>>, vector<1x8x512xf32>
    %4 = vector.shape_cast %3 : vector<1x8x512xf32> to vector<8x512xf32>
    %c0_2 = arith.constant 0 : index
    %c0_3 = arith.constant 0 : index
    %c0_4 = arith.constant 0 : index
    %5 = vector.load %arg2[%c0_2, %c0_3, %c0_4] : memref<2x128x512xf32, #tpu.memory_space<vmem>>, vector<1x128x512xf32>
    %6 = vector.shape_cast %5 : vector<1x128x512xf32> to vector<128x512xf32>
    %cst_5 = arith.constant dense<0.000000e+00> : vector<8x512xf32>
    %7 = tpu.matmul %0, %6, %cst_5 {dimension_numbers = #tpu.dot_dimension_numbers<[1], [0], [0], [1], [0, 0, 1, 1], [], []>} : vector<8x128xf32>, vector<128x512xf32>, vector<8x512xf32> -> vector<8x512xf32>
    %8 = arith.addf %4, %7 : vector<8x512xf32>
    %9 = vector.extract_strided_slice %8 {offsets = [0, 0], sizes = [8, 128], strides = [1, 1]} : vector<8x512xf32> to vector<8x128xf32>
    %10 = arith.negf %9 : vector<8x128xf32>
    %11 = math.exp %10 : vector<8x128xf32>
    %cst_6 = arith.constant 1.000000e+00 : f32
    %12 = vector.broadcast %cst_6 : f32 to vector<8x128xf32>
    %13 = arith.addf %12, %11 : vector<8x128xf32>
    %14 = arith.divf %12, %13 : vector<8x128xf32>
    %15 = vector.extract_strided_slice %8 {offsets = [0, 128], sizes = [8, 128], strides = [1, 1]} : vector<8x512xf32> to vector<8x128xf32>
    %16 = arith.negf %15 : vector<8x128xf32>
    %17 = math.exp %16 : vector<8x128xf32>
    %cst_7 = arith.constant 1.000000e+00 : f32
    %18 = vector.broadcast %cst_7 : f32 to vector<8x128xf32>
    %19 = arith.addf %18, %17 : vector<8x128xf32>
    %20 = arith.divf %18, %19 : vector<8x128xf32>
    %21 = vector.extract_strided_slice %8 {offsets = [0, 256], sizes = [8, 128], strides = [1, 1]} : vector<8x512xf32> to vector<8x128xf32>
    %22 = math.tanh %21 : vector<8x128xf32>
    %23 = vector.extract_strided_slice %8 {offsets = [0, 384], sizes = [8, 128], strides = [1, 1]} : vector<8x512xf32> to vector<8x128xf32>
    %24 = arith.negf %23 : vector<8x128xf32>
    %25 = math.exp %24 : vector<8x128xf32>
    %cst_8 = arith.constant 1.000000e+00 : f32
    %26 = vector.broadcast %cst_8 : f32 to vector<8x128xf32>
    %27 = arith.addf %26, %25 : vector<8x128xf32>
    %28 = arith.divf %26, %27 : vector<8x128xf32>
    %29 = arith.mulf %20, %1 : vector<8x128xf32>
    %30 = arith.mulf %14, %22 : vector<8x128xf32>
    %31 = arith.addf %29, %30 : vector<8x128xf32>
    %32 = math.tanh %31 : vector<8x128xf32>
    %33 = arith.mulf %28, %32 : vector<8x128xf32>
    %34 = arith.index_cast %c0_i32 : i32 to index
    %c0_9 = arith.constant 0 : index
    %c0_10 = arith.constant 0 : index
    %35 = vector.load %arg8[%34, %c0_9, %c0_10] : memref<8x8x128xf32, #tpu.memory_space<vmem>>, vector<1x8x128xf32>
    %36 = vector.shape_cast %35 : vector<1x8x128xf32> to vector<8x128xf32>
    %37 = vector.shape_cast %33 : vector<8x128xf32> to vector<1x8x128xf32>
    tpu.vector_store %arg8[%34, %c0_9, %c0_10], %37 {strides = array<i32>} : memref<8x8x128xf32, #tpu.memory_space<vmem>>, vector<1x8x128xf32>,
    %c1_i32 = arith.constant 1 : i32
    %38 = arith.index_cast %c1_i32 : i32 to index
    %c0_11 = arith.constant 0 : index
    %c0_12 = arith.constant 0 : index
    %39 = vector.load %arg1[%38, %c0_11, %c0_12] : memref<8x8x512xf32, #tpu.memory_space<vmem>>, vector<1x8x512xf32>
    %40 = vector.shape_cast %39 : vector<1x8x512xf32> to vector<8x512xf32>
    %c0_13 = arith.constant 0 : index
    %c0_14 = arith.constant 0 : index
    %c0_15 = arith.constant 0 : index
    %41 = vector.load %arg2[%c0_13, %c0_14, %c0_15] : memref<2x128x512xf32, #tpu.memory_space<vmem>>, vector<1x128x512xf32>
    %42 = vector.shape_cast %41 : vector<1x128x512xf32> to vector<128x512xf32>
    %cst_16 = arith.constant dense<0.000000e+00> : vector<8x512xf32>
    %43 = tpu.matmul %33, %42, %cst_16 {dimension_numbers = #tpu.dot_dimension_numbers<[1], [0], [0], [1], [0, 0, 1, 1], [], []>} : vector<8x128xf32>, vector<128x512xf32>, vector<8x512xf32> -> vector<8x512xf32>
    %44 = arith.addf %40, %43 : vector<8x512xf32>
    %45 = vector.extract_strided_slice %44 {offsets = [0, 0], sizes = [8, 128], strides = [1, 1]} : vector<8x512xf32> to vector<8x128xf32>
    %46 = arith.negf %45 : vector<8x128xf32>
    %47 = math.exp %46 : vector<8x128xf32>
    %cst_17 = arith.constant 1.000000e+00 : f32
    %48 = vector.broadcast %cst_17 : f32 to vector<8x128xf32>
    %49 = arith.addf %48, %47 : vector<8x128xf32>
    %50 = arith.divf %48, %49 : vector<8x128xf32>
    %51 = vector.extract_strided_slice %44 {offsets = [0, 128], sizes = [8, 128], strides = [1, 1]} : vector<8x512xf32> to vector<8x128xf32>
    %52 = arith.negf %51 : vector<8x128xf32>
    %53 = math.exp %52 : vector<8x128xf32>
    %cst_18 = arith.constant 1.000000e+00 : f32
    %54 = vector.broadcast %cst_18 : f32 to vector<8x128xf32>
    %55 = arith.addf %54, %53 : vector<8x128xf32>
    %56 = arith.divf %54, %55 : vector<8x128xf32>
    %57 = vector.extract_strided_slice %44 {offsets = [0, 256], sizes = [8, 128], strides = [1, 1]} : vector<8x512xf32> to vector<8x128xf32>
    %58 = math.tanh %57 : vector<8x128xf32>
    %59 = vector.extract_strided_slice %44 {offsets = [0, 384], sizes = [8, 128], strides = [1, 1]} : vector<8x512xf32> to vector<8x128xf32>
    %60 = arith.negf %59 : vector<8x128xf32>
    %61 = math.exp %60 : vector<8x128xf32>
    %cst_19 = arith.constant 1.000000e+00 : f32
    %62 = vector.broadcast %cst_19 : f32 to vector<8x128xf32>
    %63 = arith.addf %62, %61 : vector<8x128xf32>
    %64 = arith.divf %62, %63 : vector<8x128xf32>
    %65 = arith.mulf %56, %31 : vector<8x128xf32>
    %66 = arith.mulf %50, %58 : vector<8x128xf32>
    %67 = arith.addf %65, %66 : vector<8x128xf32>
    %68 = math.tanh %67 : vector<8x128xf32>
    %69 = arith.mulf %64, %68 : vector<8x128xf32>
    %70 = arith.index_cast %c1_i32 : i32 to index
    %c0_20 = arith.constant 0 : index
    %c0_21 = arith.constant 0 : index
    %71 = vector.load %arg8[%70, %c0_20, %c0_21] : memref<8x8x128xf32, #tpu.memory_space<vmem>>, vector<1x8x128xf32>
    %72 = vector.shape_cast %71 : vector<1x8x128xf32> to vector<8x128xf32>
    %73 = vector.shape_cast %69 : vector<8x128xf32> to vector<1x8x128xf32>
    tpu.vector_store %arg8[%70, %c0_20, %c0_21], %73 {strides = array<i32>} : memref<8x8x128xf32, #tpu.memory_space<vmem>>, vector<1x8x128xf32>,
    %c2_i32 = arith.constant 2 : i32
    %74 = arith.index_cast %c2_i32 : i32 to index
    %c0_22 = arith.constant 0 : index
    %c0_23 = arith.constant 0 : index
    %75 = vector.load %arg1[%74, %c0_22, %c0_23] : memref<8x8x512xf32, #tpu.memory_space<vmem>>, vector<1x8x512xf32>
    %76 = vector.shape_cast %75 : vector<1x8x512xf32> to vector<8x512xf32>
    %c0_24 = arith.constant 0 : index
    %c0_25 = arith.constant 0 : index
    %c0_26 = arith.constant 0 : index
    %77 = vector.load %arg2[%c0_24, %c0_25, %c0_26] : memref<2x128x512xf32, #tpu.memory_space<vmem>>, vector<1x128x512xf32>
    %78 = vector.shape_cast %77 : vector<1x128x512xf32> to vector<128x512xf32>
    %cst_27 = arith.constant dense<0.000000e+00> : vector<8x512xf32>
    %79 = tpu.matmul %69, %78, %cst_27 {dimension_numbers = #tpu.dot_dimension_numbers<[1], [0], [0], [1], [0, 0, 1, 1], [], []>} : vector<8x128xf32>, vector<128x512xf32>, vector<8x512xf32> -> vector<8x512xf32>
    %80 = arith.addf %76, %79 : vector<8x512xf32>
    %81 = vector.extract_strided_slice %80 {offsets = [0, 0], sizes = [8, 128], strides = [1, 1]} : vector<8x512xf32> to vector<8x128xf32>
    %82 = arith.negf %81 : vector<8x128xf32>
    %83 = math.exp %82 : vector<8x128xf32>
    %cst_28 = arith.constant 1.000000e+00 : f32
    %84 = vector.broadcast %cst_28 : f32 to vector<8x128xf32>
    %85 = arith.addf %84, %83 : vector<8x128xf32>
    %86 = arith.divf %84, %85 : vector<8x128xf32>
    %87 = vector.extract_strided_slice %80 {offsets = [0, 128], sizes = [8, 128], strides = [1, 1]} : vector<8x512xf32> to vector<8x128xf32>
    %88 = arith.negf %87 : vector<8x128xf32>
    %89 = math.exp %88 : vector<8x128xf32>
    %cst_29 = arith.constant 1.000000e+00 : f32
    %90 = vector.broadcast %cst_29 : f32 to vector<8x128xf32>
    %91 = arith.addf %90, %89 : vector<8x128xf32>
    %92 = arith.divf %90, %91 : vector<8x128xf32>
    %93 = vector.extract_strided_slice %80 {offsets = [0, 256], sizes = [8, 128], strides = [1, 1]} : vector<8x512xf32> to vector<8x128xf32>
    %94 = math.tanh %93 : vector<8x128xf32>
    %95 = vector.extract_strided_slice %80 {offsets = [0, 384], sizes = [8, 128], strides = [1, 1]} : vector<8x512xf32> to vector<8x128xf32>
    %96 = arith.negf %95 : vector<8x128xf32>
    %97 = math.exp %96 : vector<8x128xf32>
    %cst_30 = arith.constant 1.000000e+00 : f32
    %98 = vector.broadcast %cst_30 : f32 to vector<8x128xf32>
    %99 = arith.addf %98, %97 : vector<8x128xf32>
    %100 = arith.divf %98, %99 : vector<8x128xf32>
    %101 = arith.mulf %92, %67 : vector<8x128xf32>
    %102 = arith.mulf %86, %94 : vector<8x128xf32>
    %103 = arith.addf %101, %102 : vector<8x128xf32>
    %104 = math.tanh %103 : vector<8x128xf32>
    %105 = arith.mulf %100, %104 : vector<8x128xf32>
    %106 = arith.index_cast %c2_i32 : i32 to index
    %c0_31 = arith.constant 0 : index
    %c0_32 = arith.constant 0 : index
    %107 = vector.load %arg8[%106, %c0_31, %c0_32] : memref<8x8x128xf32, #tpu.memory_space<vmem>>, vector<1x8x128xf32>
    %108 = vector.shape_cast %107 : vector<1x8x128xf32> to vector<8x128xf32>
    %109 = vector.shape_cast %105 : vector<8x128xf32> to vector<1x8x128xf32>
    tpu.vector_store %arg8[%106, %c0_31, %c0_32], %109 {strides = array<i32>} : memref<8x8x128xf32, #tpu.memory_space<vmem>>, vector<1x8x128xf32>,
    %c3_i32 = arith.constant 3 : i32
    %110 = arith.index_cast %c3_i32 : i32 to index
    %c0_33 = arith.constant 0 : index
    %c0_34 = arith.constant 0 : index
    %111 = vector.load %arg1[%110, %c0_33, %c0_34] : memref<8x8x512xf32, #tpu.memory_space<vmem>>, vector<1x8x512xf32>
    %112 = vector.shape_cast %111 : vector<1x8x512xf32> to vector<8x512xf32>
    %c0_35 = arith.constant 0 : index
    %c0_36 = arith.constant 0 : index
    %c0_37 = arith.constant 0 : index
    %113 = vector.load %arg2[%c0_35, %c0_36, %c0_37] : memref<2x128x512xf32, #tpu.memory_space<vmem>>, vector<1x128x512xf32>
    %114 = vector.shape_cast %113 : vector<1x128x512xf32> to vector<128x512xf32>
    %cst_38 = arith.constant dense<0.000000e+00> : vector<8x512xf32>
    %115 = tpu.matmul %105, %114, %cst_38 {dimension_numbers = #tpu.dot_dimension_numbers<[1], [0], [0], [1], [0, 0, 1, 1], [], []>} : vector<8x128xf32>, vector<128x512xf32>, vector<8x512xf32> -> vector<8x512xf32>
    %116 = arith.addf %112, %115 : vector<8x512xf32>
    %117 = vector.extract_strided_slice %116 {offsets = [0, 0], sizes = [8, 128], strides = [1, 1]} : vector<8x512xf32> to vector<8x128xf32>
    %118 = arith.negf %117 : vector<8x128xf32>
    %119 = math.exp %118 : vector<8x128xf32>
    %cst_39 = arith.constant 1.000000e+00 : f32
    %120 = vector.broadcast %cst_39 : f32 to vector<8x128xf32>
    %121 = arith.addf %120, %119 : vector<8x128xf32>
    %122 = arith.divf %120, %121 : vector<8x128xf32>
    %123 = vector.extract_strided_slice %116 {offsets = [0, 128], sizes = [8, 128], strides = [1, 1]} : vector<8x512xf32> to vector<8x128xf32>
    %124 = arith.negf %123 : vector<8x128xf32>
    %125 = math.exp %124 : vector<8x128xf32>
    %cst_40 = arith.constant 1.000000e+00 : f32
    %126 = vector.broadcast %cst_40 : f32 to vector<8x128xf32>
    %127 = arith.addf %126, %125 : vector<8x128xf32>
    %128 = arith.divf %126, %127 : vector<8x128xf32>
    %129 = vector.extract_strided_slice %116 {offsets = [0, 256], sizes = [8, 128], strides = [1, 1]} : vector<8x512xf32> to vector<8x128xf32>
    %130 = math.tanh %129 : vector<8x128xf32>
    %131 = vector.extract_strided_slice %116 {offsets = [0, 384], sizes = [8, 128], strides = [1, 1]} : vector<8x512xf32> to vector<8x128xf32>
    %132 = arith.negf %131 : vector<8x128xf32>
    %133 = math.exp %132 : vector<8x128xf32>
    %cst_41 = arith.constant 1.000000e+00 : f32
    %134 = vector.broadcast %cst_41 : f32 to vector<8x128xf32>
    %135 = arith.addf %134, %133 : vector<8x128xf32>
    %136 = arith.divf %134, %135 : vector<8x128xf32>
    %137 = arith.mulf %128, %103 : vector<8x128xf32>
    %138 = arith.mulf %122, %130 : vector<8x128xf32>
    %139 = arith.addf %137, %138 : vector<8x128xf32>
    %140 = math.tanh %139 : vector<8x128xf32>
    %141 = arith.mulf %136, %140 : vector<8x128xf32>
    %142 = arith.index_cast %c3_i32 : i32 to index
    %c0_42 = arith.constant 0 : index
    %c0_43 = arith.constant 0 : index
    %143 = vector.load %arg8[%142, %c0_42, %c0_43] : memref<8x8x128xf32, #tpu.memory_space<vmem>>, vector<1x8x128xf32>
    %144 = vector.shape_cast %143 : vector<1x8x128xf32> to vector<8x128xf32>
    %145 = vector.shape_cast %141 : vector<8x128xf32> to vector<1x8x128xf32>
    tpu.vector_store %arg8[%142, %c0_42, %c0_43], %145 {strides = array<i32>} : memref<8x8x128xf32, #tpu.memory_space<vmem>>, vector<1x8x128xf32>,
    %c4_i32 = arith.constant 4 : i32
    %146 = arith.index_cast %c4_i32 : i32 to index
    %c0_44 = arith.constant 0 : index
    %c0_45 = arith.constant 0 : index
    %147 = vector.load %arg1[%146, %c0_44, %c0_45] : memref<8x8x512xf32, #tpu.memory_space<vmem>>, vector<1x8x512xf32>
    %148 = vector.shape_cast %147 : vector<1x8x512xf32> to vector<8x512xf32>
    %c0_46 = arith.constant 0 : index
    %c0_47 = arith.constant 0 : index
    %c0_48 = arith.constant 0 : index
    %149 = vector.load %arg2[%c0_46, %c0_47, %c0_48] : memref<2x128x512xf32, #tpu.memory_space<vmem>>, vector<1x128x512xf32>
    %150 = vector.shape_cast %149 : vector<1x128x512xf32> to vector<128x512xf32>
    %cst_49 = arith.constant dense<0.000000e+00> : vector<8x512xf32>
    %151 = tpu.matmul %141, %150, %cst_49 {dimension_numbers = #tpu.dot_dimension_numbers<[1], [0], [0], [1], [0, 0, 1, 1], [], []>} : vector<8x128xf32>, vector<128x512xf32>, vector<8x512xf32> -> vector<8x512xf32>
    %152 = arith.addf %148, %151 : vector<8x512xf32>
    %153 = vector.extract_strided_slice %152 {offsets = [0, 0], sizes = [8, 128], strides = [1, 1]} : vector<8x512xf32> to vector<8x128xf32>
    %154 = arith.negf %153 : vector<8x128xf32>
    %155 = math.exp %154 : vector<8x128xf32>
    %cst_50 = arith.constant 1.000000e+00 : f32
    %156 = vector.broadcast %cst_50 : f32 to vector<8x128xf32>
    %157 = arith.addf %156, %155 : vector<8x128xf32>
    %158 = arith.divf %156, %157 : vector<8x128xf32>
    %159 = vector.extract_strided_slice %152 {offsets = [0, 128], sizes = [8, 128], strides = [1, 1]} : vector<8x512xf32> to vector<8x128xf32>
    %160 = arith.negf %159 : vector<8x128xf32>
    %161 = math.exp %160 : vector<8x128xf32>
    %cst_51 = arith.constant 1.000000e+00 : f32
    %162 = vector.broadcast %cst_51 : f32 to vector<8x128xf32>
    %163 = arith.addf %162, %161 : vector<8x128xf32>
    %164 = arith.divf %162, %163 : vector<8x128xf32>
    %165 = vector.extract_strided_slice %152 {offsets = [0, 256], sizes = [8, 128], strides = [1, 1]} : vector<8x512xf32> to vector<8x128xf32>
    %166 = math.tanh %165 : vector<8x128xf32>
    %167 = vector.extract_strided_slice %152 {offsets = [0, 384], sizes = [8, 128], strides = [1, 1]} : vector<8x512xf32> to vector<8x128xf32>
    %168 = arith.negf %167 : vector<8x128xf32>
    %169 = math.exp %168 : vector<8x128xf32>
    %cst_52 = arith.constant 1.000000e+00 : f32
    %170 = vector.broadcast %cst_52 : f32 to vector<8x128xf32>
    %171 = arith.addf %170, %169 : vector<8x128xf32>
    %172 = arith.divf %170, %171 : vector<8x128xf32>
    %173 = arith.mulf %164, %139 : vector<8x128xf32>
    %174 = arith.mulf %158, %166 : vector<8x128xf32>
    %175 = arith.addf %173, %174 : vector<8x128xf32>
    %176 = math.tanh %175 : vector<8x128xf32>
    %177 = arith.mulf %172, %176 : vector<8x128xf32>
    %178 = arith.index_cast %c4_i32 : i32 to index
    %c0_53 = arith.constant 0 : index
    %c0_54 = arith.constant 0 : index
    %179 = vector.load %arg8[%178, %c0_53, %c0_54] : memref<8x8x128xf32, #tpu.memory_space<vmem>>, vector<1x8x128xf32>
    %180 = vector.shape_cast %179 : vector<1x8x128xf32> to vector<8x128xf32>
    %181 = vector.shape_cast %177 : vector<8x128xf32> to vector<1x8x128xf32>
    tpu.vector_store %arg8[%178, %c0_53, %c0_54], %181 {strides = array<i32>} : memref<8x8x128xf32, #tpu.memory_space<vmem>>, vector<1x8x128xf32>,
    %c5_i32 = arith.constant 5 : i32
    %182 = arith.index_cast %c5_i32 : i32 to index
    %c0_55 = arith.constant 0 : index
    %c0_56 = arith.constant 0 : index
    %183 = vector.load %arg1[%182, %c0_55, %c0_56] : memref<8x8x512xf32, #tpu.memory_space<vmem>>, vector<1x8x512xf32>
    %184 = vector.shape_cast %183 : vector<1x8x512xf32> to vector<8x512xf32>
    %c0_57 = arith.constant 0 : index
    %c0_58 = arith.constant 0 : index
    %c0_59 = arith.constant 0 : index
    %185 = vector.load %arg2[%c0_57, %c0_58, %c0_59] : memref<2x128x512xf32, #tpu.memory_space<vmem>>, vector<1x128x512xf32>
    %186 = vector.shape_cast %185 : vector<1x128x512xf32> to vector<128x512xf32>
    %cst_60 = arith.constant dense<0.000000e+00> : vector<8x512xf32>
    %187 = tpu.matmul %177, %186, %cst_60 {dimension_numbers = #tpu.dot_dimension_numbers<[1], [0], [0], [1], [0, 0, 1, 1], [], []>} : vector<8x128xf32>, vector<128x512xf32>, vector<8x512xf32> -> vector<8x512xf32>
    %188 = arith.addf %184, %187 : vector<8x512xf32>
    %189 = vector.extract_strided_slice %188 {offsets = [0, 0], sizes = [8, 128], strides = [1, 1]} : vector<8x512xf32> to vector<8x128xf32>
    %190 = arith.negf %189 : vector<8x128xf32>
    %191 = math.exp %190 : vector<8x128xf32>
    %cst_61 = arith.constant 1.000000e+00 : f32
    %192 = vector.broadcast %cst_61 : f32 to vector<8x128xf32>
    %193 = arith.addf %192, %191 : vector<8x128xf32>
    %194 = arith.divf %192, %193 : vector<8x128xf32>
    %195 = vector.extract_strided_slice %188 {offsets = [0, 128], sizes = [8, 128], strides = [1, 1]} : vector<8x512xf32> to vector<8x128xf32>
    %196 = arith.negf %195 : vector<8x128xf32>
    %197 = math.exp %196 : vector<8x128xf32>
    %cst_62 = arith.constant 1.000000e+00 : f32
    %198 = vector.broadcast %cst_62 : f32 to vector<8x128xf32>
    %199 = arith.addf %198, %197 : vector<8x128xf32>
    %200 = arith.divf %198, %199 : vector<8x128xf32>
    %201 = vector.extract_strided_slice %188 {offsets = [0, 256], sizes = [8, 128], strides = [1, 1]} : vector<8x512xf32> to vector<8x128xf32>
    %202 = math.tanh %201 : vector<8x128xf32>
    %203 = vector.extract_strided_slice %188 {offsets = [0, 384], sizes = [8, 128], strides = [1, 1]} : vector<8x512xf32> to vector<8x128xf32>
    %204 = arith.negf %203 : vector<8x128xf32>
    %205 = math.exp %204 : vector<8x128xf32>
    %cst_63 = arith.constant 1.000000e+00 : f32
    %206 = vector.broadcast %cst_63 : f32 to vector<8x128xf32>
    %207 = arith.addf %206, %205 : vector<8x128xf32>
    %208 = arith.divf %206, %207 : vector<8x128xf32>
    %209 = arith.mulf %200, %175 : vector<8x128xf32>
    %210 = arith.mulf %194, %202 : vector<8x128xf32>
    %211 = arith.addf %209, %210 : vector<8x128xf32>
    %212 = math.tanh %211 : vector<8x128xf32>
    %213 = arith.mulf %208, %212 : vector<8x128xf32>
    %214 = arith.index_cast %c5_i32 : i32 to index
    %c0_64 = arith.constant 0 : index
    %c0_65 = arith.constant 0 : index
    %215 = vector.load %arg8[%214, %c0_64, %c0_65] : memref<8x8x128xf32, #tpu.memory_space<vmem>>, vector<1x8x128xf32>
    %216 = vector.shape_cast %215 : vector<1x8x128xf32> to vector<8x128xf32>
    %217 = vector.shape_cast %213 : vector<8x128xf32> to vector<1x8x128xf32>
    tpu.vector_store %arg8[%214, %c0_64, %c0_65], %217 {strides = array<i32>} : memref<8x8x128xf32, #tpu.memory_space<vmem>>, vector<1x8x128xf32>,
    %c6_i32 = arith.constant 6 : i32
    %218 = arith.index_cast %c6_i32 : i32 to index
    %c0_66 = arith.constant 0 : index
    %c0_67 = arith.constant 0 : index
    %219 = vector.load %arg1[%218, %c0_66, %c0_67] : memref<8x8x512xf32, #tpu.memory_space<vmem>>, vector<1x8x512xf32>
    %220 = vector.shape_cast %219 : vector<1x8x512xf32> to vector<8x512xf32>
    %c0_68 = arith.constant 0 : index
    %c0_69 = arith.constant 0 : index
    %c0_70 = arith.constant 0 : index
    %221 = vector.load %arg2[%c0_68, %c0_69, %c0_70] : memref<2x128x512xf32, #tpu.memory_space<vmem>>, vector<1x128x512xf32>
    %222 = vector.shape_cast %221 : vector<1x128x512xf32> to vector<128x512xf32>
    %cst_71 = arith.constant dense<0.000000e+00> : vector<8x512xf32>
    %223 = tpu.matmul %213, %222, %cst_71 {dimension_numbers = #tpu.dot_dimension_numbers<[1], [0], [0], [1], [0, 0, 1, 1], [], []>} : vector<8x128xf32>, vector<128x512xf32>, vector<8x512xf32> -> vector<8x512xf32>
    %224 = arith.addf %220, %223 : vector<8x512xf32>
    %225 = vector.extract_strided_slice %224 {offsets = [0, 0], sizes = [8, 128], strides = [1, 1]} : vector<8x512xf32> to vector<8x128xf32>
    %226 = arith.negf %225 : vector<8x128xf32>
    %227 = math.exp %226 : vector<8x128xf32>
    %cst_72 = arith.constant 1.000000e+00 : f32
    %228 = vector.broadcast %cst_72 : f32 to vector<8x128xf32>
    %229 = arith.addf %228, %227 : vector<8x128xf32>
    %230 = arith.divf %228, %229 : vector<8x128xf32>
    %231 = vector.extract_strided_slice %224 {offsets = [0, 128], sizes = [8, 128], strides = [1, 1]} : vector<8x512xf32> to vector<8x128xf32>
    %232 = arith.negf %231 : vector<8x128xf32>
    %233 = math.exp %232 : vector<8x128xf32>
    %cst_73 = arith.constant 1.000000e+00 : f32
    %234 = vector.broadcast %cst_73 : f32 to vector<8x128xf32>
    %235 = arith.addf %234, %233 : vector<8x128xf32>
    %236 = arith.divf %234, %235 : vector<8x128xf32>
    %237 = vector.extract_strided_slice %224 {offsets = [0, 256], sizes = [8, 128], strides = [1, 1]} : vector<8x512xf32> to vector<8x128xf32>
    %238 = math.tanh %237 : vector<8x128xf32>
    %239 = vector.extract_strided_slice %224 {offsets = [0, 384], sizes = [8, 128], strides = [1, 1]} : vector<8x512xf32> to vector<8x128xf32>
    %240 = arith.negf %239 : vector<8x128xf32>
    %241 = math.exp %240 : vector<8x128xf32>
    %cst_74 = arith.constant 1.000000e+00 : f32
    %242 = vector.broadcast %cst_74 : f32 to vector<8x128xf32>
    %243 = arith.addf %242, %241 : vector<8x128xf32>
    %244 = arith.divf %242, %243 : vector<8x128xf32>
    %245 = arith.mulf %236, %211 : vector<8x128xf32>
    %246 = arith.mulf %230, %238 : vector<8x128xf32>
    %247 = arith.addf %245, %246 : vector<8x128xf32>
    %248 = math.tanh %247 : vector<8x128xf32>
    %249 = arith.mulf %244, %248 : vector<8x128xf32>
    %250 = arith.index_cast %c6_i32 : i32 to index
    %c0_75 = arith.constant 0 : index
    %c0_76 = arith.constant 0 : index
    %251 = vector.load %arg8[%250, %c0_75, %c0_76] : memref<8x8x128xf32, #tpu.memory_space<vmem>>, vector<1x8x128xf32>
    %252 = vector.shape_cast %251 : vector<1x8x128xf32> to vector<8x128xf32>
    %253 = vector.shape_cast %249 : vector<8x128xf32> to vector<1x8x128xf32>
    tpu.vector_store %arg8[%250, %c0_75, %c0_76], %253 {strides = array<i32>} : memref<8x8x128xf32, #tpu.memory_space<vmem>>, vector<1x8x128xf32>,
    %c7_i32 = arith.constant 7 : i32
    %254 = arith.index_cast %c7_i32 : i32 to index
    %c0_77 = arith.constant 0 : index
    %c0_78 = arith.constant 0 : index
    %255 = vector.load %arg1[%254, %c0_77, %c0_78] : memref<8x8x512xf32, #tpu.memory_space<vmem>>, vector<1x8x512xf32>
    %256 = vector.shape_cast %255 : vector<1x8x512xf32> to vector<8x512xf32>
    %c0_79 = arith.constant 0 : index
    %c0_80 = arith.constant 0 : index
    %c0_81 = arith.constant 0 : index
    %257 = vector.load %arg2[%c0_79, %c0_80, %c0_81] : memref<2x128x512xf32, #tpu.memory_space<vmem>>, vector<1x128x512xf32>
    %258 = vector.shape_cast %257 : vector<1x128x512xf32> to vector<128x512xf32>
    %cst_82 = arith.constant dense<0.000000e+00> : vector<8x512xf32>
    %259 = tpu.matmul %249, %258, %cst_82 {dimension_numbers = #tpu.dot_dimension_numbers<[1], [0], [0], [1], [0, 0, 1, 1], [], []>} : vector<8x128xf32>, vector<128x512xf32>, vector<8x512xf32> -> vector<8x512xf32>
    %260 = arith.addf %256, %259 : vector<8x512xf32>
    %261 = vector.extract_strided_slice %260 {offsets = [0, 0], sizes = [8, 128], strides = [1, 1]} : vector<8x512xf32> to vector<8x128xf32>
    %262 = arith.negf %261 : vector<8x128xf32>
    %263 = math.exp %262 : vector<8x128xf32>
    %cst_83 = arith.constant 1.000000e+00 : f32
    %264 = vector.broadcast %cst_83 : f32 to vector<8x128xf32>
    %265 = arith.addf %264, %263 : vector<8x128xf32>
    %266 = arith.divf %264, %265 : vector<8x128xf32>
    %267 = vector.extract_strided_slice %260 {offsets = [0, 128], sizes = [8, 128], strides = [1, 1]} : vector<8x512xf32> to vector<8x128xf32>
    %268 = arith.negf %267 : vector<8x128xf32>
    %269 = math.exp %268 : vector<8x128xf32>
    %cst_84 = arith.constant 1.000000e+00 : f32
    %270 = vector.broadcast %cst_84 : f32 to vector<8x128xf32>
    %271 = arith.addf %270, %269 : vector<8x128xf32>
    %272 = arith.divf %270, %271 : vector<8x128xf32>
    %273 = vector.extract_strided_slice %260 {offsets = [0, 256], sizes = [8, 128], strides = [1, 1]} : vector<8x512xf32> to vector<8x128xf32>
    %274 = math.tanh %273 : vector<8x128xf32>
    %275 = vector.extract_strided_slice %260 {offsets = [0, 384], sizes = [8, 128], strides = [1, 1]} : vector<8x512xf32> to vector<8x128xf32>
    %276 = arith.negf %275 : vector<8x128xf32>
    %277 = math.exp %276 : vector<8x128xf32>
    %cst_85 = arith.constant 1.000000e+00 : f32
    %278 = vector.broadcast %cst_85 : f32 to vector<8x128xf32>
    %279 = arith.addf %278, %277 : vector<8x128xf32>
    %280 = arith.divf %278, %279 : vector<8x128xf32>
    %281 = arith.mulf %272, %247 : vector<8x128xf32>
    %282 = arith.mulf %266, %274 : vector<8x128xf32>
    %283 = arith.addf %281, %282 : vector<8x128xf32>
    %284 = math.tanh %283 : vector<8x128xf32>
    %285 = arith.mulf %280, %284 : vector<8x128xf32>
    %286 = arith.index_cast %c7_i32 : i32 to index
    %c0_86 = arith.constant 0 : index
    %c0_87 = arith.constant 0 : index
    %287 = vector.load %arg8[%286, %c0_86, %c0_87] : memref<8x8x128xf32, #tpu.memory_space<vmem>>, vector<1x8x128xf32>
    %288 = vector.shape_cast %287 : vector<1x8x128xf32> to vector<8x128xf32>
    %289 = vector.shape_cast %285 : vector<8x128xf32> to vector<1x8x128xf32>
    tpu.vector_store %arg8[%286, %c0_86, %c0_87], %289 {strides = array<i32>} : memref<8x8x128xf32, #tpu.memory_space<vmem>>, vector<1x8x128xf32>,
    %c8_i32 = arith.constant 8 : i32
    %c0_88 = arith.constant 0 : index
    %c0_89 = arith.constant 0 : index
    %c0_90 = arith.constant 0 : index
    %290 = vector.load %arg6[%c0_88, %c0_89, %c0_90] : memref<2x8x128xf32, #tpu.memory_space<vmem>>, vector<1x8x128xf32>
    %291 = vector.shape_cast %290 : vector<1x8x128xf32> to vector<8x128xf32>
    %292 = vector.shape_cast %285 : vector<8x128xf32> to vector<1x8x128xf32>
    tpu.vector_store %arg6[%c0_88, %c0_89, %c0_90], %292 {strides = array<i32>} : memref<2x8x128xf32, #tpu.memory_space<vmem>>, vector<1x8x128xf32>,
    %c0_91 = arith.constant 0 : index
    %c0_92 = arith.constant 0 : index
    %c0_93 = arith.constant 0 : index
    %293 = vector.load %arg7[%c0_91, %c0_92, %c0_93] : memref<2x8x128xf32, #tpu.memory_space<vmem>>, vector<1x8x128xf32>
    %294 = vector.shape_cast %293 : vector<1x8x128xf32> to vector<8x128xf32>
    %295 = vector.shape_cast %283 : vector<8x128xf32> to vector<1x8x128xf32>
    tpu.vector_store %arg7[%c0_91, %c0_92, %c0_93], %295 {strides = array<i32>} : memref<2x8x128xf32, #tpu.memory_space<vmem>>, vector<1x8x128xf32>,
    %c0_94 = arith.constant 0 : index
    %c0_95 = arith.constant 0 : index
    %c0_96 = arith.constant 0 : index
    %296 = vector.load %arg8[%c0_94, %c0_95, %c0_96] : memref<8x8x128xf32, #tpu.memory_space<vmem>>, vector<8x8x128xf32>
    %297 = vector.shape_cast %296 : vector<8x8x128xf32> to vector<64x128xf32>
    %c0_97 = arith.constant 0 : index
    %c0_98 = arith.constant 0 : index
    %c0_99 = arith.constant 0 : index
    %298 = vector.load %arg3[%c0_97, %c0_98, %c0_99] : memref<1x128x512xf32, #tpu.memory_space<vmem>>, vector<1x128x512xf32>
    %299 = vector.shape_cast %298 : vector<1x128x512xf32> to vector<128x512xf32>
    %cst_100 = arith.constant dense<0.000000e+00> : vector<64x512xf32>
    %300 = tpu.matmul %297, %299, %cst_100 {dimension_numbers = #tpu.dot_dimension_numbers<[1], [0], [0], [1], [0, 0, 1, 1], [], []>} : vector<64x128xf32>, vector<128x512xf32>, vector<64x512xf32> -> vector<64x512xf32>
    %c0_101 = arith.constant 0 : index
    %c0_102 = arith.constant 0 : index
    %c0_103 = arith.constant 0 : index
    %301 = vector.load %arg4[%c0_101, %c0_102, %c0_103] : memref<1x1x512xf32, #tpu.memory_space<vmem>>, vector<1x1x512xf32>
    %302 = vector.shape_cast %301 : vector<1x1x512xf32> to vector<1x512xf32>
    %303 = vector.broadcast %302 : vector<1x512xf32> to vector<64x512xf32>
    %304 = arith.addf %300, %303 : vector<64x512xf32>
    %305 = vector.shape_cast %304 : vector<64x512xf32> to vector<8x8x512xf32>
    %c0_104 = arith.constant 0 : index
    %c0_105 = arith.constant 0 : index
    %c0_106 = arith.constant 0 : index
    %306 = vector.load %arg9[%c0_104, %c0_105, %c0_106] : memref<8x8x512xf32, #tpu.memory_space<vmem>>, vector<8x8x512xf32>
    tpu.vector_store %arg9[%c0_104, %c0_105, %c0_106], %305 {strides = array<i32>} : memref<8x8x512xf32, #tpu.memory_space<vmem>>, vector<8x8x512xf32>,
    %cst_107 = arith.constant 0.000000e+00 : f32
    %307 = vector.broadcast %cst_107 : f32 to vector<8x128xf32>
    %cst_108 = arith.constant 0.000000e+00 : f32
    %308 = vector.broadcast %cst_108 : f32 to vector<8x128xf32>
    %c0_i32_109 = arith.constant 0 : i32
    %309 = arith.index_cast %c0_i32_109 : i32 to index
    %c0_110 = arith.constant 0 : index
    %c0_111 = arith.constant 0 : index
    %310 = vector.load %arg9[%309, %c0_110, %c0_111] : memref<8x8x512xf32, #tpu.memory_space<vmem>>, vector<1x8x512xf32>
    %311 = vector.shape_cast %310 : vector<1x8x512xf32> to vector<8x512xf32>
    %c1 = arith.constant 1 : index
    %c0_112 = arith.constant 0 : index
    %c0_113 = arith.constant 0 : index
    %312 = vector.load %arg2[%c1, %c0_112, %c0_113] : memref<2x128x512xf32, #tpu.memory_space<vmem>>, vector<1x128x512xf32>
    %313 = vector.shape_cast %312 : vector<1x128x512xf32> to vector<128x512xf32>
    %cst_114 = arith.constant dense<0.000000e+00> : vector<8x512xf32>
    %314 = tpu.matmul %307, %313, %cst_114 {dimension_numbers = #tpu.dot_dimension_numbers<[1], [0], [0], [1], [0, 0, 1, 1], [], []>} : vector<8x128xf32>, vector<128x512xf32>, vector<8x512xf32> -> vector<8x512xf32>
    %315 = arith.addf %311, %314 : vector<8x512xf32>
    %316 = vector.extract_strided_slice %315 {offsets = [0, 0], sizes = [8, 128], strides = [1, 1]} : vector<8x512xf32> to vector<8x128xf32>
    %317 = arith.negf %316 : vector<8x128xf32>
    %318 = math.exp %317 : vector<8x128xf32>
    %cst_115 = arith.constant 1.000000e+00 : f32
    %319 = vector.broadcast %cst_115 : f32 to vector<8x128xf32>
    %320 = arith.addf %319, %318 : vector<8x128xf32>
    %321 = arith.divf %319, %320 : vector<8x128xf32>
    %322 = vector.extract_strided_slice %315 {offsets = [0, 128], sizes = [8, 128], strides = [1, 1]} : vector<8x512xf32> to vector<8x128xf32>
    %323 = arith.negf %322 : vector<8x128xf32>
    %324 = math.exp %323 : vector<8x128xf32>
    %cst_116 = arith.constant 1.000000e+00 : f32
    %325 = vector.broadcast %cst_116 : f32 to vector<8x128xf32>
    %326 = arith.addf %325, %324 : vector<8x128xf32>
    %327 = arith.divf %325, %326 : vector<8x128xf32>
    %328 = vector.extract_strided_slice %315 {offsets = [0, 256], sizes = [8, 128], strides = [1, 1]} : vector<8x512xf32> to vector<8x128xf32>
    %329 = math.tanh %328 : vector<8x128xf32>
    %330 = vector.extract_strided_slice %315 {offsets = [0, 384], sizes = [8, 128], strides = [1, 1]} : vector<8x512xf32> to vector<8x128xf32>
    %331 = arith.negf %330 : vector<8x128xf32>
    %332 = math.exp %331 : vector<8x128xf32>
    %cst_117 = arith.constant 1.000000e+00 : f32
    %333 = vector.broadcast %cst_117 : f32 to vector<8x128xf32>
    %334 = arith.addf %333, %332 : vector<8x128xf32>
    %335 = arith.divf %333, %334 : vector<8x128xf32>
    %336 = arith.mulf %327, %308 : vector<8x128xf32>
    %337 = arith.mulf %321, %329 : vector<8x128xf32>
    %338 = arith.addf %336, %337 : vector<8x128xf32>
    %339 = math.tanh %338 : vector<8x128xf32>
    %340 = arith.mulf %335, %339 : vector<8x128xf32>
    %341 = arith.index_cast %c0_i32_109 : i32 to index
    %c0_118 = arith.constant 0 : index
    %c0_119 = arith.constant 0 : index
    %342 = vector.load %arg5[%341, %c0_118, %c0_119] : memref<8x8x128xf32, #tpu.memory_space<vmem>>, vector<1x8x128xf32>
    %343 = vector.shape_cast %342 : vector<1x8x128xf32> to vector<8x128xf32>
    %344 = vector.shape_cast %340 : vector<8x128xf32> to vector<1x8x128xf32>
    tpu.vector_store %arg5[%341, %c0_118, %c0_119], %344 {strides = array<i32>} : memref<8x8x128xf32, #tpu.memory_space<vmem>>, vector<1x8x128xf32>,
    %c1_i32_120 = arith.constant 1 : i32
    %345 = arith.index_cast %c1_i32_120 : i32 to index
    %c0_121 = arith.constant 0 : index
    %c0_122 = arith.constant 0 : index
    %346 = vector.load %arg9[%345, %c0_121, %c0_122] : memref<8x8x512xf32, #tpu.memory_space<vmem>>, vector<1x8x512xf32>
    %347 = vector.shape_cast %346 : vector<1x8x512xf32> to vector<8x512xf32>
    %c1_123 = arith.constant 1 : index
    %c0_124 = arith.constant 0 : index
    %c0_125 = arith.constant 0 : index
    %348 = vector.load %arg2[%c1_123, %c0_124, %c0_125] : memref<2x128x512xf32, #tpu.memory_space<vmem>>, vector<1x128x512xf32>
    %349 = vector.shape_cast %348 : vector<1x128x512xf32> to vector<128x512xf32>
    %cst_126 = arith.constant dense<0.000000e+00> : vector<8x512xf32>
    %350 = tpu.matmul %340, %349, %cst_126 {dimension_numbers = #tpu.dot_dimension_numbers<[1], [0], [0], [1], [0, 0, 1, 1], [], []>} : vector<8x128xf32>, vector<128x512xf32>, vector<8x512xf32> -> vector<8x512xf32>
    %351 = arith.addf %347, %350 : vector<8x512xf32>
    %352 = vector.extract_strided_slice %351 {offsets = [0, 0], sizes = [8, 128], strides = [1, 1]} : vector<8x512xf32> to vector<8x128xf32>
    %353 = arith.negf %352 : vector<8x128xf32>
    %354 = math.exp %353 : vector<8x128xf32>
    %cst_127 = arith.constant 1.000000e+00 : f32
    %355 = vector.broadcast %cst_127 : f32 to vector<8x128xf32>
    %356 = arith.addf %355, %354 : vector<8x128xf32>
    %357 = arith.divf %355, %356 : vector<8x128xf32>
    %358 = vector.extract_strided_slice %351 {offsets = [0, 128], sizes = [8, 128], strides = [1, 1]} : vector<8x512xf32> to vector<8x128xf32>
    %359 = arith.negf %358 : vector<8x128xf32>
    %360 = math.exp %359 : vector<8x128xf32>
    %cst_128 = arith.constant 1.000000e+00 : f32
    %361 = vector.broadcast %cst_128 : f32 to vector<8x128xf32>
    %362 = arith.addf %361, %360 : vector<8x128xf32>
    %363 = arith.divf %361, %362 : vector<8x128xf32>
    %364 = vector.extract_strided_slice %351 {offsets = [0, 256], sizes = [8, 128], strides = [1, 1]} : vector<8x512xf32> to vector<8x128xf32>
    %365 = math.tanh %364 : vector<8x128xf32>
    %366 = vector.extract_strided_slice %351 {offsets = [0, 384], sizes = [8, 128], strides = [1, 1]} : vector<8x512xf32> to vector<8x128xf32>
    %367 = arith.negf %366 : vector<8x128xf32>
    %368 = math.exp %367 : vector<8x128xf32>
    %cst_129 = arith.constant 1.000000e+00 : f32
    %369 = vector.broadcast %cst_129 : f32 to vector<8x128xf32>
    %370 = arith.addf %369, %368 : vector<8x128xf32>
    %371 = arith.divf %369, %370 : vector<8x128xf32>
    %372 = arith.mulf %363, %338 : vector<8x128xf32>
    %373 = arith.mulf %357, %365 : vector<8x128xf32>
    %374 = arith.addf %372, %373 : vector<8x128xf32>
    %375 = math.tanh %374 : vector<8x128xf32>
    %376 = arith.mulf %371, %375 : vector<8x128xf32>
    %377 = arith.index_cast %c1_i32_120 : i32 to index
    %c0_130 = arith.constant 0 : index
    %c0_131 = arith.constant 0 : index
    %378 = vector.load %arg5[%377, %c0_130, %c0_131] : memref<8x8x128xf32, #tpu.memory_space<vmem>>, vector<1x8x128xf32>
    %379 = vector.shape_cast %378 : vector<1x8x128xf32> to vector<8x128xf32>
    %380 = vector.shape_cast %376 : vector<8x128xf32> to vector<1x8x128xf32>
    tpu.vector_store %arg5[%377, %c0_130, %c0_131], %380 {strides = array<i32>} : memref<8x8x128xf32, #tpu.memory_space<vmem>>, vector<1x8x128xf32>,
    %c2_i32_132 = arith.constant 2 : i32
    %381 = arith.index_cast %c2_i32_132 : i32 to index
    %c0_133 = arith.constant 0 : index
    %c0_134 = arith.constant 0 : index
    %382 = vector.load %arg9[%381, %c0_133, %c0_134] : memref<8x8x512xf32, #tpu.memory_space<vmem>>, vector<1x8x512xf32>
    %383 = vector.shape_cast %382 : vector<1x8x512xf32> to vector<8x512xf32>
    %c1_135 = arith.constant 1 : index
    %c0_136 = arith.constant 0 : index
    %c0_137 = arith.constant 0 : index
    %384 = vector.load %arg2[%c1_135, %c0_136, %c0_137] : memref<2x128x512xf32, #tpu.memory_space<vmem>>, vector<1x128x512xf32>
    %385 = vector.shape_cast %384 : vector<1x128x512xf32> to vector<128x512xf32>
    %cst_138 = arith.constant dense<0.000000e+00> : vector<8x512xf32>
    %386 = tpu.matmul %376, %385, %cst_138 {dimension_numbers = #tpu.dot_dimension_numbers<[1], [0], [0], [1], [0, 0, 1, 1], [], []>} : vector<8x128xf32>, vector<128x512xf32>, vector<8x512xf32> -> vector<8x512xf32>
    %387 = arith.addf %383, %386 : vector<8x512xf32>
    %388 = vector.extract_strided_slice %387 {offsets = [0, 0], sizes = [8, 128], strides = [1, 1]} : vector<8x512xf32> to vector<8x128xf32>
    %389 = arith.negf %388 : vector<8x128xf32>
    %390 = math.exp %389 : vector<8x128xf32>
    %cst_139 = arith.constant 1.000000e+00 : f32
    %391 = vector.broadcast %cst_139 : f32 to vector<8x128xf32>
    %392 = arith.addf %391, %390 : vector<8x128xf32>
    %393 = arith.divf %391, %392 : vector<8x128xf32>
    %394 = vector.extract_strided_slice %387 {offsets = [0, 128], sizes = [8, 128], strides = [1, 1]} : vector<8x512xf32> to vector<8x128xf32>
    %395 = arith.negf %394 : vector<8x128xf32>
    %396 = math.exp %395 : vector<8x128xf32>
    %cst_140 = arith.constant 1.000000e+00 : f32
    %397 = vector.broadcast %cst_140 : f32 to vector<8x128xf32>
    %398 = arith.addf %397, %396 : vector<8x128xf32>
    %399 = arith.divf %397, %398 : vector<8x128xf32>
    %400 = vector.extract_strided_slice %387 {offsets = [0, 256], sizes = [8, 128], strides = [1, 1]} : vector<8x512xf32> to vector<8x128xf32>
    %401 = math.tanh %400 : vector<8x128xf32>
    %402 = vector.extract_strided_slice %387 {offsets = [0, 384], sizes = [8, 128], strides = [1, 1]} : vector<8x512xf32> to vector<8x128xf32>
    %403 = arith.negf %402 : vector<8x128xf32>
    %404 = math.exp %403 : vector<8x128xf32>
    %cst_141 = arith.constant 1.000000e+00 : f32
    %405 = vector.broadcast %cst_141 : f32 to vector<8x128xf32>
    %406 = arith.addf %405, %404 : vector<8x128xf32>
    %407 = arith.divf %405, %406 : vector<8x128xf32>
    %408 = arith.mulf %399, %374 : vector<8x128xf32>
    %409 = arith.mulf %393, %401 : vector<8x128xf32>
    %410 = arith.addf %408, %409 : vector<8x128xf32>
    %411 = math.tanh %410 : vector<8x128xf32>
    %412 = arith.mulf %407, %411 : vector<8x128xf32>
    %413 = arith.index_cast %c2_i32_132 : i32 to index
    %c0_142 = arith.constant 0 : index
    %c0_143 = arith.constant 0 : index
    %414 = vector.load %arg5[%413, %c0_142, %c0_143] : memref<8x8x128xf32, #tpu.memory_space<vmem>>, vector<1x8x128xf32>
    %415 = vector.shape_cast %414 : vector<1x8x128xf32> to vector<8x128xf32>
    %416 = vector.shape_cast %412 : vector<8x128xf32> to vector<1x8x128xf32>
    tpu.vector_store %arg5[%413, %c0_142, %c0_143], %416 {strides = array<i32>} : memref<8x8x128xf32, #tpu.memory_space<vmem>>, vector<1x8x128xf32>,
    %c3_i32_144 = arith.constant 3 : i32
    %417 = arith.index_cast %c3_i32_144 : i32 to index
    %c0_145 = arith.constant 0 : index
    %c0_146 = arith.constant 0 : index
    %418 = vector.load %arg9[%417, %c0_145, %c0_146] : memref<8x8x512xf32, #tpu.memory_space<vmem>>, vector<1x8x512xf32>
    %419 = vector.shape_cast %418 : vector<1x8x512xf32> to vector<8x512xf32>
    %c1_147 = arith.constant 1 : index
    %c0_148 = arith.constant 0 : index
    %c0_149 = arith.constant 0 : index
    %420 = vector.load %arg2[%c1_147, %c0_148, %c0_149] : memref<2x128x512xf32, #tpu.memory_space<vmem>>, vector<1x128x512xf32>
    %421 = vector.shape_cast %420 : vector<1x128x512xf32> to vector<128x512xf32>
    %cst_150 = arith.constant dense<0.000000e+00> : vector<8x512xf32>
    %422 = tpu.matmul %412, %421, %cst_150 {dimension_numbers = #tpu.dot_dimension_numbers<[1], [0], [0], [1], [0, 0, 1, 1], [], []>} : vector<8x128xf32>, vector<128x512xf32>, vector<8x512xf32> -> vector<8x512xf32>
    %423 = arith.addf %419, %422 : vector<8x512xf32>
    %424 = vector.extract_strided_slice %423 {offsets = [0, 0], sizes = [8, 128], strides = [1, 1]} : vector<8x512xf32> to vector<8x128xf32>
    %425 = arith.negf %424 : vector<8x128xf32>
    %426 = math.exp %425 : vector<8x128xf32>
    %cst_151 = arith.constant 1.000000e+00 : f32
    %427 = vector.broadcast %cst_151 : f32 to vector<8x128xf32>
    %428 = arith.addf %427, %426 : vector<8x128xf32>
    %429 = arith.divf %427, %428 : vector<8x128xf32>
    %430 = vector.extract_strided_slice %423 {offsets = [0, 128], sizes = [8, 128], strides = [1, 1]} : vector<8x512xf32> to vector<8x128xf32>
    %431 = arith.negf %430 : vector<8x128xf32>
    %432 = math.exp %431 : vector<8x128xf32>
    %cst_152 = arith.constant 1.000000e+00 : f32
    %433 = vector.broadcast %cst_152 : f32 to vector<8x128xf32>
    %434 = arith.addf %433, %432 : vector<8x128xf32>
    %435 = arith.divf %433, %434 : vector<8x128xf32>
    %436 = vector.extract_strided_slice %423 {offsets = [0, 256], sizes = [8, 128], strides = [1, 1]} : vector<8x512xf32> to vector<8x128xf32>
    %437 = math.tanh %436 : vector<8x128xf32>
    %438 = vector.extract_strided_slice %423 {offsets = [0, 384], sizes = [8, 128], strides = [1, 1]} : vector<8x512xf32> to vector<8x128xf32>
    %439 = arith.negf %438 : vector<8x128xf32>
    %440 = math.exp %439 : vector<8x128xf32>
    %cst_153 = arith.constant 1.000000e+00 : f32
    %441 = vector.broadcast %cst_153 : f32 to vector<8x128xf32>
    %442 = arith.addf %441, %440 : vector<8x128xf32>
    %443 = arith.divf %441, %442 : vector<8x128xf32>
    %444 = arith.mulf %435, %410 : vector<8x128xf32>
    %445 = arith.mulf %429, %437 : vector<8x128xf32>
    %446 = arith.addf %444, %445 : vector<8x128xf32>
    %447 = math.tanh %446 : vector<8x128xf32>
    %448 = arith.mulf %443, %447 : vector<8x128xf32>
    %449 = arith.index_cast %c3_i32_144 : i32 to index
    %c0_154 = arith.constant 0 : index
    %c0_155 = arith.constant 0 : index
    %450 = vector.load %arg5[%449, %c0_154, %c0_155] : memref<8x8x128xf32, #tpu.memory_space<vmem>>, vector<1x8x128xf32>
    %451 = vector.shape_cast %450 : vector<1x8x128xf32> to vector<8x128xf32>
    %452 = vector.shape_cast %448 : vector<8x128xf32> to vector<1x8x128xf32>
    tpu.vector_store %arg5[%449, %c0_154, %c0_155], %452 {strides = array<i32>} : memref<8x8x128xf32, #tpu.memory_space<vmem>>, vector<1x8x128xf32>,
    %c4_i32_156 = arith.constant 4 : i32
    %453 = arith.index_cast %c4_i32_156 : i32 to index
    %c0_157 = arith.constant 0 : index
    %c0_158 = arith.constant 0 : index
    %454 = vector.load %arg9[%453, %c0_157, %c0_158] : memref<8x8x512xf32, #tpu.memory_space<vmem>>, vector<1x8x512xf32>
    %455 = vector.shape_cast %454 : vector<1x8x512xf32> to vector<8x512xf32>
    %c1_159 = arith.constant 1 : index
    %c0_160 = arith.constant 0 : index
    %c0_161 = arith.constant 0 : index
    %456 = vector.load %arg2[%c1_159, %c0_160, %c0_161] : memref<2x128x512xf32, #tpu.memory_space<vmem>>, vector<1x128x512xf32>
    %457 = vector.shape_cast %456 : vector<1x128x512xf32> to vector<128x512xf32>
    %cst_162 = arith.constant dense<0.000000e+00> : vector<8x512xf32>
    %458 = tpu.matmul %448, %457, %cst_162 {dimension_numbers = #tpu.dot_dimension_numbers<[1], [0], [0], [1], [0, 0, 1, 1], [], []>} : vector<8x128xf32>, vector<128x512xf32>, vector<8x512xf32> -> vector<8x512xf32>
    %459 = arith.addf %455, %458 : vector<8x512xf32>
    %460 = vector.extract_strided_slice %459 {offsets = [0, 0], sizes = [8, 128], strides = [1, 1]} : vector<8x512xf32> to vector<8x128xf32>
    %461 = arith.negf %460 : vector<8x128xf32>
    %462 = math.exp %461 : vector<8x128xf32>
    %cst_163 = arith.constant 1.000000e+00 : f32
    %463 = vector.broadcast %cst_163 : f32 to vector<8x128xf32>
    %464 = arith.addf %463, %462 : vector<8x128xf32>
    %465 = arith.divf %463, %464 : vector<8x128xf32>
    %466 = vector.extract_strided_slice %459 {offsets = [0, 128], sizes = [8, 128], strides = [1, 1]} : vector<8x512xf32> to vector<8x128xf32>
    %467 = arith.negf %466 : vector<8x128xf32>
    %468 = math.exp %467 : vector<8x128xf32>
    %cst_164 = arith.constant 1.000000e+00 : f32
    %469 = vector.broadcast %cst_164 : f32 to vector<8x128xf32>
    %470 = arith.addf %469, %468 : vector<8x128xf32>
    %471 = arith.divf %469, %470 : vector<8x128xf32>
    %472 = vector.extract_strided_slice %459 {offsets = [0, 256], sizes = [8, 128], strides = [1, 1]} : vector<8x512xf32> to vector<8x128xf32>
    %473 = math.tanh %472 : vector<8x128xf32>
    %474 = vector.extract_strided_slice %459 {offsets = [0, 384], sizes = [8, 128], strides = [1, 1]} : vector<8x512xf32> to vector<8x128xf32>
    %475 = arith.negf %474 : vector<8x128xf32>
    %476 = math.exp %475 : vector<8x128xf32>
    %cst_165 = arith.constant 1.000000e+00 : f32
    %477 = vector.broadcast %cst_165 : f32 to vector<8x128xf32>
    %478 = arith.addf %477, %476 : vector<8x128xf32>
    %479 = arith.divf %477, %478 : vector<8x128xf32>
    %480 = arith.mulf %471, %446 : vector<8x128xf32>
    %481 = arith.mulf %465, %473 : vector<8x128xf32>
    %482 = arith.addf %480, %481 : vector<8x128xf32>
    %483 = math.tanh %482 : vector<8x128xf32>
    %484 = arith.mulf %479, %483 : vector<8x128xf32>
    %485 = arith.index_cast %c4_i32_156 : i32 to index
    %c0_166 = arith.constant 0 : index
    %c0_167 = arith.constant 0 : index
    %486 = vector.load %arg5[%485, %c0_166, %c0_167] : memref<8x8x128xf32, #tpu.memory_space<vmem>>, vector<1x8x128xf32>
    %487 = vector.shape_cast %486 : vector<1x8x128xf32> to vector<8x128xf32>
    %488 = vector.shape_cast %484 : vector<8x128xf32> to vector<1x8x128xf32>
    tpu.vector_store %arg5[%485, %c0_166, %c0_167], %488 {strides = array<i32>} : memref<8x8x128xf32, #tpu.memory_space<vmem>>, vector<1x8x128xf32>,
    %c5_i32_168 = arith.constant 5 : i32
    %489 = arith.index_cast %c5_i32_168 : i32 to index
    %c0_169 = arith.constant 0 : index
    %c0_170 = arith.constant 0 : index
    %490 = vector.load %arg9[%489, %c0_169, %c0_170] : memref<8x8x512xf32, #tpu.memory_space<vmem>>, vector<1x8x512xf32>
    %491 = vector.shape_cast %490 : vector<1x8x512xf32> to vector<8x512xf32>
    %c1_171 = arith.constant 1 : index
    %c0_172 = arith.constant 0 : index
    %c0_173 = arith.constant 0 : index
    %492 = vector.load %arg2[%c1_171, %c0_172, %c0_173] : memref<2x128x512xf32, #tpu.memory_space<vmem>>, vector<1x128x512xf32>
    %493 = vector.shape_cast %492 : vector<1x128x512xf32> to vector<128x512xf32>
    %cst_174 = arith.constant dense<0.000000e+00> : vector<8x512xf32>
    %494 = tpu.matmul %484, %493, %cst_174 {dimension_numbers = #tpu.dot_dimension_numbers<[1], [0], [0], [1], [0, 0, 1, 1], [], []>} : vector<8x128xf32>, vector<128x512xf32>, vector<8x512xf32> -> vector<8x512xf32>
    %495 = arith.addf %491, %494 : vector<8x512xf32>
    %496 = vector.extract_strided_slice %495 {offsets = [0, 0], sizes = [8, 128], strides = [1, 1]} : vector<8x512xf32> to vector<8x128xf32>
    %497 = arith.negf %496 : vector<8x128xf32>
    %498 = math.exp %497 : vector<8x128xf32>
    %cst_175 = arith.constant 1.000000e+00 : f32
    %499 = vector.broadcast %cst_175 : f32 to vector<8x128xf32>
    %500 = arith.addf %499, %498 : vector<8x128xf32>
    %501 = arith.divf %499, %500 : vector<8x128xf32>
    %502 = vector.extract_strided_slice %495 {offsets = [0, 128], sizes = [8, 128], strides = [1, 1]} : vector<8x512xf32> to vector<8x128xf32>
    %503 = arith.negf %502 : vector<8x128xf32>
    %504 = math.exp %503 : vector<8x128xf32>
    %cst_176 = arith.constant 1.000000e+00 : f32
    %505 = vector.broadcast %cst_176 : f32 to vector<8x128xf32>
    %506 = arith.addf %505, %504 : vector<8x128xf32>
    %507 = arith.divf %505, %506 : vector<8x128xf32>
    %508 = vector.extract_strided_slice %495 {offsets = [0, 256], sizes = [8, 128], strides = [1, 1]} : vector<8x512xf32> to vector<8x128xf32>
    %509 = math.tanh %508 : vector<8x128xf32>
    %510 = vector.extract_strided_slice %495 {offsets = [0, 384], sizes = [8, 128], strides = [1, 1]} : vector<8x512xf32> to vector<8x128xf32>
    %511 = arith.negf %510 : vector<8x128xf32>
    %512 = math.exp %511 : vector<8x128xf32>
    %cst_177 = arith.constant 1.000000e+00 : f32
    %513 = vector.broadcast %cst_177 : f32 to vector<8x128xf32>
    %514 = arith.addf %513, %512 : vector<8x128xf32>
    %515 = arith.divf %513, %514 : vector<8x128xf32>
    %516 = arith.mulf %507, %482 : vector<8x128xf32>
    %517 = arith.mulf %501, %509 : vector<8x128xf32>
    %518 = arith.addf %516, %517 : vector<8x128xf32>
    %519 = math.tanh %518 : vector<8x128xf32>
    %520 = arith.mulf %515, %519 : vector<8x128xf32>
    %521 = arith.index_cast %c5_i32_168 : i32 to index
    %c0_178 = arith.constant 0 : index
    %c0_179 = arith.constant 0 : index
    %522 = vector.load %arg5[%521, %c0_178, %c0_179] : memref<8x8x128xf32, #tpu.memory_space<vmem>>, vector<1x8x128xf32>
    %523 = vector.shape_cast %522 : vector<1x8x128xf32> to vector<8x128xf32>
    %524 = vector.shape_cast %520 : vector<8x128xf32> to vector<1x8x128xf32>
    tpu.vector_store %arg5[%521, %c0_178, %c0_179], %524 {strides = array<i32>} : memref<8x8x128xf32, #tpu.memory_space<vmem>>, vector<1x8x128xf32>,
    %c6_i32_180 = arith.constant 6 : i32
    %525 = arith.index_cast %c6_i32_180 : i32 to index
    %c0_181 = arith.constant 0 : index
    %c0_182 = arith.constant 0 : index
    %526 = vector.load %arg9[%525, %c0_181, %c0_182] : memref<8x8x512xf32, #tpu.memory_space<vmem>>, vector<1x8x512xf32>
    %527 = vector.shape_cast %526 : vector<1x8x512xf32> to vector<8x512xf32>
    %c1_183 = arith.constant 1 : index
    %c0_184 = arith.constant 0 : index
    %c0_185 = arith.constant 0 : index
    %528 = vector.load %arg2[%c1_183, %c0_184, %c0_185] : memref<2x128x512xf32, #tpu.memory_space<vmem>>, vector<1x128x512xf32>
    %529 = vector.shape_cast %528 : vector<1x128x512xf32> to vector<128x512xf32>
    %cst_186 = arith.constant dense<0.000000e+00> : vector<8x512xf32>
    %530 = tpu.matmul %520, %529, %cst_186 {dimension_numbers = #tpu.dot_dimension_numbers<[1], [0], [0], [1], [0, 0, 1, 1], [], []>} : vector<8x128xf32>, vector<128x512xf32>, vector<8x512xf32> -> vector<8x512xf32>
    %531 = arith.addf %527, %530 : vector<8x512xf32>
    %532 = vector.extract_strided_slice %531 {offsets = [0, 0], sizes = [8, 128], strides = [1, 1]} : vector<8x512xf32> to vector<8x128xf32>
    %533 = arith.negf %532 : vector<8x128xf32>
    %534 = math.exp %533 : vector<8x128xf32>
    %cst_187 = arith.constant 1.000000e+00 : f32
    %535 = vector.broadcast %cst_187 : f32 to vector<8x128xf32>
    %536 = arith.addf %535, %534 : vector<8x128xf32>
    %537 = arith.divf %535, %536 : vector<8x128xf32>
    %538 = vector.extract_strided_slice %531 {offsets = [0, 128], sizes = [8, 128], strides = [1, 1]} : vector<8x512xf32> to vector<8x128xf32>
    %539 = arith.negf %538 : vector<8x128xf32>
    %540 = math.exp %539 : vector<8x128xf32>
    %cst_188 = arith.constant 1.000000e+00 : f32
    %541 = vector.broadcast %cst_188 : f32 to vector<8x128xf32>
    %542 = arith.addf %541, %540 : vector<8x128xf32>
    %543 = arith.divf %541, %542 : vector<8x128xf32>
    %544 = vector.extract_strided_slice %531 {offsets = [0, 256], sizes = [8, 128], strides = [1, 1]} : vector<8x512xf32> to vector<8x128xf32>
    %545 = math.tanh %544 : vector<8x128xf32>
    %546 = vector.extract_strided_slice %531 {offsets = [0, 384], sizes = [8, 128], strides = [1, 1]} : vector<8x512xf32> to vector<8x128xf32>
    %547 = arith.negf %546 : vector<8x128xf32>
    %548 = math.exp %547 : vector<8x128xf32>
    %cst_189 = arith.constant 1.000000e+00 : f32
    %549 = vector.broadcast %cst_189 : f32 to vector<8x128xf32>
    %550 = arith.addf %549, %548 : vector<8x128xf32>
    %551 = arith.divf %549, %550 : vector<8x128xf32>
    %552 = arith.mulf %543, %518 : vector<8x128xf32>
    %553 = arith.mulf %537, %545 : vector<8x128xf32>
    %554 = arith.addf %552, %553 : vector<8x128xf32>
    %555 = math.tanh %554 : vector<8x128xf32>
    %556 = arith.mulf %551, %555 : vector<8x128xf32>
    %557 = arith.index_cast %c6_i32_180 : i32 to index
    %c0_190 = arith.constant 0 : index
    %c0_191 = arith.constant 0 : index
    %558 = vector.load %arg5[%557, %c0_190, %c0_191] : memref<8x8x128xf32, #tpu.memory_space<vmem>>, vector<1x8x128xf32>
    %559 = vector.shape_cast %558 : vector<1x8x128xf32> to vector<8x128xf32>
    %560 = vector.shape_cast %556 : vector<8x128xf32> to vector<1x8x128xf32>
    tpu.vector_store %arg5[%557, %c0_190, %c0_191], %560 {strides = array<i32>} : memref<8x8x128xf32, #tpu.memory_space<vmem>>, vector<1x8x128xf32>,
    %c7_i32_192 = arith.constant 7 : i32
    %561 = arith.index_cast %c7_i32_192 : i32 to index
    %c0_193 = arith.constant 0 : index
    %c0_194 = arith.constant 0 : index
    %562 = vector.load %arg9[%561, %c0_193, %c0_194] : memref<8x8x512xf32, #tpu.memory_space<vmem>>, vector<1x8x512xf32>
    %563 = vector.shape_cast %562 : vector<1x8x512xf32> to vector<8x512xf32>
    %c1_195 = arith.constant 1 : index
    %c0_196 = arith.constant 0 : index
    %c0_197 = arith.constant 0 : index
    %564 = vector.load %arg2[%c1_195, %c0_196, %c0_197] : memref<2x128x512xf32, #tpu.memory_space<vmem>>, vector<1x128x512xf32>
    %565 = vector.shape_cast %564 : vector<1x128x512xf32> to vector<128x512xf32>
    %cst_198 = arith.constant dense<0.000000e+00> : vector<8x512xf32>
    %566 = tpu.matmul %556, %565, %cst_198 {dimension_numbers = #tpu.dot_dimension_numbers<[1], [0], [0], [1], [0, 0, 1, 1], [], []>} : vector<8x128xf32>, vector<128x512xf32>, vector<8x512xf32> -> vector<8x512xf32>
    %567 = arith.addf %563, %566 : vector<8x512xf32>
    %568 = vector.extract_strided_slice %567 {offsets = [0, 0], sizes = [8, 128], strides = [1, 1]} : vector<8x512xf32> to vector<8x128xf32>
    %569 = arith.negf %568 : vector<8x128xf32>
    %570 = math.exp %569 : vector<8x128xf32>
    %cst_199 = arith.constant 1.000000e+00 : f32
    %571 = vector.broadcast %cst_199 : f32 to vector<8x128xf32>
    %572 = arith.addf %571, %570 : vector<8x128xf32>
    %573 = arith.divf %571, %572 : vector<8x128xf32>
    %574 = vector.extract_strided_slice %567 {offsets = [0, 128], sizes = [8, 128], strides = [1, 1]} : vector<8x512xf32> to vector<8x128xf32>
    %575 = arith.negf %574 : vector<8x128xf32>
    %576 = math.exp %575 : vector<8x128xf32>
    %cst_200 = arith.constant 1.000000e+00 : f32
    %577 = vector.broadcast %cst_200 : f32 to vector<8x128xf32>
    %578 = arith.addf %577, %576 : vector<8x128xf32>
    %579 = arith.divf %577, %578 : vector<8x128xf32>
    %580 = vector.extract_strided_slice %567 {offsets = [0, 256], sizes = [8, 128], strides = [1, 1]} : vector<8x512xf32> to vector<8x128xf32>
    %581 = math.tanh %580 : vector<8x128xf32>
    %582 = vector.extract_strided_slice %567 {offsets = [0, 384], sizes = [8, 128], strides = [1, 1]} : vector<8x512xf32> to vector<8x128xf32>
    %583 = arith.negf %582 : vector<8x128xf32>
    %584 = math.exp %583 : vector<8x128xf32>
    %cst_201 = arith.constant 1.000000e+00 : f32
    %585 = vector.broadcast %cst_201 : f32 to vector<8x128xf32>
    %586 = arith.addf %585, %584 : vector<8x128xf32>
    %587 = arith.divf %585, %586 : vector<8x128xf32>
    %588 = arith.mulf %579, %554 : vector<8x128xf32>
    %589 = arith.mulf %573, %581 : vector<8x128xf32>
    %590 = arith.addf %588, %589 : vector<8x128xf32>
    %591 = math.tanh %590 : vector<8x128xf32>
    %592 = arith.mulf %587, %591 : vector<8x128xf32>
    %593 = arith.index_cast %c7_i32_192 : i32 to index
    %c0_202 = arith.constant 0 : index
    %c0_203 = arith.constant 0 : index
    %594 = vector.load %arg5[%593, %c0_202, %c0_203] : memref<8x8x128xf32, #tpu.memory_space<vmem>>, vector<1x8x128xf32>
    %595 = vector.shape_cast %594 : vector<1x8x128xf32> to vector<8x128xf32>
    %596 = vector.shape_cast %592 : vector<8x128xf32> to vector<1x8x128xf32>
    tpu.vector_store %arg5[%593, %c0_202, %c0_203], %596 {strides = array<i32>} : memref<8x8x128xf32, #tpu.memory_space<vmem>>, vector<1x8x128xf32>,
    %c8_i32_204 = arith.constant 8 : i32
    %c1_205 = arith.constant 1 : index
    %c0_206 = arith.constant 0 : index
    %c0_207 = arith.constant 0 : index
    %597 = vector.load %arg6[%c1_205, %c0_206, %c0_207] : memref<2x8x128xf32, #tpu.memory_space<vmem>>, vector<1x8x128xf32>
    %598 = vector.shape_cast %597 : vector<1x8x128xf32> to vector<8x128xf32>
    %599 = vector.shape_cast %592 : vector<8x128xf32> to vector<1x8x128xf32>
    tpu.vector_store %arg6[%c1_205, %c0_206, %c0_207], %599 {strides = array<i32>} : memref<2x8x128xf32, #tpu.memory_space<vmem>>, vector<1x8x128xf32>,
    %c1_208 = arith.constant 1 : index
    %c0_209 = arith.constant 0 : index
    %c0_210 = arith.constant 0 : index
    %600 = vector.load %arg7[%c1_208, %c0_209, %c0_210] : memref<2x8x128xf32, #tpu.memory_space<vmem>>, vector<1x8x128xf32>
    %601 = vector.shape_cast %600 : vector<1x8x128xf32> to vector<8x128xf32>
    %602 = vector.shape_cast %590 : vector<8x128xf32> to vector<1x8x128xf32>
    tpu.vector_store %arg7[%c1_208, %c0_209, %c0_210], %602 {strides = array<i32>} : memref<2x8x128xf32, #tpu.memory_space<vmem>>, vector<1x8x128xf32>,
    return
  }
  func.func @transform_0(%arg0: i32) -> (i32, i32, i32) {
    %c0_i32 = arith.constant 0 : i32
    %c0_i32_0 = arith.constant 0 : i32
    %c0_i32_1 = arith.constant 0 : i32
    %c0_i32_2 = arith.constant 0 : i32
    return %c0_i32, %c0_i32_0, %c0_i32_1 : i32, i32, i32
  }
  func.func @transform_1(%arg0: i32) -> (i32, i32, i32) {
    %c0_i32 = arith.constant 0 : i32
    %c0_i32_0 = arith.constant 0 : i32
    %c0_i32_1 = arith.constant 0 : i32
    %c0_i32_2 = arith.constant 0 : i32
    return %c0_i32, %c0_i32_0, %c0_i32_1 : i32, i32, i32
  }
  func.func @transform_2(%arg0: i32) -> (i32, i32, i32) {
    %c0_i32 = arith.constant 0 : i32
    %c0_i32_0 = arith.constant 0 : i32
    %c0_i32_1 = arith.constant 0 : i32
    %c0_i32_2 = arith.constant 0 : i32
    return %c0_i32, %c0_i32_0, %c0_i32_1 : i32, i32, i32
  }
  func.func @transform_3(%arg0: i32) -> (i32, i32, i32) {
    %c0_i32 = arith.constant 0 : i32
    %c0_i32_0 = arith.constant 0 : i32
    %c0_i32_1 = arith.constant 0 : i32
    %c0_i32_2 = arith.constant 0 : i32
    return %c0_i32, %c0_i32_0, %c0_i32_1 : i32, i32, i32
  }
  func.func @transform_4(%arg0: i32) -> (i32, i32, i32) {
    %c0_i32 = arith.constant 0 : i32
    %c0_i32_0 = arith.constant 0 : i32
    %c0_i32_1 = arith.constant 0 : i32
    %c0_i32_2 = arith.constant 0 : i32
    return %c0_i32, %c0_i32_0, %c0_i32_1 : i32, i32, i32
  }
  func.func @transform_5(%arg0: i32) -> (i32, i32, i32) {
    %c0_i32 = arith.constant 0 : i32
    %c0_i32_0 = arith.constant 0 : i32
    %c0_i32_1 = arith.constant 0 : i32
    %c0_i32_2 = arith.constant 0 : i32
    return %c0_i32, %c0_i32_0, %c0_i32_1 : i32, i32, i32
  }
  func.func @transform_6(%arg0: i32) -> (i32, i32, i32) {
    %c0_i32 = arith.constant 0 : i32
    %c0_i32_0 = arith.constant 0 : i32
    %c0_i32_1 = arith.constant 0 : i32
    %c0_i32_2 = arith.constant 0 : i32
    return %c0_i32, %c0_i32_0, %c0_i32_1 : i32, i32, i32
  }
}

</mosaic_0001>

<llo_original>
// kernel: tpu_custom_call.1
$region0: #{tpu_custom_call.1}
  #allocation0 [shape = 'u32[]', space=smem, size = 0x4, offset = 0x4, fixed_abs, tag = 'smem constant byte address 0x4 - core index']
  #allocation1 [shape = 'u32[144,128]{1,0:T(1,128)}', space=vmem, size = 0x12000, scoped, tag = 'internal scratch']
  #allocation2 [shape = 'f32[8,8,128]{2,1,0:T(8,128)}', space=vmem, size = 0x8000, scoped, tag = 'scratch operand']
  #allocation3 [shape = 'f32[8,8,512]{2,1,0:T(8,128)}', space=vmem, size = 0x20000, scoped, tag = 'scratch operand']
  %s0 = inlined_call_operand.hbm [shape: f32[8,8,512], index: 0, kind: input, shape index: {}]
  %s1 = inlined_call_operand.hbm [shape: f32[2,128,512], index: 1, kind: input, shape index: {}]
  %s2 = inlined_call_operand.hbm [shape: f32[1,128,512], index: 2, kind: input, shape index: {}]
  %s3 = inlined_call_operand.vmem [shape: f32[1,1,512], index: 3, kind: input, shape index: {}]
  %s4 = inlined_call_operand.hbm [shape: f32[8,8,128], index: 4, kind: output, shape index: {0}]
  %s5 = inlined_call_operand.hbm [shape: f32[2,8,128], index: 5, kind: output, shape index: {1}]
  %s6 = inlined_call_operand.hbm [shape: f32[2,8,128], index: 6, kind: output, shape index: {2}]
  %7 = xla_tuple %s4, %s5, %s6
  %s8 = sld [smem:[#allocation0]]
  $region54: #{tpu_custom_call.1} parent=0
    _
  %s10 = ssub.s32 1, %s8
  %s11 = scalar_select 0, %s10, %s8
  $region1: #{tpu_custom_call.1} parent=0
    #allocation4 [shape = 'u8[131072]{0}', space=vmem, size = 0x20000, scoped, tag = 'input window, operand 0, single buffered']
    #allocation5 [shape = 's32[1]{0}', space=sflag, size = 0x4, scoped, tag = 'scoped memory for tpu_custom_call.1']
    #allocation6 [shape = 's32[1]{0}', space=sflag, size = 0x4, scoped, tag = 'scoped memory for tpu_custom_call.1']
    #allocation7 [shape = 'u8[524288]{0}', space=vmem, size = 0x80000, scoped, tag = 'input window, operand 1, single buffered']
    #allocation8 [shape = 's32[1]{0}', space=sflag, size = 0x4, scoped, tag = 'scoped memory for tpu_custom_call.1']
    #allocation9 [shape = 'u8[262144]{0}', space=vmem, size = 0x40000, scoped, tag = 'input window, operand 2, single buffered']
    #allocation10 [shape = 'u8[32768]{0}', space=vmem, size = 0x8000, scoped, tag = 'output window, operand 0, single buffered']
    #allocation11 [shape = 'u8[8192]{0}', space=vmem, size = 0x2000, scoped, tag = 'output window, operand 1, single buffered']
    #allocation12 [shape = 's32[1]{0}', space=sflag, size = 0x4, scoped, tag = 'scoped memory for tpu_custom_call.1']
    #allocation13 [shape = 'u8[8192]{0}', space=vmem, size = 0x2000, scoped, tag = 'output window, operand 2, single buffered']
    %12 = vsyncpa [#allocation5], 0
    %13 = vsyncpa [#allocation8], 0
    %14 = vsyncpa [#allocation6], 0
    %15 = vsyncpa [#allocation12], 0
    // Predicated region
    $region2: #{tpu_custom_call.1} parent=1 // pred_check
      _
    $region3: #{tpu_custom_call.1} parent=1 // pred_check_branch
      %17 = sbr.rel (0) target = $region5
    $region4: #{tpu_custom_call.1} parent=1 // pred_region
      %s19 = ssub.s32 4096, 4096
      %20 = vsyncadd [#allocation5], %s19
      %s21 = sshll.u32 [#allocation4], 4
      %s22 = int_to_ptr.vmem [resolvable:$true] %s21
      %27 = dma.hbm_to_vmem [thread:$0]  %s0, 4096, %s22, [#allocation5], 512, 512, 32
    $region5: #{tpu_custom_call.1} parent=1 // pred_fallthru
      _
    // Predicated region
    $region6: #{tpu_custom_call.1} parent=1 // pred_check
      _
    $region7: #{tpu_custom_call.1} parent=1 // pred_check_branch
      %29 = sbr.rel (0) target = $region9
    $region8: #{tpu_custom_call.1} parent=1 // pred_region
      %s31 = ssub.s32 16384, 16384
      %32 = vsyncadd [#allocation8], %s31
      %s33 = sshll.u32 [#allocation7], 4
      %s34 = int_to_ptr.vmem [resolvable:$true] %s33
      %39 = dma.hbm_to_vmem [thread:$0]  %s1, 16384, %s34, [#allocation8], 512, 512, 32
    $region9: #{tpu_custom_call.1} parent=1 // pred_fallthru
      _
    // Predicated region
    $region10: #{tpu_custom_call.1} parent=1 // pred_check
      _
    $region11: #{tpu_custom_call.1} parent=1 // pred_check_branch
      %41 = sbr.rel (0) target = $region13
    $region12: #{tpu_custom_call.1} parent=1 // pred_region
      %s43 = ssub.s32 8192, 8192
      %44 = vsyncadd [#allocation8], %s43
      %s45 = sshll.u32 [#allocation9], 4
      %s46 = int_to_ptr.vmem [resolvable:$true] %s45
      %51 = dma.hbm_to_vmem [thread:$0]  %s2, 8192, %s46, [#allocation8], 512, 512, 32
    $region13: #{tpu_custom_call.1} parent=1 // pred_fallthru
      _
    // Predicated region
    $region14: #{tpu_custom_call.1} parent=1 // pred_check
      _
    $region15: #{tpu_custom_call.1} parent=1 // pred_check_branch
      %53 = sbr.rel (0) target = $region17
    $region16: #{tpu_custom_call.1} parent=1 // pred_region
      _
    $region17: #{tpu_custom_call.1} parent=1 // pred_fallthru
      _
    // Predicated region
    $region18: #{tpu_custom_call.1} parent=1 // pred_check
      _
    $region19: #{tpu_custom_call.1} parent=1 // pred_check_branch
      %55 = sbr.rel (0) target = $region21
    $region20: #{tpu_custom_call.1} parent=1 // pred_region
      %56 = dma.done [#allocation5], 4096
    $region21: #{tpu_custom_call.1} parent=1 // pred_fallthru
      _
    // Predicated region
    $region22: #{tpu_custom_call.1} parent=1 // pred_check
      _
    $region23: #{tpu_custom_call.1} parent=1 // pred_check_branch
      %58 = sbr.rel (0) target = $region25
    $region24: #{tpu_custom_call.1} parent=1 // pred_region
      %59 = dma.done [#allocation8], 16384
    $region25: #{tpu_custom_call.1} parent=1 // pred_fallthru
      _
    // Predicated region
    $region26: #{tpu_custom_call.1} parent=1 // pred_check
      _
    $region27: #{tpu_custom_call.1} parent=1 // pred_check_branch
      %61 = sbr.rel (0) target = $region29
    $region28: #{tpu_custom_call.1} parent=1 // pred_region
      %62 = dma.done [#allocation8], 8192
    $region29: #{tpu_custom_call.1} parent=1 // pred_fallthru
      _
    %v63 = vld [vmem:[#allocation4] sm:$0xff]
    %v64 = vld [vmem:[#allocation4 + $0x8] sm:$0xff]
    %v65 = vld [vmem:[#allocation4 + $0x10] sm:$0xff]
    %v66 = vld [vmem:[#allocation4 + $0x18] sm:$0xff]
    %v67 = vld [vmem:[#allocation7] sm:$0xff]
    %v68 = vld [vmem:[#allocation7 + $0x8] sm:$0xff]
    %v69 = vld [vmem:[#allocation7 + $0x10] sm:$0xff]
    %v70 = vld [vmem:[#allocation7 + $0x18] sm:$0xff]
    %v71 = vld [vmem:[#allocation7 + $0x20] sm:$0xff]
    %v72 = vld [vmem:[#allocation7 + $0x28] sm:$0xff]
    %v73 = vld [vmem:[#allocation7 + $0x30] sm:$0xff]
    %v74 = vld [vmem:[#allocation7 + $0x38] sm:$0xff]
    %v75 = vld [vmem:[#allocation7 + $0x40] sm:$0xff]
    %v76 = vld [vmem:[#allocation7 + $0x48] sm:$0xff]
    %v77 = vld [vmem:[#allocation7 + $0x50] sm:$0xff]
    %v78 = vld [vmem:[#allocation7 + $0x58] sm:$0xff]
    %v79 = vld [vmem:[#allocation7 + $0x60] sm:$0xff]
    %v80 = vld [vmem:[#allocation7 + $0x68] sm:$0xff]
    %v81 = vld [vmem:[#allocation7 + $0x70] sm:$0xff]
    %v82 = vld [vmem:[#allocation7 + $0x78] sm:$0xff]
    %v83 = vld [vmem:[#allocation7 + $0x80] sm:$0xff]
    %v84 = vld [vmem:[#allocation7 + $0x88] sm:$0xff]
    %v85 = vld [vmem:[#allocation7 + $0x90] sm:$0xff]
    %v86 = vld [vmem:[#allocation7 + $0x98] sm:$0xff]
    %v87 = vld [vmem:[#allocation7 + $0xa0] sm:$0xff]
    %v88 = vld [vmem:[#allocation7 + $0xa8] sm:$0xff]
    %v89 = vld [vmem:[#allocation7 + $0xb0] sm:$0xff]
    %v90 = vld [vmem:[#allocation7 + $0xb8] sm:$0xff]
    %v91 = vld [vmem:[#allocation7 + $0xc0] sm:$0xff]
    %v92 = vld [vmem:[#allocation7 + $0xc8] sm:$0xff]
    %v93 = vld [vmem:[#allocation7 + $0xd0] sm:$0xff]
    %v94 = vld [vmem:[#allocation7 + $0xd8] sm:$0xff]
    %v95 = vld [vmem:[#allocation7 + $0xe0] sm:$0xff]
    %v96 = vld [vmem:[#allocation7 + $0xe8] sm:$0xff]
    %v97 = vld [vmem:[#allocation7 + $0xf0] sm:$0xff]
    %v98 = vld [vmem:[#allocation7 + $0xf8] sm:$0xff]
    %v99 = vld [vmem:[#allocation7 + $0x100] sm:$0xff]
    %v100 = vld [vmem:[#allocation7 + $0x108] sm:$0xff]
    %v101 = vld [vmem:[#allocation7 + $0x110] sm:$0xff]
    %v102 = vld [vmem:[#allocation7 + $0x118] sm:$0xff]
    %v103 = vld [vmem:[#allocation7 + $0x120] sm:$0xff]
    %v104 = vld [vmem:[#allocation7 + $0x128] sm:$0xff]
    %v105 = vld [vmem:[#allocation7 + $0x130] sm:$0xff]
    %v106 = vld [vmem:[#allocation7 + $0x138] sm:$0xff]
    %v107 = vld [vmem:[#allocation7 + $0x140] sm:$0xff]
    %v108 = vld [vmem:[#allocation7 + $0x148] sm:$0xff]
    %v109 = vld [vmem:[#allocation7 + $0x150] sm:$0xff]
    %v110 = vld [vmem:[#allocation7 + $0x158] sm:$0xff]
    %v111 = vld [vmem:[#allocation7 + $0x160] sm:$0xff]
    %v112 = vld [vmem:[#allocation7 + $0x168] sm:$0xff]
    %v113 = vld [vmem:[#allocation7 + $0x170] sm:$0xff]
    %v114 = vld [vmem:[#allocation7 + $0x178] sm:$0xff]
    %v115 = vld [vmem:[#allocation7 + $0x180] sm:$0xff]
    %v116 = vld [vmem:[#allocation7 + $0x188] sm:$0xff]
    %v117 = vld [vmem:[#allocation7 + $0x190] sm:$0xff]
    %v118 = vld [vmem:[#allocation7 + $0x198] sm:$0xff]
    %v119 = vld [vmem:[#allocation7 + $0x1a0] sm:$0xff]
    %v120 = vld [vmem:[#allocation7 + $0x1a8] sm:$0xff]
    %v121 = vld [vmem:[#allocation7 + $0x1b0] sm:$0xff]
    %v122 = vld [vmem:[#allocation7 + $0x1b8] sm:$0xff]
    %v123 = vld [vmem:[#allocation7 + $0x1c0] sm:$0xff]
    %v124 = vld [vmem:[#allocation7 + $0x1c8] sm:$0xff]
    %v125 = vld [vmem:[#allocation7 + $0x1d0] sm:$0xff]
    %v126 = vld [vmem:[#allocation7 + $0x1d8] sm:$0xff]
    %v127 = vld [vmem:[#allocation7 + $0x1e0] sm:$0xff]
    %v128 = vld [vmem:[#allocation7 + $0x1e8] sm:$0xff]
    %v129 = vld [vmem:[#allocation7 + $0x1f0] sm:$0xff]
    %v130 = vld [vmem:[#allocation7 + $0x1f8] sm:$0xff]
    %131 = vmatprep.subr.mxu0 %v128
    %132 = vmatpush1.msra.mxu0 %v127
    %133 = vmatprep.subr.mxu0 %v124
    %134 = vmatpush1.msra.mxu0 %v123
    %135 = vmatprep.subr.mxu0 %v120
    %136 = vmatpush1.msra.mxu0 %v119
    %137 = vmatprep.subr.mxu0 %v116
    %138 = vmatpush1.msra.mxu0 %v115
    %139 = vmatprep.subr.mxu0 %v112
    %140 = vmatpush1.msra.mxu0 %v111
    %141 = vmatprep.subr.mxu0 %v108
    %142 = vmatpush1.msra.mxu0 %v107
    %143 = vmatprep.subr.mxu0 %v104
    %144 = vmatpush1.msra.mxu0 %v103
    %145 = vmatprep.subr.mxu0 %v100
    %146 = vmatpush1.msra.mxu0 %v99
    %147 = vmatprep.subr.mxu0 %v96
    %148 = vmatpush1.msra.mxu0 %v95
    %149 = vmatprep.subr.mxu0 %v92
    %150 = vmatpush1.msra.mxu0 %v91
    %151 = vmatprep.subr.mxu0 %v88
    %152 = vmatpush1.msra.mxu0 %v87
    %153 = vmatprep.subr.mxu0 %v84
    %154 = vmatpush1.msra.mxu0 %v83
    %155 = vmatprep.subr.mxu0 %v80
    %156 = vmatpush1.msra.mxu0 %v79
    %157 = vmatprep.subr.mxu0 %v76
    %158 = vmatpush1.msra.mxu0 %v75
    %159 = vmatprep.subr.mxu0 %v72
    %160 = vmatpush1.msra.mxu0 %v71
    %161 = vmatprep.subr.mxu0 %v68
    %162 = vmatpush1.msra.mxu0 %v67
    %163 = vmatprep.subr.mxu0 0.0
    %164 = vmatpush2.msra.mxu0 0.0
    %165 = vmatprep.subr.mxu0 0.0
    %166 = vmatpush2.msra.mxu0 0.0
    %167 = vmatprep.subr.mxu0 0.0
    %168 = vmatpush2.msra.mxu0 0.0
    %169 = vmatprep.subr.mxu0 0.0
    %170 = vmatpush2.msra.mxu0 0.0
    %171 = vmatprep.subr.mxu0 0.0
    %172 = vmatpush2.msra.mxu0 0.0
    %173 = vmatprep.subr.mxu0 0.0
    %174 = vmatpush2.msra.mxu0 0.0
    %175 = vmatprep.subr.mxu0 0.0
    %176 = vmatpush2.msra.mxu0 0.0
    %177 = vmatprep.subr.mxu0 0.0
    %178 = vmatpush2.msra.mxu0 0.0
    %179 = vmatprep.subr.mxu0 0.0
    %180 = vmatpush2.msra.mxu0 0.0
    %181 = vmatprep.subr.mxu0 0.0
    %182 = vmatpush2.msra.mxu0 0.0
    %183 = vmatprep.subr.mxu0 0.0
    %184 = vmatpush2.msra.mxu0 0.0
    %185 = vmatprep.subr.mxu0 0.0
    %186 = vmatpush2.msra.mxu0 0.0
    %187 = vmatprep.subr.mxu0 0.0
    %188 = vmatpush2.msra.mxu0 0.0
    %189 = vmatprep.subr.mxu0 0.0
    %190 = vmatpush2.msra.mxu0 0.0
    %191 = vmatprep.subr.mxu0 0.0
    %192 = vmatpush2.msra.mxu0 0.0
    %193 = vmatprep.subr.mxu0 0.0
    %194 = vmatpush2.msra.mxu0 0.0
    %195 = vmatprep.mubr.f32.mxu0 0.0
    %196 = vmatmul.mubr.f32.gmra.mxu0 0.0
    %v197 = vpop.f32.mrf.mxu0
    %v198 = vadd.f32 0.0, %v197
    %v199 = vpop.f32.mrf.mxu0
    %v200 = vadd.f32 0.0, %v199
    %201 = vdwg.mxu0
    %202 = vmatprep.subr.mxu0 %v130
    %203 = vmatpush1.msra.mxu0 %v129
    %204 = vmatprep.subr.mxu0 %v126
    %205 = vmatpush1.msra.mxu0 %v125
    %206 = vmatprep.subr.mxu0 %v122
    %207 = vmatpush1.msra.mxu0 %v121
    %208 = vmatprep.subr.mxu0 %v118
    %209 = vmatpush1.msra.mxu0 %v117
    %210 = vmatprep.subr.mxu0 %v114
    %211 = vmatpush1.msra.mxu0 %v113
    %212 = vmatprep.subr.mxu0 %v110
    %213 = vmatpush1.msra.mxu0 %v109
    %214 = vmatprep.subr.mxu0 %v106
    %215 = vmatpush1.msra.mxu0 %v105
    %216 = vmatprep.subr.mxu0 %v102
    %217 = vmatpush1.msra.mxu0 %v101
    %218 = vmatprep.subr.mxu0 %v98
    %219 = vmatpush1.msra.mxu0 %v97
    %220 = vmatprep.subr.mxu0 %v94
    %221 = vmatpush1.msra.mxu0 %v93
    %222 = vmatprep.subr.mxu0 %v90
    %223 = vmatpush1.msra.mxu0 %v89
    %224 = vmatprep.subr.mxu0 %v86
    %225 = vmatpush1.msra.mxu0 %v85
    %226 = vmatprep.subr.mxu0 %v82
    %227 = vmatpush1.msra.mxu0 %v81
    %228 = vmatprep.subr.mxu0 %v78
    %229 = vmatpush1.msra.mxu0 %v77
    %230 = vmatprep.subr.mxu0 %v74
    %231 = vmatpush1.msra.mxu0 %v73
    %232 = vmatprep.subr.mxu0 %v70
    %233 = vmatpush1.msra.mxu0 %v69
    %234 = vmatprep.subr.mxu0 0.0
    %235 = vmatpush2.msra.mxu0 0.0
    %236 = vmatprep.subr.mxu0 0.0
    %237 = vmatpush2.msra.mxu0 0.0
    %238 = vmatprep.subr.mxu0 0.0
    %239 = vmatpush2.msra.mxu0 0.0
    %240 = vmatprep.subr.mxu0 0.0
    %241 = vmatpush2.msra.mxu0 0.0
    %242 = vmatprep.subr.mxu0 0.0
    %243 = vmatpush2.msra.mxu0 0.0
    %244 = vmatprep.subr.mxu0 0.0
    %245 = vmatpush2.msra.mxu0 0.0
    %246 = vmatprep.subr.mxu0 0.0
    %247 = vmatpush2.msra.mxu0 0.0
    %248 = vmatprep.subr.mxu0 0.0
    %249 = vmatpush2.msra.mxu0 0.0
    %250 = vmatprep.subr.mxu0 0.0
    %251 = vmatpush2.msra.mxu0 0.0
    %252 = vmatprep.subr.mxu0 0.0
    %253 = vmatpush2.msra.mxu0 0.0
    %254 = vmatprep.subr.mxu0 0.0
    %255 = vmatpush2.msra.mxu0 0.0
    %256 = vmatprep.subr.mxu0 0.0
    %257 = vmatpush2.msra.mxu0 0.0
    %258 = vmatprep.subr.mxu0 0.0
    %259 = vmatpush2.msra.mxu0 0.0
    %260 = vmatprep.subr.mxu0 0.0
    %261 = vmatpush2.msra.mxu0 0.0
    %262 = vmatprep.subr.mxu0 0.0
    %263 = vmatpush2.msra.mxu0 0.0
    %264 = vmatprep.subr.mxu0 0.0
    %265 = vmatpush2.msra.mxu0 0.0
    %266 = vmatprep.mubr.f32.mxu0 0.0
    %267 = vmatmul.mubr.f32.gmra.mxu0 0.0
    %v268 = vpop.f32.mrf.mxu0
    %v269 = vadd.f32 0.0, %v268
    %v270 = vpop.f32.mrf.mxu0
    %v271 = vadd.f32 0.0, %v270
    %272 = vdwg.mxu0
    %v273 = vadd.f32 %v63, %v198
    %v274 = vadd.f32 %v64, %v200
    %v275 = vadd.f32 %v65, %v269
    %v276 = vadd.f32 %v66, %v271
    %v277 = vxor.u32 %v273, 2147483648
    %v278 = vmul.f32 %v277, 1.442695
    %v279 = vpow.pop %v278
    %v280 = vadd.f32 %v279, 1.0
    %v281 = vrcp.pop %v280
    %v282 = vmul.f32 1.0, %v281
    %v283 = vxor.u32 %v274, 2147483648
    %v284 = vmul.f32 %v283, 1.442695
    %v285 = vpow.pop %v284
    %v286 = vadd.f32 %v285, 1.0
    %v287 = vrcp.pop %v286
    %v288 = vmul.f32 1.0, %v287
    %v289 = vtanh.pop %v275
    %v290 = vxor.u32 %v276, 2147483648
    %v291 = vmul.f32 %v290, 1.442695
    %v292 = vpow.pop %v291
    %v293 = vadd.f32 %v292, 1.0
    %v294 = vrcp.pop %v293
    %v295 = vmul.f32 1.0, %v294
    %v296 = vmul.f32 %v288, 0.0
    %v297 = vmul.f32 %v282, %v289
    %v298 = vadd.f32 %v296, %v297
    %v299 = vtanh.pop %v298
    %v300 = vmul.f32 %v295, %v299
    %301 = vst [vmem:[#allocation2] sm:$0xff] %v300
    %s302 = scalar_lea.vmem [#allocation4], 32
    %v303 = vld [vmem:[%s302] sm:$0xff]
    %v304 = vld [vmem:[%s302 + $0x8] sm:$0xff]
    %v305 = vld [vmem:[%s302 + $0x10] sm:$0xff]
    %v306 = vld [vmem:[%s302 + $0x18] sm:$0xff]
    %v307 = vld [vmem:[#allocation7] sm:$0xff]
    %v308 = vld [vmem:[#allocation7 + $0x8] sm:$0xff]
    %v309 = vld [vmem:[#allocation7 + $0x10] sm:$0xff]
    %v310 = vld [vmem:[#allocation7 + $0x18] sm:$0xff]
    %v311 = vld [vmem:[#allocation7 + $0x20] sm:$0xff]
    %v312 = vld [vmem:[#allocation7 + $0x28] sm:$0xff]
    %v313 = vld [vmem:[#allocation7 + $0x30] sm:$0xff]
    %v314 = vld [vmem:[#allocation7 + $0x38] sm:$0xff]
    %v315 = vld [vmem:[#allocation7 + $0x40] sm:$0xff]
    %v316 = vld [vmem:[#allocation7 + $0x48] sm:$0xff]
    %v317 = vld [vmem:[#allocation7 + $0x50] sm:$0xff]
    %v318 = vld [vmem:[#allocation7 + $0x58] sm:$0xff]
    %v319 = vld [vmem:[#allocation7 + $0x60] sm:$0xff]
    %v320 = vld [vmem:[#allocation7 + $0x68] sm:$0xff]
    %v321 = vld [vmem:[#allocation7 + $0x70] sm:$0xff]
    %v322 = vld [vmem:[#allocation7 + $0x78] sm:$0xff]
    %v323 = vld [vmem:[#allocation7 + $0x80] sm:$0xff]
    %v324 = vld [vmem:[#allocation7 + $0x88] sm:$0xff]
    %v325 = vld [vmem:[#allocation7 + $0x90] sm:$0xff]
    %v326 = vld [vmem:[#allocation7 + $0x98] sm:$0xff]
    %v327 = vld [vmem:[#allocation7 + $0xa0] sm:$0xff]
    %v328 = vld [vmem:[#allocation7 + $0xa8] sm:$0xff]
    %v329 = vld [vmem:[#allocation7 + $0xb0] sm:$0xff]
    %v330 = vld [vmem:[#allocation7 + $0xb8] sm:$0xff]
    %v331 = vld [vmem:[#allocation7 + $0xc0] sm:$0xff]
    %v332 = vld [vmem:[#allocation7 + $0xc8] sm:$0xff]
    %v333 = vld [vmem:[#allocation7 + $0xd0] sm:$0xff]
    %v334 = vld [vmem:[#allocation7 + $0xd8] sm:$0xff]
    %v335 = vld [vmem:[#allocation7 + $0xe0] sm:$0xff]
    %v336 = vld [vmem:[#allocation7 + $0xe8] sm:$0xff]
    %v337 = vld [vmem:[#allocation7 + $0xf0] sm:$0xff]
    %v338 = vld [vmem:[#allocation7 + $0xf8] sm:$0xff]
    %v339 = vld [vmem:[#allocation7 + $0x100] sm:$0xff]
    %v340 = vld [vmem:[#allocation7 + $0x108] sm:$0xff]
    %v341 = vld [vmem:[#allocation7 + $0x110] sm:$0xff]
    %v342 = vld [vmem:[#allocation7 + $0x118] sm:$0xff]
    %v343 = vld [vmem:[#allocation7 + $0x120] sm:$0xff]
    %v344 = vld [vmem:[#allocation7 + $0x128] sm:$0xff]
    %v345 = vld [vmem:[#allocation7 + $0x130] sm:$0xff]
    %v346 = vld [vmem:[#allocation7 + $0x138] sm:$0xff]
    %v347 = vld [vmem:[#allocation7 + $0x140] sm:$0xff]
    %v348 = vld [vmem:[#allocation7 + $0x148] sm:$0xff]
    %v349 = vld [vmem:[#allocation7 + $0x150] sm:$0xff]
    %v350 = vld [vmem:[#allocation7 + $0x158] sm:$0xff]
    %v351 = vld [vmem:[#allocation7 + $0x160] sm:$0xff]
    %v352 = vld [vmem:[#allocation7 + $0x168] sm:$0xff]
    %v353 = vld [vmem:[#allocation7 + $0x170] sm:$0xff]
    %v354 = vld [vmem:[#allocation7 + $0x178] sm:$0xff]
    %v355 = vld [vmem:[#allocation7 + $0x180] sm:$0xff]
    %v356 = vld [vmem:[#allocation7 + $0x188] sm:$0xff]
    %v357 = vld [vmem:[#allocation7 + $0x190] sm:$0xff]
    %v358 = vld [vmem:[#allocation7 + $0x198] sm:$0xff]
    %v359 = vld [vmem:[#allocation7 + $0x1a0] sm:$0xff]
    %v360 = vld [vmem:[#allocation7 + $0x1a8] sm:$0xff]
    %v361 = vld [vmem:[#allocation7 + $0x1b0] sm:$0xff]
    %v362 = vld [vmem:[#allocation7 + $0x1b8] sm:$0xff]
    %v363 = vld [vmem:[#allocation7 + $0x1c0] sm:$0xff]
    %v364 = vld [vmem:[#allocation7 + $0x1c8] sm:$0xff]
    %v365 = vld [vmem:[#allocation7 + $0x1d0] sm:$0xff]
    %v366 = vld [vmem:[#allocation7 + $0x1d8] sm:$0xff]
    %v367 = vld [vmem:[#allocation7 + $0x1e0] sm:$0xff]
    %v368 = vld [vmem:[#allocation7 + $0x1e8] sm:$0xff]
    %v369 = vld [vmem:[#allocation7 + $0x1f0] sm:$0xff]
    %v370 = vld [vmem:[#allocation7 + $0x1f8] sm:$0xff]
    %371 = vmatprep.subr.mxu0 %v368
    %372 = vmatpush1.msra.mxu0 %v367
    %373 = vmatprep.subr.mxu0 %v364
    %374 = vmatpush1.msra.mxu0 %v363
    %375 = vmatprep.subr.mxu0 %v360
    %376 = vmatpush1.msra.mxu0 %v359
    %377 = vmatprep.subr.mxu0 %v356
    %378 = vmatpush1.msra.mxu0 %v355
    %379 = vmatprep.subr.mxu0 %v352
    %380 = vmatpush1.msra.mxu0 %v351
    %381 = vmatprep.subr.mxu0 %v348
    %382 = vmatpush1.msra.mxu0 %v347
    %383 = vmatprep.subr.mxu0 %v344
    %384 = vmatpush1.msra.mxu0 %v343
    %385 = vmatprep.subr.mxu0 %v340
    %386 = vmatpush1.msra.mxu0 %v339
    %387 = vmatprep.subr.mxu0 %v336
    %388 = vmatpush1.msra.mxu0 %v335
    %389 = vmatprep.subr.mxu0 %v332
    %390 = vmatpush1.msra.mxu0 %v331
    %391 = vmatprep.subr.mxu0 %v328
    %392 = vmatpush1.msra.mxu0 %v327
    %393 = vmatprep.subr.mxu0 %v324
    %394 = vmatpush1.msra.mxu0 %v323
    %395 = vmatprep.subr.mxu0 %v320
    %396 = vmatpush1.msra.mxu0 %v319
    %397 = vmatprep.subr.mxu0 %v316
    %398 = vmatpush1.msra.mxu0 %v315
    %399 = vmatprep.subr.mxu0 %v312
    %400 = vmatpush1.msra.mxu0 %v311
    %401 = vmatprep.subr.mxu0 %v308
    %402 = vmatpush1.msra.mxu0 %v307
    %403 = vmatprep.subr.mxu0 0.0
    %404 = vmatpush2.msra.mxu0 0.0
    %405 = vmatprep.subr.mxu0 0.0
    %406 = vmatpush2.msra.mxu0 0.0
    %407 = vmatprep.subr.mxu0 0.0
    %408 = vmatpush2.msra.mxu0 0.0
    %409 = vmatprep.subr.mxu0 0.0
    %410 = vmatpush2.msra.mxu0 0.0
    %411 = vmatprep.subr.mxu0 0.0
    %412 = vmatpush2.msra.mxu0 0.0
    %413 = vmatprep.subr.mxu0 0.0
    %414 = vmatpush2.msra.mxu0 0.0
    %415 = vmatprep.subr.mxu0 0.0
    %416 = vmatpush2.msra.mxu0 0.0
    %417 = vmatprep.subr.mxu0 0.0
    %418 = vmatpush2.msra.mxu0 0.0
    %419 = vmatprep.subr.mxu0 0.0
    %420 = vmatpush2.msra.mxu0 0.0
    %421 = vmatprep.subr.mxu0 0.0
    %422 = vmatpush2.msra.mxu0 0.0
    %423 = vmatprep.subr.mxu0 0.0
    %424 = vmatpush2.msra.mxu0 0.0
    %425 = vmatprep.subr.mxu0 0.0
    %426 = vmatpush2.msra.mxu0 0.0
    %427 = vmatprep.subr.mxu0 0.0
    %428 = vmatpush2.msra.mxu0 0.0
    %429 = vmatprep.subr.mxu0 0.0
    %430 = vmatpush2.msra.mxu0 0.0
    %431 = vmatprep.subr.mxu0 0.0
    %432 = vmatpush2.msra.mxu0 0.0
    %433 = vmatprep.subr.mxu0 0.0
    %434 = vmatpush2.msra.mxu0 0.0
    %435 = vmatprep.mubr.f32.mxu0 0.0
    %436 = vmatmul.mubr.f32.gmra.mxu0 %v300
    %v437 = vpop.f32.mrf.mxu0
    %v438 = vadd.f32 0.0, %v437
    %v439 = vpop.f32.mrf.mxu0
    %v440 = vadd.f32 0.0, %v439
    %441 = vdwg.mxu0
    %442 = vmatprep.subr.mxu0 %v370
    %443 = vmatpush1.msra.mxu0 %v369
    %444 = vmatprep.subr.mxu0 %v366
    %445 = vmatpush1.msra.mxu0 %v365
    %446 = vmatprep.subr.mxu0 %v362
    %447 = vmatpush1.msra.mxu0 %v361
    %448 = vmatprep.subr.mxu0 %v358
    %449 = vmatpush1.msra.mxu0 %v357
    %450 = vmatprep.subr.mxu0 %v354
    %451 = vmatpush1.msra.mxu0 %v353
    %452 = vmatprep.subr.mxu0 %v350
    %453 = vmatpush1.msra.mxu0 %v349
    %454 = vmatprep.subr.mxu0 %v346
    %455 = vmatpush1.msra.mxu0 %v345
    %456 = vmatprep.subr.mxu0 %v342
    %457 = vmatpush1.msra.mxu0 %v341
    %458 = vmatprep.subr.mxu0 %v338
    %459 = vmatpush1.msra.mxu0 %v337
    %460 = vmatprep.subr.mxu0 %v334
    %461 = vmatpush1.msra.mxu0 %v333
    %462 = vmatprep.subr.mxu0 %v330
    %463 = vmatpush1.msra.mxu0 %v329
    %464 = vmatprep.subr.mxu0 %v326
    %465 = vmatpush1.msra.mxu0 %v325
    %466 = vmatprep.subr.mxu0 %v322
    %467 = vmatpush1.msra.mxu0 %v321
    %468 = vmatprep.subr.mxu0 %v318
    %469 = vmatpush1.msra.mxu0 %v317
    %470 = vmatprep.subr.mxu0 %v314
    %471 = vmatpush1.msra.mxu0 %v313
    %472 = vmatprep.subr.mxu0 %v310
    %473 = vmatpush1.msra.mxu0 %v309
    %474 = vmatprep.subr.mxu0 0.0
    %475 = vmatpush2.msra.mxu0 0.0
    %476 = vmatprep.subr.mxu0 0.0
    %477 = vmatpush2.msra.mxu0 0.0
    %478 = vmatprep.subr.mxu0 0.0
    %479 = vmatpush2.msra.mxu0 0.0
    %480 = vmatprep.subr.mxu0 0.0
    %481 = vmatpush2.msra.mxu0 0.0
    %482 = vmatprep.subr.mxu0 0.0
    %483 = vmatpush2.msra.mxu0 0.0
    %484 = vmatprep.subr.mxu0 0.0
    %485 = vmatpush2.msra.mxu0 0.0
    %486 = vmatprep.subr.mxu0 0.0
    %487 = vmatpush2.msra.mxu0 0.0
    %488 = vmatprep.subr.mxu0 0.0
    %489 = vmatpush2.msra.mxu0 0.0
    %490 = vmatprep.subr.mxu0 0.0
    %491 = vmatpush2.msra.mxu0 0.0
    %492 = vmatprep.subr.mxu0 0.0
    %493 = vmatpush2.msra.mxu0 0.0
    %494 = vmatprep.subr.mxu0 0.0
    %495 = vmatpush2.msra.mxu0 0.0
    %496 = vmatprep.subr.mxu0 0.0
    %497 = vmatpush2.msra.mxu0 0.0
    %498 = vmatprep.subr.mxu0 0.0
    %499 = vmatpush2.msra.mxu0 0.0
    %500 = vmatprep.subr.mxu0 0.0
    %501 = vmatpush2.msra.mxu0 0.0
    %502 = vmatprep.subr.mxu0 0.0
    %503 = vmatpush2.msra.mxu0 0.0
    %504 = vmatprep.subr.mxu0 0.0
    %505 = vmatpush2.msra.mxu0 0.0
    %506 = vmatprep.mubr.f32.mxu0 0.0
    %507 = vmatmul.mubr.f32.gmra.mxu0 %v300
    %v508 = vpop.f32.mrf.mxu0
    %v509 = vadd.f32 0.0, %v508
    %v510 = vpop.f32.mrf.mxu0
    %v511 = vadd.f32 0.0, %v510
    %512 = vdwg.mxu0
    %v513 = vadd.f32 %v303, %v438
    %v514 = vadd.f32 %v304, %v440
    %v515 = vadd.f32 %v305, %v509
    %v516 = vadd.f32 %v306, %v511
    %v517 = vxor.u32 %v513, 2147483648
    %v518 = vmul.f32 %v517, 1.442695
    %v519 = vpow.pop %v518
    %v520 = vadd.f32 %v519, 1.0
    %v521 = vrcp.pop %v520
    %v522 = vmul.f32 1.0, %v521
    %v523 = vxor.u32 %v514, 2147483648
    %v524 = vmul.f32 %v523, 1.442695
    %v525 = vpow.pop %v524
    %v526 = vadd.f32 %v525, 1.0
    %v527 = vrcp.pop %v526
    %v528 = vmul.f32 1.0, %v527
    %v529 = vtanh.pop %v515
    %v530 = vxor.u32 %v516, 2147483648
    %v531 = vmul.f32 %v530, 1.442695
    %v532 = vpow.pop %v531
    %v533 = vadd.f32 %v532, 1.0
    %v534 = vrcp.pop %v533
    %v535 = vmul.f32 1.0, %v534
    %v536 = vmul.f32 %v528, %v298
    %v537 = vmul.f32 %v522, %v529
    %v538 = vadd.f32 %v536, %v537
    %v539 = vtanh.pop %v538
    %v540 = vmul.f32 %v535, %v539
    %s541 = scalar_lea.vmem [#allocation2], 8
    %542 = vst [vmem:[%s541] sm:$0xff] %v540
    %s543 = scalar_lea.vmem [#allocation4], 64
    %v544 = vld [vmem:[%s543] sm:$0xff]
    %v545 = vld [vmem:[%s543 + $0x8] sm:$0xff]
    %v546 = vld [vmem:[%s543 + $0x10] sm:$0xff]
    %v547 = vld [vmem:[%s543 + $0x18] sm:$0xff]
    %v548 = vld [vmem:[#allocation7] sm:$0xff]
    %v549 = vld [vmem:[#allocation7 + $0x8] sm:$0xff]
    %v550 = vld [vmem:[#allocation7 + $0x10] sm:$0xff]
    %v551 = vld [vmem:[#allocation7 + $0x18] sm:$0xff]
    %v552 = vld [vmem:[#allocation7 + $0x20] sm:$0xff]
    %v553 = vld [vmem:[#allocation7 + $0x28] sm:$0xff]
    %v554 = vld [vmem:[#allocation7 + $0x30] sm:$0xff]
    %v555 = vld [vmem:[#allocation7 + $0x38] sm:$0xff]
    %v556 = vld [vmem:[#allocation7 + $0x40] sm:$0xff]
    %v557 = vld [vmem:[#allocation7 + $0x48] sm:$0xff]
    %v558 = vld [vmem:[#allocation7 + $0x50] sm:$0xff]
    %v559 = vld [vmem:[#allocation7 + $0x58] sm:$0xff]
    %v560 = vld [vmem:[#allocation7 + $0x60] sm:$0xff]
    %v561 = vld [vmem:[#allocation7 + $0x68] sm:$0xff]
    %v562 = vld [vmem:[#allocation7 + $0x70] sm:$0xff]
    %v563 = vld [vmem:[#allocation7 + $0x78] sm:$0xff]
    %v564 = vld [vmem:[#allocation7 + $0x80] sm:$0xff]
    %v565 = vld [vmem:[#allocation7 + $0x88] sm:$0xff]
    %v566 = vld [vmem:[#allocation7 + $0x90] sm:$0xff]
    %v567 = vld [vmem:[#allocation7 + $0x98] sm:$0xff]
    %v568 = vld [vmem:[#allocation7 + $0xa0] sm:$0xff]
    %v569 = vld [vmem:[#allocation7 + $0xa8] sm:$0xff]
    %v570 = vld [vmem:[#allocation7 + $0xb0] sm:$0xff]
    %v571 = vld [vmem:[#allocation7 + $0xb8] sm:$0xff]
    %v572 = vld [vmem:[#allocation7 + $0xc0] sm:$0xff]
    %v573 = vld [vmem:[#allocation7 + $0xc8] sm:$0xff]
    %v574 = vld [vmem:[#allocation7 + $0xd0] sm:$0xff]
    %v575 = vld [vmem:[#allocation7 + $0xd8] sm:$0xff]
    %v576 = vld [vmem:[#allocation7 + $0xe0] sm:$0xff]
    %v577 = vld [vmem:[#allocation7 + $0xe8] sm:$0xff]
    %v578 = vld [vmem:[#allocation7 + $0xf0] sm:$0xff]
    %v579 = vld [vmem:[#allocation7 + $0xf8] sm:$0xff]
    %v580 = vld [vmem:[#allocation7 + $0x100] sm:$0xff]
    %v581 = vld [vmem:[#allocation7 + $0x108] sm:$0xff]
    %v582 = vld [vmem:[#allocation7 + $0x110] sm:$0xff]
    %v583 = vld [vmem:[#allocation7 + $0x118] sm:$0xff]
    %v584 = vld [vmem:[#allocation7 + $0x120] sm:$0xff]
    %v585 = vld [vmem:[#allocation7 + $0x128] sm:$0xff]
    %v586 = vld [vmem:[#allocation7 + $0x130] sm:$0xff]
    %v587 = vld [vmem:[#allocation7 + $0x138] sm:$0xff]
    %v588 = vld [vmem:[#allocation7 + $0x140] sm:$0xff]
    %v589 = vld [vmem:[#allocation7 + $0x148] sm:$0xff]
    %v590 = vld [vmem:[#allocation7 + $0x150] sm:$0xff]
    %v591 = vld [vmem:[#allocation7 + $0x158] sm:$0xff]
    %v592 = vld [vmem:[#allocation7 + $0x160] sm:$0xff]
    %v593 = vld [vmem:[#allocation7 + $0x168] sm:$0xff]
    %v594 = vld [vmem:[#allocation7 + $0x170] sm:$0xff]
    %v595 = vld [vmem:[#allocation7 + $0x178] sm:$0xff]
    %v596 = vld [vmem:[#allocation7 + $0x180] sm:$0xff]
    %v597 = vld [vmem:[#allocation7 + $0x188] sm:$0xff]
    %v598 = vld [vmem:[#allocation7 + $0x190] sm:$0xff]
    %v599 = vld [vmem:[#allocation7 + $0x198] sm:$0xff]
    %v600 = vld [vmem:[#allocation7 + $0x1a0] sm:$0xff]
    %v601 = vld [vmem:[#allocation7 + $0x1a8] sm:$0xff]
    %v602 = vld [vmem:[#allocation7 + $0x1b0] sm:$0xff]
    %v603 = vld [vmem:[#allocation7 + $0x1b8] sm:$0xff]
    %v604 = vld [vmem:[#allocation7 + $0x1c0] sm:$0xff]
    %v605 = vld [vmem:[#allocation7 + $0x1c8] sm:$0xff]
    %v606 = vld [vmem:[#allocation7 + $0x1d0] sm:$0xff]
    %v607 = vld [vmem:[#allocation7 + $0x1d8] sm:$0xff]
    %v608 = vld [vmem:[#allocation7 + $0x1e0] sm:$0xff]
    %v609 = vld [vmem:[#allocation7 + $0x1e8] sm:$0xff]
    %v610 = vld [vmem:[#allocation7 + $0x1f0] sm:$0xff]
    %v611 = vld [vmem:[#allocation7 + $0x1f8] sm:$0xff]
    %612 = vmatprep.subr.mxu0 %v609
    %613 = vmatpush1.msra.mxu0 %v608
    %614 = vmatprep.subr.mxu0 %v605
    %615 = vmatpush1.msra.mxu0 %v604
    %616 = vmatprep.subr.mxu0 %v601
    %617 = vmatpush1.msra.mxu0 %v600
    %618 = vmatprep.subr.mxu0 %v597
    %619 = vmatpush1.msra.mxu0 %v596
    %620 = vmatprep.subr.mxu0 %v593
    %621 = vmatpush1.msra.mxu0 %v592
    %622 = vmatprep.subr.mxu0 %v589
    %623 = vmatpush1.msra.mxu0 %v588
    %624 = vmatprep.subr.mxu0 %v585
    %625 = vmatpush1.msra.mxu0 %v584
    %626 = vmatprep.subr.mxu0 %v581
    %627 = vmatpush1.msra.mxu0 %v580
    %628 = vmatprep.subr.mxu0 %v577
    %629 = vmatpush1.msra.mxu0 %v576
    %630 = vmatprep.subr.mxu0 %v573
    %631 = vmatpush1.msra.mxu0 %v572
    %632 = vmatprep.subr.mxu0 %v569
    %633 = vmatpush1.msra.mxu0 %v568
    %634 = vmatprep.subr.mxu0 %v565
    %635 = vmatpush1.msra.mxu0 %v564
    %636 = vmatprep.subr.mxu0 %v561
    %637 = vmatpush1.msra.mxu0 %v560
    %638 = vmatprep.subr.mxu0 %v557
    %639 = vmatpush1.msra.mxu0 %v556
    %640 = vmatprep.subr.mxu0 %v553
    %641 = vmatpush1.msra.mxu0 %v552
    %642 = vmatprep.subr.mxu0 %v549
    %643 = vmatpush1.msra.mxu0 %v548
    %644 = vmatprep.subr.mxu0 0.0
    %645 = vmatpush2.msra.mxu0 0.0
    %646 = vmatprep.subr.mxu0 0.0
    %647 = vmatpush2.msra.mxu0 0.0
    %648 = vmatprep.subr.mxu0 0.0
    %649 = vmatpush2.msra.mxu0 0.0
    %650 = vmatprep.subr.mxu0 0.0
    %651 = vmatpush2.msra.mxu0 0.0
    %652 = vmatprep.subr.mxu0 0.0
    %653 = vmatpush2.msra.mxu0 0.0
    %654 = vmatprep.subr.mxu0 0.0
    %655 = vmatpush2.msra.mxu0 0.0
    %656 = vmatprep.subr.mxu0 0.0
    %657 = vmatpush2.msra.mxu0 0.0
    %658 = vmatprep.subr.mxu0 0.0
    %659 = vmatpush2.msra.mxu0 0.0
    %660 = vmatprep.subr.mxu0 0.0
    %661 = vmatpush2.msra.mxu0 0.0
    %662 = vmatprep.subr.mxu0 0.0
    %663 = vmatpush2.msra.mxu0 0.0
    %664 = vmatprep.subr.mxu0 0.0
    %665 = vmatpush2.msra.mxu0 0.0
    %666 = vmatprep.subr.mxu0 0.0
    %667 = vmatpush2.msra.mxu0 0.0
    %668 = vmatprep.subr.mxu0 0.0
    %669 = vmatpush2.msra.mxu0 0.0
    %670 = vmatprep.subr.mxu0 0.0
    %671 = vmatpush2.msra.mxu0 0.0
    %672 = vmatprep.subr.mxu0 0.0
    %673 = vmatpush2.msra.mxu0 0.0
    %674 = vmatprep.subr.mxu0 0.0
    %675 = vmatpush2.msra.mxu0 0.0
    %676 = vmatprep.mubr.f32.mxu0 0.0
    %677 = vmatmul.mubr.f32.gmra.mxu0 %v540
    %v678 = vpop.f32.mrf.mxu0
    %v679 = vadd.f32 0.0, %v678
    %v680 = vpop.f32.mrf.mxu0
    %v681 = vadd.f32 0.0, %v680
    %682 = vdwg.mxu0
    %683 = vmatprep.subr.mxu0 %v611
    %684 = vmatpush1.msra.mxu0 %v610
    %685 = vmatprep.subr.mxu0 %v607
    %686 = vmatpush1.msra.mxu0 %v606
    %687 = vmatprep.subr.mxu0 %v603
    %688 = vmatpush1.msra.mxu0 %v602
    %689 = vmatprep.subr.mxu0 %v599
    %690 = vmatpush1.msra.mxu0 %v598
    %691 = vmatprep.subr.mxu0 %v595
    %692 = vmatpush1.msra.mxu0 %v594
    %693 = vmatprep.subr.mxu0 %v591
    %694 = vmatpush1.msra.mxu0 %v590
    %695 = vmatprep.subr.mxu0 %v587
    %696 = vmatpush1.msra.mxu0 %v586
    %697 = vmatprep.subr.mxu0 %v583
    %698 = vmatpush1.msra.mxu0 %v582
    %699 = vmatprep.subr.mxu0 %v579
    %700 = vmatpush1.msra.mxu0 %v578
    %701 = vmatprep.subr.mxu0 %v575
    %702 = vmatpush1.msra.mxu0 %v574
    %703 = vmatprep.subr.mxu0 %v571
    %704 = vmatpush1.msra.mxu0 %v570
    %705 = vmatprep.subr.mxu0 %v567
    %706 = vmatpush1.msra.mxu0 %v566
    %707 = vmatprep.subr.mxu0 %v563
    %708 = vmatpush1.msra.mxu0 %v562
    %709 = vmatprep.subr.mxu0 %v559
    %710 = vmatpush1.msra.mxu0 %v558
    %711 = vmatprep.subr.mxu0 %v555
    %712 = vmatpush1.msra.mxu0 %v554
    %713 = vmatprep.subr.mxu0 %v551
    %714 = vmatpush1.msra.mxu0 %v550
    %715 = vmatprep.subr.mxu0 0.0
    %716 = vmatpush2.msra.mxu0 0.0
    %717 = vmatprep.subr.mxu0 0.0
    %718 = vmatpush2.msra.mxu0 0.0
    %719 = vmatprep.subr.mxu0 0.0
    %720 = vmatpush2.msra.mxu0 0.0
    %721 = vmatprep.subr.mxu0 0.0
    %722 = vmatpush2.msra.mxu0 0.0
    %723 = vmatprep.subr.mxu0 0.0
    %724 = vmatpush2.msra.mxu0 0.0
    %725 = vmatprep.subr.mxu0 0.0
    %726 = vmatpush2.msra.mxu0 0.0
    %727 = vmatprep.subr.mxu0 0.0
    %728 = vmatpush2.msra.mxu0 0.0
    %729 = vmatprep.subr.mxu0 0.0
    %730 = vmatpush2.msra.mxu0 0.0
    %731 = vmatprep.subr.mxu0 0.0
    %732 = vmatpush2.msra.mxu0 0.0
    %733 = vmatprep.subr.mxu0 0.0
    %734 = vmatpush2.msra.mxu0 0.0
    %735 = vmatprep.subr.mxu0 0.0
    %736 = vmatpush2.msra.mxu0 0.0
    %737 = vmatprep.subr.mxu0 0.0
    %738 = vmatpush2.msra.mxu0 0.0
    %739 = vmatprep.subr.mxu0 0.0
    %740 = vmatpush2.msra.mxu0 0.0
    %741 = vmatprep.subr.mxu0 0.0
    %742 = vmatpush2.msra.mxu0 0.0
    %743 = vmatprep.subr.mxu0 0.0
    %744 = vmatpush2.msra.mxu0 0.0
    %745 = vmatprep.subr.mxu0 0.0
    %746 = vmatpush2.msra.mxu0 0.0
    %747 = vmatprep.mubr.f32.mxu0 0.0
    %748 = vmatmul.mubr.f32.gmra.mxu0 %v540
    %v749 = vpop.f32.mrf.mxu0
    %v750 = vadd.f32 0.0, %v749
    %v751 = vpop.f32.mrf.mxu0
    %v752 = vadd.f32 0.0, %v751
    %753 = vdwg.mxu0
    %v754 = vadd.f32 %v544, %v679
    %v755 = vadd.f32 %v545, %v681
    %v756 = vadd.f32 %v546, %v750
    %v757 = vadd.f32 %v547, %v752
    %v758 = vxor.u32 %v754, 2147483648
    %v759 = vmul.f32 %v758, 1.442695
    %v760 = vpow.pop %v759
    %v761 = vadd.f32 %v760, 1.0
    %v762 = vrcp.pop %v761
    %v763 = vmul.f32 1.0, %v762
    %v764 = vxor.u32 %v755, 2147483648
    %v765 = vmul.f32 %v764, 1.442695
    %v766 = vpow.pop %v765
    %v767 = vadd.f32 %v766, 1.0
    %v768 = vrcp.pop %v767
    %v769 = vmul.f32 1.0, %v768
    %v770 = vtanh.pop %v756
    %v771 = vxor.u32 %v757, 2147483648
    %v772 = vmul.f32 %v771, 1.442695
    %v773 = vpow.pop %v772
    %v774 = vadd.f32 %v773, 1.0
    %v775 = vrcp.pop %v774
    %v776 = vmul.f32 1.0, %v775
    %v777 = vmul.f32 %v769, %v538
    %v778 = vmul.f32 %v763, %v770
    %v779 = vadd.f32 %v777, %v778
    %v780 = vtanh.pop %v779
    %v781 = vmul.f32 %v776, %v780
    %s782 = scalar_lea.vmem [#allocation2], 16
    %783 = vst [vmem:[%s782] sm:$0xff] %v781
    %s784 = scalar_lea.vmem [#allocation4], 96
    %v785 = vld [vmem:[%s784] sm:$0xff]
    %v786 = vld [vmem:[%s784 + $0x8] sm:$0xff]
    %v787 = vld [vmem:[%s784 + $0x10] sm:$0xff]
    %v788 = vld [vmem:[%s784 + $0x18] sm:$0xff]
    %v789 = vld [vmem:[#allocation7] sm:$0xff]
    %v790 = vld [vmem:[#allocation7 + $0x8] sm:$0xff]
    %v791 = vld [vmem:[#allocation7 + $0x10] sm:$0xff]
    %v792 = vld [vmem:[#allocation7 + $0x18] sm:$0xff]
    %v793 = vld [vmem:[#allocation7 + $0x20] sm:$0xff]
    %v794 = vld [vmem:[#allocation7 + $0x28] sm:$0xff]
    %v795 = vld [vmem:[#allocation7 + $0x30] sm:$0xff]
    %v796 = vld [vmem:[#allocation7 + $0x38] sm:$0xff]
    %v797 = vld [vmem:[#allocation7 + $0x40] sm:$0xff]
    %v798 = vld [vmem:[#allocation7 + $0x48] sm:$0xff]
    %v799 = vld [vmem:[#allocation7 + $0x50] sm:$0xff]
    %v800 = vld [vmem:[#allocation7 + $0x58] sm:$0xff]
    %v801 = vld [vmem:[#allocation7 + $0x60] sm:$0xff]
    %v802 = vld [vmem:[#allocation7 + $0x68] sm:$0xff]
    %v803 = vld [vmem:[#allocation7 + $0x70] sm:$0xff]
    %v804 = vld [vmem:[#allocation7 + $0x78] sm:$0xff]
    %v805 = vld [vmem:[#allocation7 + $0x80] sm:$0xff]
    %v806 = vld [vmem:[#allocation7 + $0x88] sm:$0xff]
    %v807 = vld [vmem:[#allocation7 + $0x90] sm:$0xff]
    %v808 = vld [vmem:[#allocation7 + $0x98] sm:$0xff]
    %v809 = vld [vmem:[#allocation7 + $0xa0] sm:$0xff]
    %v810 = vld [vmem:[#allocation7 + $0xa8] sm:$0xff]
    %v811 = vld [vmem:[#allocation7 + $0xb0] sm:$0xff]
    %v812 = vld [vmem:[#allocation7 + $0xb8] sm:$0xff]
    %v813 = vld [vmem:[#allocation7 + $0xc0] sm:$0xff]
    %v814 = vld [vmem:[#allocation7 + $0xc8] sm:$0xff]
    %v815 = vld [vmem:[#allocation7 + $0xd0] sm:$0xff]
    %v816 = vld [vmem:[#allocation7 + $0xd8] sm:$0xff]
    %v817 = vld [vmem:[#allocation7 + $0xe0] sm:$0xff]
    %v818 = vld [vmem:[#allocation7 + $0xe8] sm:$0xff]
    %v819 = vld [vmem:[#allocation7 + $0xf0] sm:$0xff]
    %v820 = vld [vmem:[#allocation7 + $0xf8] sm:$0xff]
    %v821 = vld [vmem:[#allocation7 + $0x100] sm:$0xff]
    %v822 = vld [vmem:[#allocation7 + $0x108] sm:$0xff]
    %v823 = vld [vmem:[#allocation7 + $0x110] sm:$0xff]
    %v824 = vld [vmem:[#allocation7 + $0x118] sm:$0xff]
    %v825 = vld [vmem:[#allocation7 + $0x120] sm:$0xff]
    %v826 = vld [vmem:[#allocation7 + $0x128] sm:$0xff]
    %v827 = vld [vmem:[#allocation7 + $0x130] sm:$0xff]
    %v828 = vld [vmem:[#allocation7 + $0x138] sm:$0xff]
    %v829 = vld [vmem:[#allocation7 + $0x140] sm:$0xff]
    %v830 = vld [vmem:[#allocation7 + $0x148] sm:$0xff]
    %v831 = vld [vmem:[#allocation7 + $0x150] sm:$0xff]
    %v832 = vld [vmem:[#allocation7 + $0x158] sm:$0xff]
    %v833 = vld [vmem:[#allocation7 + $0x160] sm:$0xff]
    %v834 = vld [vmem:[#allocation7 + $0x168] sm:$0xff]
    %v835 = vld [vmem:[#allocation7 + $0x170] sm:$0xff]
    %v836 = vld [vmem:[#allocation7 + $0x178] sm:$0xff]
    %v837 = vld [vmem:[#allocation7 + $0x180] sm:$0xff]
    %v838 = vld [vmem:[#allocation7 + $0x188] sm:$0xff]
    %v839 = vld [vmem:[#allocation7 + $0x190] sm:$0xff]
    %v840 = vld [vmem:[#allocation7 + $0x198] sm:$0xff]
    %v841 = vld [vmem:[#allocation7 + $0x1a0] sm:$0xff]
    %v842 = vld [vmem:[#allocation7 + $0x1a8] sm:$0xff]
    %v843 = vld [vmem:[#allocation7 + $0x1b0] sm:$0xff]
    %v844 = vld [vmem:[#allocation7 + $0x1b8] sm:$0xff]
    %v845 = vld [vmem:[#allocation7 + $0x1c0] sm:$0xff]
    %v846 = vld [vmem:[#allocation7 + $0x1c8] sm:$0xff]
    %v847 = vld [vmem:[#allocation7 + $0x1d0] sm:$0xff]
    %v848 = vld [vmem:[#allocation7 + $0x1d8] sm:$0xff]
    %v849 = vld [vmem:[#allocation7 + $0x1e0] sm:$0xff]
    %v850 = vld [vmem:[#allocation7 + $0x1e8] sm:$0xff]
    %v851 = vld [vmem:[#allocation7 + $0x1f0] sm:$0xff]
    %v852 = vld [vmem:[#allocation7 + $0x1f8] sm:$0xff]
    %853 = vmatprep.subr.mxu0 %v850
    %854 = vmatpush1.msra.mxu0 %v849
    %855 = vmatprep.subr.mxu0 %v846
    %856 = vmatpush1.msra.mxu0 %v845
    %857 = vmatprep.subr.mxu0 %v842
    %858 = vmatpush1.msra.mxu0 %v841
    %859 = vmatprep.subr.mxu0 %v838
    %860 = vmatpush1.msra.mxu0 %v837
    %861 = vmatprep.subr.mxu0 %v834
    %862 = vmatpush1.msra.mxu0 %v833
    %863 = vmatprep.subr.mxu0 %v830
    %864 = vmatpush1.msra.mxu0 %v829
    %865 = vmatprep.subr.mxu0 %v826
    %866 = vmatpush1.msra.mxu0 %v825
    %867 = vmatprep.subr.mxu0 %v822
    %868 = vmatpush1.msra.mxu0 %v821
    %869 = vmatprep.subr.mxu0 %v818
    %870 = vmatpush1.msra.mxu0 %v817
    %871 = vmatprep.subr.mxu0 %v814
    %872 = vmatpush1.msra.mxu0 %v813
    %873 = vmatprep.subr.mxu0 %v810
    %874 = vmatpush1.msra.mxu0 %v809
    %875 = vmatprep.subr.mxu0 %v806
    %876 = vmatpush1.msra.mxu0 %v805
    %877 = vmatprep.subr.mxu0 %v802
    %878 = vmatpush1.msra.mxu0 %v801
    %879 = vmatprep.subr.mxu0 %v798
    %880 = vmatpush1.msra.mxu0 %v797
    %881 = vmatprep.subr.mxu0 %v794
    %882 = vmatpush1.msra.mxu0 %v793
    %883 = vmatprep.subr.mxu0 %v790
    %884 = vmatpush1.msra.mxu0 %v789
    %885 = vmatprep.subr.mxu0 0.0
    %886 = vmatpush2.msra.mxu0 0.0
    %887 = vmatprep.subr.mxu0 0.0
    %888 = vmatpush2.msra.mxu0 0.0
    %889 = vmatprep.subr.mxu0 0.0
    %890 = vmatpush2.msra.mxu0 0.0
    %891 = vmatprep.subr.mxu0 0.0
    %892 = vmatpush2.msra.mxu0 0.0
    %893 = vmatprep.subr.mxu0 0.0
    %894 = vmatpush2.msra.mxu0 0.0
    %895 = vmatprep.subr.mxu0 0.0
    %896 = vmatpush2.msra.mxu0 0.0
    %897 = vmatprep.subr.mxu0 0.0
    %898 = vmatpush2.msra.mxu0 0.0
    %899 = vmatprep.subr.mxu0 0.0
    %900 = vmatpush2.msra.mxu0 0.0
    %901 = vmatprep.subr.mxu0 0.0
    %902 = vmatpush2.msra.mxu0 0.0
    %903 = vmatprep.subr.mxu0 0.0
    %904 = vmatpush2.msra.mxu0 0.0
    %905 = vmatprep.subr.mxu0 0.0
    %906 = vmatpush2.msra.mxu0 0.0
    %907 = vmatprep.subr.mxu0 0.0
    %908 = vmatpush2.msra.mxu0 0.0
    %909 = vmatprep.subr.mxu0 0.0
    %910 = vmatpush2.msra.mxu0 0.0
    %911 = vmatprep.subr.mxu0 0.0
    %912 = vmatpush2.msra.mxu0 0.0
    %913 = vmatprep.subr.mxu0 0.0
    %914 = vmatpush2.msra.mxu0 0.0
    %915 = vmatprep.subr.mxu0 0.0
    %916 = vmatpush2.msra.mxu0 0.0
    %917 = vmatprep.mubr.f32.mxu0 0.0
    %918 = vmatmul.mubr.f32.gmra.mxu0 %v781
    %v919 = vpop.f32.mrf.mxu0
    %v920 = vadd.f32 0.0, %v919
    %v921 = vpop.f32.mrf.mxu0
    %v922 = vadd.f32 0.0, %v921
    %923 = vdwg.mxu0
    %924 = vmatprep.subr.mxu0 %v852
    %925 = vmatpush1.msra.mxu0 %v851
    %926 = vmatprep.subr.mxu0 %v848
    %927 = vmatpush1.msra.mxu0 %v847
    %928 = vmatprep.subr.mxu0 %v844
    %929 = vmatpush1.msra.mxu0 %v843
    %930 = vmatprep.subr.mxu0 %v840
    %931 = vmatpush1.msra.mxu0 %v839
    %932 = vmatprep.subr.mxu0 %v836
    %933 = vmatpush1.msra.mxu0 %v835
    %934 = vmatprep.subr.mxu0 %v832
    %935 = vmatpush1.msra.mxu0 %v831
    %936 = vmatprep.subr.mxu0 %v828
    %937 = vmatpush1.msra.mxu0 %v827
    %938 = vmatprep.subr.mxu0 %v824
    %939 = vmatpush1.msra.mxu0 %v823
    %940 = vmatprep.subr.mxu0 %v820
    %941 = vmatpush1.msra.mxu0 %v819
    %942 = vmatprep.subr.mxu0 %v816
    %943 = vmatpush1.msra.mxu0 %v815
    %944 = vmatprep.subr.mxu0 %v812
    %945 = vmatpush1.msra.mxu0 %v811
    %946 = vmatprep.subr.mxu0 %v808
    %947 = vmatpush1.msra.mxu0 %v807
    %948 = vmatprep.subr.mxu0 %v804
    %949 = vmatpush1.msra.mxu0 %v803
    %950 = vmatprep.subr.mxu0 %v800
    %951 = vmatpush1.msra.mxu0 %v799
    %952 = vmatprep.subr.mxu0 %v796
    %953 = vmatpush1.msra.mxu0 %v795
    %954 = vmatprep.subr.mxu0 %v792
    %955 = vmatpush1.msra.mxu0 %v791
    %956 = vmatprep.subr.mxu0 0.0
    %957 = vmatpush2.msra.mxu0 0.0
    %958 = vmatprep.subr.mxu0 0.0
    %959 = vmatpush2.msra.mxu0 0.0
    %960 = vmatprep.subr.mxu0 0.0
    %961 = vmatpush2.msra.mxu0 0.0
    %962 = vmatprep.subr.mxu0 0.0
    %963 = vmatpush2.msra.mxu0 0.0
    %964 = vmatprep.subr.mxu0 0.0
    %965 = vmatpush2.msra.mxu0 0.0
    %966 = vmatprep.subr.mxu0 0.0
    %967 = vmatpush2.msra.mxu0 0.0
    %968 = vmatprep.subr.mxu0 0.0
    %969 = vmatpush2.msra.mxu0 0.0
    %970 = vmatprep.subr.mxu0 0.0
    %971 = vmatpush2.msra.mxu0 0.0
    %972 = vmatprep.subr.mxu0 0.0
    %973 = vmatpush2.msra.mxu0 0.0
    %974 = vmatprep.subr.mxu0 0.0
    %975 = vmatpush2.msra.mxu0 0.0
    %976 = vmatprep.subr.mxu0 0.0
    %977 = vmatpush2.msra.mxu0 0.0
    %978 = vmatprep.subr.mxu0 0.0
    %979 = vmatpush2.msra.mxu0 0.0
    %980 = vmatprep.subr.mxu0 0.0
    %981 = vmatpush2.msra.mxu0 0.0
    %982 = vmatprep.subr.mxu0 0.0
    %983 = vmatpush2.msra.mxu0 0.0
    %984 = vmatprep.subr.mxu0 0.0
    %985 = vmatpush2.msra.mxu0 0.0
    %986 = vmatprep.subr.mxu0 0.0
    %987 = vmatpush2.msra.mxu0 0.0
    %988 = vmatprep.mubr.f32.mxu0 0.0
    %989 = vmatmul.mubr.f32.gmra.mxu0 %v781
    %v990 = vpop.f32.mrf.mxu0
    %v991 = vadd.f32 0.0, %v990
    %v992 = vpop.f32.mrf.mxu0
    %v993 = vadd.f32 0.0, %v992
    %994 = vdwg.mxu0
    %v995 = vadd.f32 %v785, %v920
    %v996 = vadd.f32 %v786, %v922
    %v997 = vadd.f32 %v787, %v991
    %v998 = vadd.f32 %v788, %v993
    %v999 = vxor.u32 %v995, 2147483648
    %v1000 = vmul.f32 %v999, 1.442695
    %v1001 = vpow.pop %v1000
    %v1002 = vadd.f32 %v1001, 1.0
    %v1003 = vrcp.pop %v1002
    %v1004 = vmul.f32 1.0, %v1003
    %v1005 = vxor.u32 %v996, 2147483648
    %v1006 = vmul.f32 %v1005, 1.442695
    %v1007 = vpow.pop %v1006
    %v1008 = vadd.f32 %v1007, 1.0
    %v1009 = vrcp.pop %v1008
    %v1010 = vmul.f32 1.0, %v1009
    %v1011 = vtanh.pop %v997
    %v1012 = vxor.u32 %v998, 2147483648
    %v1013 = vmul.f32 %v1012, 1.442695
    %v1014 = vpow.pop %v1013
    %v1015 = vadd.f32 %v1014, 1.0
    %v1016 = vrcp.pop %v1015
    %v1017 = vmul.f32 1.0, %v1016
    %v1018 = vmul.f32 %v1010, %v779
    %v1019 = vmul.f32 %v1004, %v1011
    %v1020 = vadd.f32 %v1018, %v1019
    %v1021 = vtanh.pop %v1020
    %v1022 = vmul.f32 %v1017, %v1021
    %s1023 = scalar_lea.vmem [#allocation2], 24
    %1024 = vst [vmem:[%s1023] sm:$0xff] %v1022
    %s1025 = scalar_lea.vmem [#allocation4], 128
    %v1026 = vld [vmem:[%s1025] sm:$0xff]
    %v1027 = vld [vmem:[%s1025 + $0x8] sm:$0xff]
    %v1028 = vld [vmem:[%s1025 + $0x10] sm:$0xff]
    %v1029 = vld [vmem:[%s1025 + $0x18] sm:$0xff]
    %v1030 = vld [vmem:[#allocation7] sm:$0xff]
    %v1031 = vld [vmem:[#allocation7 + $0x8] sm:$0xff]
    %v1032 = vld [vmem:[#allocation7 + $0x10] sm:$0xff]
    %v1033 = vld [vmem:[#allocation7 + $0x18] sm:$0xff]
    %v1034 = vld [vmem:[#allocation7 + $0x20] sm:$0xff]
    %v1035 = vld [vmem:[#allocation7 + $0x28] sm:$0xff]
    %v1036 = vld [vmem:[#allocation7 + $0x30] sm:$0xff]
    %v1037 = vld [vmem:[#allocation7 + $0x38] sm:$0xff]
    %v1038 = vld [vmem:[#allocation7 + $0x40] sm:$0xff]
    %v1039 = vld [vmem:[#allocation7 + $0x48] sm:$0xff]
    %v1040 = vld [vmem:[#allocation7 + $0x50] sm:$0xff]
    %v1041 = vld [vmem:[#allocation7 + $0x58] sm:$0xff]
    %v1042 = vld [vmem:[#allocation7 + $0x60] sm:$0xff]
    %v1043 = vld [vmem:[#allocation7 + $0x68] sm:$0xff]
    %v1044 = vld [vmem:[#allocation7 + $0x70] sm:$0xff]
    %v1045 = vld [vmem:[#allocation7 + $0x78] sm:$0xff]
    %v1046 = vld [vmem:[#allocation7 + $0x80] sm:$0xff]
    %v1047 = vld [vmem:[#allocation7 + $0x88] sm:$0xff]
    %v1048 = vld [vmem:[#allocation7 + $0x90] sm:$0xff]
    %v1049 = vld [vmem:[#allocation7 + $0x98] sm:$0xff]
    %v1050 = vld [vmem:[#allocation7 + $0xa0] sm:$0xff]
    %v1051 = vld [vmem:[#allocation7 + $0xa8] sm:$0xff]
    %v1052 = vld [vmem:[#allocation7 + $0xb0] sm:$0xff]
    %v1053 = vld [vmem:[#allocation7 + $0xb8] sm:$0xff]
    %v1054 = vld [vmem:[#allocation7 + $0xc0] sm:$0xff]
    %v1055 = vld [vmem:[#allocation7 + $0xc8] sm:$0xff]
    %v1056 = vld [vmem:[#allocation7 + $0xd0] sm:$0xff]
    %v1057 = vld [vmem:[#allocation7 + $0xd8] sm:$0xff]
    %v1058 = vld [vmem:[#allocation7 + $0xe0] sm:$0xff]
    %v1059 = vld [vmem:[#allocation7 + $0xe8] sm:$0xff]
    %v1060 = vld [vmem:[#allocation7 + $0xf0] sm:$0xff]
    %v1061 = vld [vmem:[#allocation7 + $0xf8] sm:$0xff]
    %v1062 = vld [vmem:[#allocation7 + $0x100] sm:$0xff]
    %v1063 = vld [vmem:[#allocation7 + $0x108] sm:$0xff]
    %v1064 = vld [vmem:[#allocation7 + $0x110] sm:$0xff]
    %v1065 = vld [vmem:[#allocation7 + $0x118] sm:$0xff]
    %v1066 = vld [vmem:[#allocation7 + $0x120] sm:$0xff]
    %v1067 = vld [vmem:[#allocation7 + $0x128] sm:$0xff]
    %v1068 = vld [vmem:[#allocation7 + $0x130] sm:$0xff]
    %v1069 = vld [vmem:[#allocation7 + $0x138] sm:$0xff]
    %v1070 = vld [vmem:[#allocation7 + $0x140] sm:$0xff]
    %v1071 = vld [vmem:[#allocation7 + $0x148] sm:$0xff]
    %v1072 = vld [vmem:[#allocation7 + $0x150] sm:$0xff]
    %v1073 = vld [vmem:[#allocation7 + $0x158] sm:$0xff]
    %v1074 = vld [vmem:[#allocation7 + $0x160] sm:$0xff]
    %v1075 = vld [vmem:[#allocation7 + $0x168] sm:$0xff]
    %v1076 = vld [vmem:[#allocation7 + $0x170] sm:$0xff]
    %v1077 = vld [vmem:[#allocation7 + $0x178] sm:$0xff]
    %v1078 = vld [vmem:[#allocation7 + $0x180] sm:$0xff]
    %v1079 = vld [vmem:[#allocation7 + $0x188] sm:$0xff]
    %v1080 = vld [vmem:[#allocation7 + $0x190] sm:$0xff]
    %v1081 = vld [vmem:[#allocation7 + $0x198] sm:$0xff]
    %v1082 = vld [vmem:[#allocation7 + $0x1a0] sm:$0xff]
    %v1083 = vld [vmem:[#allocation7 + $0x1a8] sm:$0xff]
    %v1084 = vld [vmem:[#allocation7 + $0x1b0] sm:$0xff]
    %v1085 = vld [vmem:[#allocation7 + $0x1b8] sm:$0xff]
    %v1086 = vld [vmem:[#allocation7 + $0x1c0] sm:$0xff]
    %v1087 = vld [vmem:[#allocation7 + $0x1c8] sm:$0xff]
    %v1088 = vld [vmem:[#allocation7 + $0x1d0] sm:$0xff]
    %v1089 = vld [vmem:[#allocation7 + $0x1d8] sm:$0xff]
    %v1090 = vld [vmem:[#allocation7 + $0x1e0] sm:$0xff]
    %v1091 = vld [vmem:[#allocation7 + $0x1e8] sm:$0xff]
    %v1092 = vld [vmem:[#allocation7 + $0x1f0] sm:$0xff]
    %v1093 = vld [vmem:[#allocation7 + $0x1f8] sm:$0xff]
    %1094 = vmatprep.subr.mxu0 %v1091
    %1095 = vmatpush1.msra.mxu0 %v1090
    %1096 = vmatprep.subr.mxu0 %v1087
    %1097 = vmatpush1.msra.mxu0 %v1086
    %1098 = vmatprep.subr.mxu0 %v1083
    %1099 = vmatpush1.msra.mxu0 %v1082
    %1100 = vmatprep.subr.mxu0 %v1079
    %1101 = vmatpush1.msra.mxu0 %v1078
    %1102 = vmatprep.subr.mxu0 %v1075
    %1103 = vmatpush1.msra.mxu0 %v1074
    %1104 = vmatprep.subr.mxu0 %v1071
    %1105 = vmatpush1.msra.mxu0 %v1070
    %1106 = vmatprep.subr.mxu0 %v1067
    %1107 = vmatpush1.msra.mxu0 %v1066
    %1108 = vmatprep.subr.mxu0 %v1063
    %1109 = vmatpush1.msra.mxu0 %v1062
    %1110 = vmatprep.subr.mxu0 %v1059
    %1111 = vmatpush1.msra.mxu0 %v1058
    %1112 = vmatprep.subr.mxu0 %v1055
    %1113 = vmatpush1.msra.mxu0 %v1054
    %1114 = vmatprep.subr.mxu0 %v1051
    %1115 = vmatpush1.msra.mxu0 %v1050
    %1116 = vmatprep.subr.mxu0 %v1047
    %1117 = vmatpush1.msra.mxu0 %v1046
    %1118 = vmatprep.subr.mxu0 %v1043
    %1119 = vmatpush1.msra.mxu0 %v1042
    %1120 = vmatprep.subr.mxu0 %v1039
    %1121 = vmatpush1.msra.mxu0 %v1038
    %1122 = vmatprep.subr.mxu0 %v1035
    %1123 = vmatpush1.msra.mxu0 %v1034
    %1124 = vmatprep.subr.mxu0 %v1031
    %1125 = vmatpush1.msra.mxu0 %v1030
    %1126 = vmatprep.subr.mxu0 0.0
    %1127 = vmatpush2.msra.mxu0 0.0
    %1128 = vmatprep.subr.mxu0 0.0
    %1129 = vmatpush2.msra.mxu0 0.0
    %1130 = vmatprep.subr.mxu0 0.0
    %1131 = vmatpush2.msra.mxu0 0.0
    %1132 = vmatprep.subr.mxu0 0.0
    %1133 = vmatpush2.msra.mxu0 0.0
    %1134 = vmatprep.subr.mxu0 0.0
    %1135 = vmatpush2.msra.mxu0 0.0
    %1136 = vmatprep.subr.mxu0 0.0
    %1137 = vmatpush2.msra.mxu0 0.0
    %1138 = vmatprep.subr.mxu0 0.0
    %1139 = vmatpush2.msra.mxu0 0.0
    %1140 = vmatprep.subr.mxu0 0.0
    %1141 = vmatpush2.msra.mxu0 0.0
    %1142 = vmatprep.subr.mxu0 0.0
    %1143 = vmatpush2.msra.mxu0 0.0
    %1144 = vmatprep.subr.mxu0 0.0
    %1145 = vmatpush2.msra.mxu0 0.0
    %1146 = vmatprep.subr.mxu0 0.0
    %1147 = vmatpush2.msra.mxu0 0.0
    %1148 = vmatprep.subr.mxu0 0.0
    %1149 = vmatpush2.msra.mxu0 0.0
    %1150 = vmatprep.subr.mxu0 0.0
    %1151 = vmatpush2.msra.mxu0 0.0
    %1152 = vmatprep.subr.mxu0 0.0
    %1153 = vmatpush2.msra.mxu0 0.0
    %1154 = vmatprep.subr.mxu0 0.0
    %1155 = vmatpush2.msra.mxu0 0.0
    %1156 = vmatprep.subr.mxu0 0.0
    %1157 = vmatpush2.msra.mxu0 0.0
    %1158 = vmatprep.mubr.f32.mxu0 0.0
    %1159 = vmatmul.mubr.f32.gmra.mxu0 %v1022
    %v1160 = vpop.f32.mrf.mxu0
    %v1161 = vadd.f32 0.0, %v1160
    %v1162 = vpop.f32.mrf.mxu0
    %v1163 = vadd.f32 0.0, %v1162
    %1164 = vdwg.mxu0
    %1165 = vmatprep.subr.mxu0 %v1093
    %1166 = vmatpush1.msra.mxu0 %v1092
    %1167 = vmatprep.subr.mxu0 %v1089
    %1168 = vmatpush1.msra.mxu0 %v1088
    %1169 = vmatprep.subr.mxu0 %v1085
    %1170 = vmatpush1.msra.mxu0 %v1084
    %1171 = vmatprep.subr.mxu0 %v1081
    %1172 = vmatpush1.msra.mxu0 %v1080
    %1173 = vmatprep.subr.mxu0 %v1077
    %1174 = vmatpush1.msra.mxu0 %v1076
    %1175 = vmatprep.subr.mxu0 %v1073
    %1176 = vmatpush1.msra.mxu0 %v1072
    %1177 = vmatprep.subr.mxu0 %v1069
    %1178 = vmatpush1.msra.mxu0 %v1068
    %1179 = vmatprep.subr.mxu0 %v1065
    %1180 = vmatpush1.msra.mxu0 %v1064
    %1181 = vmatprep.subr.mxu0 %v1061
    %1182 = vmatpush1.msra.mxu0 %v1060
    %1183 = vmatprep.subr.mxu0 %v1057
    %1184 = vmatpush1.msra.mxu0 %v1056
    %1185 = vmatprep.subr.mxu0 %v1053
    %1186 = vmatpush1.msra.mxu0 %v1052
    %1187 = vmatprep.subr.mxu0 %v1049
    %1188 = vmatpush1.msra.mxu0 %v1048
    %1189 = vmatprep.subr.mxu0 %v1045
    %1190 = vmatpush1.msra.mxu0 %v1044
    %1191 = vmatprep.subr.mxu0 %v1041
    %1192 = vmatpush1.msra.mxu0 %v1040
    %1193 = vmatprep.subr.mxu0 %v1037
    %1194 = vmatpush1.msra.mxu0 %v1036
    %1195 = vmatprep.subr.mxu0 %v1033
    %1196 = vmatpush1.msra.mxu0 %v1032
    %1197 = vmatprep.subr.mxu0 0.0
    %1198 = vmatpush2.msra.mxu0 0.0
    %1199 = vmatprep.subr.mxu0 0.0
    %1200 = vmatpush2.msra.mxu0 0.0
    %1201 = vmatprep.subr.mxu0 0.0
    %1202 = vmatpush2.msra.mxu0 0.0
    %1203 = vmatprep.subr.mxu0 0.0
    %1204 = vmatpush2.msra.mxu0 0.0
    %1205 = vmatprep.subr.mxu0 0.0
    %1206 = vmatpush2.msra.mxu0 0.0
    %1207 = vmatprep.subr.mxu0 0.0
    %1208 = vmatpush2.msra.mxu0 0.0
    %1209 = vmatprep.subr.mxu0 0.0
    %1210 = vmatpush2.msra.mxu0 0.0
    %1211 = vmatprep.subr.mxu0 0.0
    %1212 = vmatpush2.msra.mxu0 0.0
    %1213 = vmatprep.subr.mxu0 0.0
    %1214 = vmatpush2.msra.mxu0 0.0
    %1215 = vmatprep.subr.mxu0 0.0
    %1216 = vmatpush2.msra.mxu0 0.0
    %1217 = vmatprep.subr.mxu0 0.0
    %1218 = vmatpush2.msra.mxu0 0.0
    %1219 = vmatprep.subr.mxu0 0.0
    %1220 = vmatpush2.msra.mxu0 0.0
    %1221 = vmatprep.subr.mxu0 0.0
    %1222 = vmatpush2.msra.mxu0 0.0
    %1223 = vmatprep.subr.mxu0 0.0
    %1224 = vmatpush2.msra.mxu0 0.0
    %1225 = vmatprep.subr.mxu0 0.0
    %1226 = vmatpush2.msra.mxu0 0.0
    %1227 = vmatprep.subr.mxu0 0.0
    %1228 = vmatpush2.msra.mxu0 0.0
    %1229 = vmatprep.mubr.f32.mxu0 0.0
    %1230 = vmatmul.mubr.f32.gmra.mxu0 %v1022
    %v1231 = vpop.f32.mrf.mxu0
    %v1232 = vadd.f32 0.0, %v1231
    %v1233 = vpop.f32.mrf.mxu0
    %v1234 = vadd.f32 0.0, %v1233
    %1235 = vdwg.mxu0
    %v1236 = vadd.f32 %v1026, %v1161
    %v1237 = vadd.f32 %v1027, %v1163
    %v1238 = vadd.f32 %v1028, %v1232
    %v1239 = vadd.f32 %v1029, %v1234
    %v1240 = vxor.u32 %v1236, 2147483648
    %v1241 = vmul.f32 %v1240, 1.442695
    %v1242 = vpow.pop %v1241
    %v1243 = vadd.f32 %v1242, 1.0
    %v1244 = vrcp.pop %v1243
    %v1245 = vmul.f32 1.0, %v1244
    %v1246 = vxor.u32 %v1237, 2147483648
    %v1247 = vmul.f32 %v1246, 1.442695
    %v1248 = vpow.pop %v1247
    %v1249 = vadd.f32 %v1248, 1.0
    %v1250 = vrcp.pop %v1249
    %v1251 = vmul.f32 1.0, %v1250
    %v1252 = vtanh.pop %v1238
    %v1253 = vxor.u32 %v1239, 2147483648
    %v1254 = vmul.f32 %v1253, 1.442695
    %v1255 = vpow.pop %v1254
    %v1256 = vadd.f32 %v1255, 1.0
    %v1257 = vrcp.pop %v1256
    %v1258 = vmul.f32 1.0, %v1257
    %v1259 = vmul.f32 %v1251, %v1020
    %v1260 = vmul.f32 %v1245, %v1252
    %v1261 = vadd.f32 %v1259, %v1260
    %v1262 = vtanh.pop %v1261
    %v1263 = vmul.f32 %v1258, %v1262
    %s1264 = scalar_lea.vmem [#allocation2], 32
    %1265 = vst [vmem:[%s1264] sm:$0xff] %v1263
    %s1266 = scalar_lea.vmem [#allocation4], 160
    %v1267 = vld [vmem:[%s1266] sm:$0xff]
    %v1268 = vld [vmem:[%s1266 + $0x8] sm:$0xff]
    %v1269 = vld [vmem:[%s1266 + $0x10] sm:$0xff]
    %v1270 = vld [vmem:[%s1266 + $0x18] sm:$0xff]
    %v1271 = vld [vmem:[#allocation7] sm:$0xff]
    %v1272 = vld [vmem:[#allocation7 + $0x8] sm:$0xff]
    %v1273 = vld [vmem:[#allocation7 + $0x10] sm:$0xff]
    %v1274 = vld [vmem:[#allocation7 + $0x18] sm:$0xff]
    %v1275 = vld [vmem:[#allocation7 + $0x20] sm:$0xff]
    %v1276 = vld [vmem:[#allocation7 + $0x28] sm:$0xff]
    %v1277 = vld [vmem:[#allocation7 + $0x30] sm:$0xff]
    %v1278 = vld [vmem:[#allocation7 + $0x38] sm:$0xff]
    %v1279 = vld [vmem:[#allocation7 + $0x40] sm:$0xff]
    %v1280 = vld [vmem:[#allocation7 + $0x48] sm:$0xff]
    %v1281 = vld [vmem:[#allocation7 + $0x50] sm:$0xff]
    %v1282 = vld [vmem:[#allocation7 + $0x58] sm:$0xff]
    %v1283 = vld [vmem:[#allocation7 + $0x60] sm:$0xff]
    %v1284 = vld [vmem:[#allocation7 + $0x68] sm:$0xff]
    %v1285 = vld [vmem:[#allocation7 + $0x70] sm:$0xff]
    %v1286 = vld [vmem:[#allocation7 + $0x78] sm:$0xff]
    %v1287 = vld [vmem:[#allocation7 + $0x80] sm:$0xff]
    %v1288 = vld [vmem:[#allocation7 + $0x88] sm:$0xff]
    %v1289 = vld [vmem:[#allocation7 + $0x90] sm:$0xff]
    %v1290 = vld [vmem:[#allocation7 + $0x98] sm:$0xff]
    %v1291 = vld [vmem:[#allocation7 + $0xa0] sm:$0xff]
    %v1292 = vld [vmem:[#allocation7 + $0xa8] sm:$0xff]
    %v1293 = vld [vmem:[#allocation7 + $0xb0] sm:$0xff]
    %v1294 = vld [vmem:[#allocation7 + $0xb8] sm:$0xff]
    %v1295 = vld [vmem:[#allocation7 + $0xc0] sm:$0xff]
    %v1296 = vld [vmem:[#allocation7 + $0xc8] sm:$0xff]
    %v1297 = vld [vmem:[#allocation7 + $0xd0] sm:$0xff]
    %v1298 = vld [vmem:[#allocation7 + $0xd8] sm:$0xff]
    %v1299 = vld [vmem:[#allocation7 + $0xe0] sm:$0xff]
    %v1300 = vld [vmem:[#allocation7 + $0xe8] sm:$0xff]
    %v1301 = vld [vmem:[#allocation7 + $0xf0] sm:$0xff]
    %v1302 = vld [vmem:[#allocation7 + $0xf8] sm:$0xff]
    %v1303 = vld [vmem:[#allocation7 + $0x100] sm:$0xff]
    %v1304 = vld [vmem:[#allocation7 + $0x108] sm:$0xff]
    %v1305 = vld [vmem:[#allocation7 + $0x110] sm:$0xff]
    %v1306 = vld [vmem:[#allocation7 + $0x118] sm:$0xff]
    %v1307 = vld [vmem:[#allocation7 + $0x120] sm:$0xff]
    %v1308 = vld [vmem:[#allocation7 + $0x128] sm:$0xff]
    %v1309 = vld [vmem:[#allocation7 + $0x130] sm:$0xff]
    %v1310 = vld [vmem:[#allocation7 + $0x138] sm:$0xff]
    %v1311 = vld [vmem:[#allocation7 + $0x140] sm:$0xff]
    %v1312 = vld [vmem:[#allocation7 + $0x148] sm:$0xff]
    %v1313 = vld [vmem:[#allocation7 + $0x150] sm:$0xff]
    %v1314 = vld [vmem:[#allocation7 + $0x158] sm:$0xff]
    %v1315 = vld [vmem:[#allocation7 + $0x160] sm:$0xff]
    %v1316 = vld [vmem:[#allocation7 + $0x168] sm:$0xff]
    %v1317 = vld [vmem:[#allocation7 + $0x170] sm:$0xff]
    %v1318 = vld [vmem:[#allocation7 + $0x178] sm:$0xff]
    %v1319 = vld [vmem:[#allocation7 + $0x180] sm:$0xff]
    %v1320 = vld [vmem:[#allocation7 + $0x188] sm:$0xff]
    %v1321 = vld [vmem:[#allocation7 + $0x190] sm:$0xff]
    %v1322 = vld [vmem:[#allocation7 + $0x198] sm:$0xff]
    %v1323 = vld [vmem:[#allocation7 + $0x1a0] sm:$0xff]
    %v1324 = vld [vmem:[#allocation7 + $0x1a8] sm:$0xff]
    %v1325 = vld [vmem:[#allocation7 + $0x1b0] sm:$0xff]
    %v1326 = vld [vmem:[#allocation7 + $0x1b8] sm:$0xff]
    %v1327 = vld [vmem:[#allocation7 + $0x1c0] sm:$0xff]
    %v1328 = vld [vmem:[#allocation7 + $0x1c8] sm:$0xff]
    %v1329 = vld [vmem:[#allocation7 + $0x1d0] sm:$0xff]
    %v1330 = vld [vmem:[#allocation7 + $0x1d8] sm:$0xff]
    %v1331 = vld [vmem:[#allocation7 + $0x1e0] sm:$0xff]
    %v1332 = vld [vmem:[#allocation7 + $0x1e8] sm:$0xff]
    %v1333 = vld [vmem:[#allocation7 + $0x1f0] sm:$0xff]
    %v1334 = vld [vmem:[#allocation7 + $0x1f8] sm:$0xff]
    %1335 = vmatprep.subr.mxu0 %v1332
    %1336 = vmatpush1.msra.mxu0 %v1331
    %1337 = vmatprep.subr.mxu0 %v1328
    %1338 = vmatpush1.msra.mxu0 %v1327
    %1339 = vmatprep.subr.mxu0 %v1324
    %1340 = vmatpush1.msra.mxu0 %v1323
    %1341 = vmatprep.subr.mxu0 %v1320
    %1342 = vmatpush1.msra.mxu0 %v1319
    %1343 = vmatprep.subr.mxu0 %v1316
    %1344 = vmatpush1.msra.mxu0 %v1315
    %1345 = vmatprep.subr.mxu0 %v1312
    %1346 = vmatpush1.msra.mxu0 %v1311
    %1347 = vmatprep.subr.mxu0 %v1308
    %1348 = vmatpush1.msra.mxu0 %v1307
    %1349 = vmatprep.subr.mxu0 %v1304
    %1350 = vmatpush1.msra.mxu0 %v1303
    %1351 = vmatprep.subr.mxu0 %v1300
    %1352 = vmatpush1.msra.mxu0 %v1299
    %1353 = vmatprep.subr.mxu0 %v1296
    %1354 = vmatpush1.msra.mxu0 %v1295
    %1355 = vmatprep.subr.mxu0 %v1292
    %1356 = vmatpush1.msra.mxu0 %v1291
    %1357 = vmatprep.subr.mxu0 %v1288
    %1358 = vmatpush1.msra.mxu0 %v1287
    %1359 = vmatprep.subr.mxu0 %v1284
    %1360 = vmatpush1.msra.mxu0 %v1283
    %1361 = vmatprep.subr.mxu0 %v1280
    %1362 = vmatpush1.msra.mxu0 %v1279
    %1363 = vmatprep.subr.mxu0 %v1276
    %1364 = vmatpush1.msra.mxu0 %v1275
    %1365 = vmatprep.subr.mxu0 %v1272
    %1366 = vmatpush1.msra.mxu0 %v1271
    %1367 = vmatprep.subr.mxu0 0.0
    %1368 = vmatpush2.msra.mxu0 0.0
    %1369 = vmatprep.subr.mxu0 0.0
    %1370 = vmatpush2.msra.mxu0 0.0
    %1371 = vmatprep.subr.mxu0 0.0
    %1372 = vmatpush2.msra.mxu0 0.0
    %1373 = vmatprep.subr.mxu0 0.0
    %1374 = vmatpush2.msra.mxu0 0.0
    %1375 = vmatprep.subr.mxu0 0.0
    %1376 = vmatpush2.msra.mxu0 0.0
    %1377 = vmatprep.subr.mxu0 0.0
    %1378 = vmatpush2.msra.mxu0 0.0
    %1379 = vmatprep.subr.mxu0 0.0
    %1380 = vmatpush2.msra.mxu0 0.0
    %1381 = vmatprep.subr.mxu0 0.0
    %1382 = vmatpush2.msra.mxu0 0.0
    %1383 = vmatprep.subr.mxu0 0.0
    %1384 = vmatpush2.msra.mxu0 0.0
    %1385 = vmatprep.subr.mxu0 0.0
    %1386 = vmatpush2.msra.mxu0 0.0
    %1387 = vmatprep.subr.mxu0 0.0
    %1388 = vmatpush2.msra.mxu0 0.0
    %1389 = vmatprep.subr.mxu0 0.0
    %1390 = vmatpush2.msra.mxu0 0.0
    %1391 = vmatprep.subr.mxu0 0.0
    %1392 = vmatpush2.msra.mxu0 0.0
    %1393 = vmatprep.subr.mxu0 0.0
    %1394 = vmatpush2.msra.mxu0 0.0
    %1395 = vmatprep.subr.mxu0 0.0
    %1396 = vmatpush2.msra.mxu0 0.0
    %1397 = vmatprep.subr.mxu0 0.0
    %1398 = vmatpush2.msra.mxu0 0.0
    %1399 = vmatprep.mubr.f32.mxu0 0.0
    %1400 = vmatmul.mubr.f32.gmra.mxu0 %v1263
    %v1401 = vpop.f32.mrf.mxu0
    %v1402 = vadd.f32 0.0, %v1401
    %v1403 = vpop.f32.mrf.mxu0
    %v1404 = vadd.f32 0.0, %v1403
    %1405 = vdwg.mxu0
    %1406 = vmatprep.subr.mxu0 %v1334
    %1407 = vmatpush1.msra.mxu0 %v1333
    %1408 = vmatprep.subr.mxu0 %v1330
    %1409 = vmatpush1.msra.mxu0 %v1329
    %1410 = vmatprep.subr.mxu0 %v1326
    %1411 = vmatpush1.msra.mxu0 %v1325
    %1412 = vmatprep.subr.mxu0 %v1322
    %1413 = vmatpush1.msra.mxu0 %v1321
    %1414 = vmatprep.subr.mxu0 %v1318
    %1415 = vmatpush1.msra.mxu0 %v1317
    %1416 = vmatprep.subr.mxu0 %v1314
    %1417 = vmatpush1.msra.mxu0 %v1313
    %1418 = vmatprep.subr.mxu0 %v1310
    %1419 = vmatpush1.msra.mxu0 %v1309
    %1420 = vmatprep.subr.mxu0 %v1306
    %1421 = vmatpush1.msra.mxu0 %v1305
    %1422 = vmatprep.subr.mxu0 %v1302
    %1423 = vmatpush1.msra.mxu0 %v1301
    %1424 = vmatprep.subr.mxu0 %v1298
    %1425 = vmatpush1.msra.mxu0 %v1297
    %1426 = vmatprep.subr.mxu0 %v1294
    %1427 = vmatpush1.msra.mxu0 %v1293
    %1428 = vmatprep.subr.mxu0 %v1290
    %1429 = vmatpush1.msra.mxu0 %v1289
    %1430 = vmatprep.subr.mxu0 %v1286
    %1431 = vmatpush1.msra.mxu0 %v1285
    %1432 = vmatprep.subr.mxu0 %v1282
    %1433 = vmatpush1.msra.mxu0 %v1281
    %1434 = vmatprep.subr.mxu0 %v1278
    %1435 = vmatpush1.msra.mxu0 %v1277
    %1436 = vmatprep.subr.mxu0 %v1274
    %1437 = vmatpush1.msra.mxu0 %v1273
    %1438 = vmatprep.subr.mxu0 0.0
    %1439 = vmatpush2.msra.mxu0 0.0
    %1440 = vmatprep.subr.mxu0 0.0
    %1441 = vmatpush2.msra.mxu0 0.0
    %1442 = vmatprep.subr.mxu0 0.0
    %1443 = vmatpush2.msra.mxu0 0.0
    %1444 = vmatprep.subr.mxu0 0.0
    %1445 = vmatpush2.msra.mxu0 0.0
    %1446 = vmatprep.subr.mxu0 0.0
    %1447 = vmatpush2.msra.mxu0 0.0
    %1448 = vmatprep.subr.mxu0 0.0
    %1449 = vmatpush2.msra.mxu0 0.0
    %1450 = vmatprep.subr.mxu0 0.0
    %1451 = vmatpush2.msra.mxu0 0.0
    %1452 = vmatprep.subr.mxu0 0.0
    %1453 = vmatpush2.msra.mxu0 0.0
    %1454 = vmatprep.subr.mxu0 0.0
    %1455 = vmatpush2.msra.mxu0 0.0
    %1456 = vmatprep.subr.mxu0 0.0
    %1457 = vmatpush2.msra.mxu0 0.0
    %1458 = vmatprep.subr.mxu0 0.0
    %1459 = vmatpush2.msra.mxu0 0.0
    %1460 = vmatprep.subr.mxu0 0.0
    %1461 = vmatpush2.msra.mxu0 0.0
    %1462 = vmatprep.subr.mxu0 0.0
    %1463 = vmatpush2.msra.mxu0 0.0
    %1464 = vmatprep.subr.mxu0 0.0
    %1465 = vmatpush2.msra.mxu0 0.0
    %1466 = vmatprep.subr.mxu0 0.0
    %1467 = vmatpush2.msra.mxu0 0.0
    %1468 = vmatprep.subr.mxu0 0.0
    %1469 = vmatpush2.msra.mxu0 0.0
    %1470 = vmatprep.mubr.f32.mxu0 0.0
    %1471 = vmatmul.mubr.f32.gmra.mxu0 %v1263
    %v1472 = vpop.f32.mrf.mxu0
    %v1473 = vadd.f32 0.0, %v1472
    %v1474 = vpop.f32.mrf.mxu0
    %v1475 = vadd.f32 0.0, %v1474
    %1476 = vdwg.mxu0
    %v1477 = vadd.f32 %v1267, %v1402
    %v1478 = vadd.f32 %v1268, %v1404
    %v1479 = vadd.f32 %v1269, %v1473
    %v1480 = vadd.f32 %v1270, %v1475
    %v1481 = vxor.u32 %v1477, 2147483648
    %v1482 = vmul.f32 %v1481, 1.442695
    %v1483 = vpow.pop %v1482
    %v1484 = vadd.f32 %v1483, 1.0
    %v1485 = vrcp.pop %v1484
    %v1486 = vmul.f32 1.0, %v1485
    %v1487 = vxor.u32 %v1478, 2147483648
    %v1488 = vmul.f32 %v1487, 1.442695
    %v1489 = vpow.pop %v1488
    %v1490 = vadd.f32 %v1489, 1.0
    %v1491 = vrcp.pop %v1490
    %v1492 = vmul.f32 1.0, %v1491
    %v1493 = vtanh.pop %v1479
    %v1494 = vxor.u32 %v1480, 2147483648
    %v1495 = vmul.f32 %v1494, 1.442695
    %v1496 = vpow.pop %v1495
    %v1497 = vadd.f32 %v1496, 1.0
    %v1498 = vrcp.pop %v1497
    %v1499 = vmul.f32 1.0, %v1498
    %v1500 = vmul.f32 %v1492, %v1261
    %v1501 = vmul.f32 %v1486, %v1493
    %v1502 = vadd.f32 %v1500, %v1501
    %v1503 = vtanh.pop %v1502
    %v1504 = vmul.f32 %v1499, %v1503
    %s1505 = scalar_lea.vmem [#allocation2], 40
    %1506 = vst [vmem:[%s1505] sm:$0xff] %v1504
    %s1507 = scalar_lea.vmem [#allocation4], 192
    %v1508 = vld [vmem:[%s1507] sm:$0xff]
    %v1509 = vld [vmem:[%s1507 + $0x8] sm:$0xff]
    %v1510 = vld [vmem:[%s1507 + $0x10] sm:$0xff]
    %v1511 = vld [vmem:[%s1507 + $0x18] sm:$0xff]
    %v1512 = vld [vmem:[#allocation7] sm:$0xff]
    %v1513 = vld [vmem:[#allocation7 + $0x8] sm:$0xff]
    %v1514 = vld [vmem:[#allocation7 + $0x10] sm:$0xff]
    %v1515 = vld [vmem:[#allocation7 + $0x18] sm:$0xff]
    %v1516 = vld [vmem:[#allocation7 + $0x20] sm:$0xff]
    %v1517 = vld [vmem:[#allocation7 + $0x28] sm:$0xff]
    %v1518 = vld [vmem:[#allocation7 + $0x30] sm:$0xff]
    %v1519 = vld [vmem:[#allocation7 + $0x38] sm:$0xff]
    %v1520 = vld [vmem:[#allocation7 + $0x40] sm:$0xff]
    %v1521 = vld [vmem:[#allocation7 + $0x48] sm:$0xff]
    %v1522 = vld [vmem:[#allocation7 + $0x50] sm:$0xff]
    %v1523 = vld [vmem:[#allocation7 + $0x58] sm:$0xff]
    %v1524 = vld [vmem:[#allocation7 + $0x60] sm:$0xff]
    %v1525 = vld [vmem:[#allocation7 + $0x68] sm:$0xff]
    %v1526 = vld [vmem:[#allocation7 + $0x70] sm:$0xff]
    %v1527 = vld [vmem:[#allocation7 + $0x78] sm:$0xff]
    %v1528 = vld [vmem:[#allocation7 + $0x80] sm:$0xff]
    %v1529 = vld [vmem:[#allocation7 + $0x88] sm:$0xff]
    %v1530 = vld [vmem:[#allocation7 + $0x90] sm:$0xff]
    %v1531 = vld [vmem:[#allocation7 + $0x98] sm:$0xff]
    %v1532 = vld [vmem:[#allocation7 + $0xa0] sm:$0xff]
    %v1533 = vld [vmem:[#allocation7 + $0xa8] sm:$0xff]
    %v1534 = vld [vmem:[#allocation7 + $0xb0] sm:$0xff]
    %v1535 = vld [vmem:[#allocation7 + $0xb8] sm:$0xff]
    %v1536 = vld [vmem:[#allocation7 + $0xc0] sm:$0xff]
    %v1537 = vld [vmem:[#allocation7 + $0xc8] sm:$0xff]
    %v1538 = vld [vmem:[#allocation7 + $0xd0] sm:$0xff]
    %v1539 = vld [vmem:[#allocation7 + $0xd8] sm:$0xff]
    %v1540 = vld [vmem:[#allocation7 + $0xe0] sm:$0xff]
    %v1541 = vld [vmem:[#allocation7 + $0xe8] sm:$0xff]
    %v1542 = vld [vmem:[#allocation7 + $0xf0] sm:$0xff]
    %v1543 = vld [vmem:[#allocation7 + $0xf8] sm:$0xff]
    %v1544 = vld [vmem:[#allocation7 + $0x100] sm:$0xff]
    %v1545 = vld [vmem:[#allocation7 + $0x108] sm:$0xff]
    %v1546 = vld [vmem:[#allocation7 + $0x110] sm:$0xff]
    %v1547 = vld [vmem:[#allocation7 + $0x118] sm:$0xff]
    %v1548 = vld [vmem:[#allocation7 + $0x120] sm:$0xff]
    %v1549 = vld [vmem:[#allocation7 + $0x128] sm:$0xff]
    %v1550 = vld [vmem:[#allocation7 + $0x130] sm:$0xff]
    %v1551 = vld [vmem:[#allocation7 + $0x138] sm:$0xff]
    %v1552 = vld [vmem:[#allocation7 + $0x140] sm:$0xff]
    %v1553 = vld [vmem:[#allocation7 + $0x148] sm:$0xff]
    %v1554 = vld [vmem:[#allocation7 + $0x150] sm:$0xff]
    %v1555 = vld [vmem:[#allocation7 + $0x158] sm:$0xff]
    %v1556 = vld [vmem:[#allocation7 + $0x160] sm:$0xff]
    %v1557 = vld [vmem:[#allocation7 + $0x168] sm:$0xff]
    %v1558 = vld [vmem:[#allocation7 + $0x170] sm:$0xff]
    %v1559 = vld [vmem:[#allocation7 + $0x178] sm:$0xff]
    %v1560 = vld [vmem:[#allocation7 + $0x180] sm:$0xff]
    %v1561 = vld [vmem:[#allocation7 + $0x188] sm:$0xff]
    %v1562 = vld [vmem:[#allocation7 + $0x190] sm:$0xff]
    %v1563 = vld [vmem:[#allocation7 + $0x198] sm:$0xff]
    %v1564 = vld [vmem:[#allocation7 + $0x1a0] sm:$0xff]
    %v1565 = vld [vmem:[#allocation7 + $0x1a8] sm:$0xff]
    %v1566 = vld [vmem:[#allocation7 + $0x1b0] sm:$0xff]
    %v1567 = vld [vmem:[#allocation7 + $0x1b8] sm:$0xff]
    %v1568 = vld [vmem:[#allocation7 + $0x1c0] sm:$0xff]
    %v1569 = vld [vmem:[#allocation7 + $0x1c8] sm:$0xff]
    %v1570 = vld [vmem:[#allocation7 + $0x1d0] sm:$0xff]
    %v1571 = vld [vmem:[#allocation7 + $0x1d8] sm:$0xff]
    %v1572 = vld [vmem:[#allocation7 + $0x1e0] sm:$0xff]
    %v1573 = vld [vmem:[#allocation7 + $0x1e8] sm:$0xff]
    %v1574 = vld [vmem:[#allocation7 + $0x1f0] sm:$0xff]
    %v1575 = vld [vmem:[#allocation7 + $0x1f8] sm:$0xff]
    %1576 = vmatprep.subr.mxu0 %v1573
    %1577 = vmatpush1.msra.mxu0 %v1572
    %1578 = vmatprep.subr.mxu0 %v1569
    %1579 = vmatpush1.msra.mxu0 %v1568
    %1580 = vmatprep.subr.mxu0 %v1565
    %1581 = vmatpush1.msra.mxu0 %v1564
    %1582 = vmatprep.subr.mxu0 %v1561
    %1583 = vmatpush1.msra.mxu0 %v1560
    %1584 = vmatprep.subr.mxu0 %v1557
    %1585 = vmatpush1.msra.mxu0 %v1556
    %1586 = vmatprep.subr.mxu0 %v1553
    %1587 = vmatpush1.msra.mxu0 %v1552
    %1588 = vmatprep.subr.mxu0 %v1549
    %1589 = vmatpush1.msra.mxu0 %v1548
    %1590 = vmatprep.subr.mxu0 %v1545
    %1591 = vmatpush1.msra.mxu0 %v1544
    %1592 = vmatprep.subr.mxu0 %v1541
    %1593 = vmatpush1.msra.mxu0 %v1540
    %1594 = vmatprep.subr.mxu0 %v1537
    %1595 = vmatpush1.msra.mxu0 %v1536
    %1596 = vmatprep.subr.mxu0 %v1533
    %1597 = vmatpush1.msra.mxu0 %v1532
    %1598 = vmatprep.subr.mxu0 %v1529
    %1599 = vmatpush1.msra.mxu0 %v1528
    %1600 = vmatprep.subr.mxu0 %v1525
    %1601 = vmatpush1.msra.mxu0 %v1524
    %1602 = vmatprep.subr.mxu0 %v1521
    %1603 = vmatpush1.msra.mxu0 %v1520
    %1604 = vmatprep.subr.mxu0 %v1517
    %1605 = vmatpush1.msra.mxu0 %v1516
    %1606 = vmatprep.subr.mxu0 %v1513
    %1607 = vmatpush1.msra.mxu0 %v1512
    %1608 = vmatprep.subr.mxu0 0.0
    %1609 = vmatpush2.msra.mxu0 0.0
    %1610 = vmatprep.subr.mxu0 0.0
    %1611 = vmatpush2.msra.mxu0 0.0
    %1612 = vmatprep.subr.mxu0 0.0
    %1613 = vmatpush2.msra.mxu0 0.0
    %1614 = vmatprep.subr.mxu0 0.0
    %1615 = vmatpush2.msra.mxu0 0.0
    %1616 = vmatprep.subr.mxu0 0.0
    %1617 = vmatpush2.msra.mxu0 0.0
    %1618 = vmatprep.subr.mxu0 0.0
    %1619 = vmatpush2.msra.mxu0 0.0
    %1620 = vmatprep.subr.mxu0 0.0
    %1621 = vmatpush2.msra.mxu0 0.0
    %1622 = vmatprep.subr.mxu0 0.0
    %1623 = vmatpush2.msra.mxu0 0.0
    %1624 = vmatprep.subr.mxu0 0.0
    %1625 = vmatpush2.msra.mxu0 0.0
    %1626 = vmatprep.subr.mxu0 0.0
    %1627 = vmatpush2.msra.mxu0 0.0
    %1628 = vmatprep.subr.mxu0 0.0
    %1629 = vmatpush2.msra.mxu0 0.0
    %1630 = vmatprep.subr.mxu0 0.0
    %1631 = vmatpush2.msra.mxu0 0.0
    %1632 = vmatprep.subr.mxu0 0.0
    %1633 = vmatpush2.msra.mxu0 0.0
    %1634 = vmatprep.subr.mxu0 0.0
    %1635 = vmatpush2.msra.mxu0 0.0
    %1636 = vmatprep.subr.mxu0 0.0
    %1637 = vmatpush2.msra.mxu0 0.0
    %1638 = vmatprep.subr.mxu0 0.0
    %1639 = vmatpush2.msra.mxu0 0.0
    %1640 = vmatprep.mubr.f32.mxu0 0.0
    %1641 = vmatmul.mubr.f32.gmra.mxu0 %v1504
    %v1642 = vpop.f32.mrf.mxu0
    %v1643 = vadd.f32 0.0, %v1642
    %v1644 = vpop.f32.mrf.mxu0
    %v1645 = vadd.f32 0.0, %v1644
    %1646 = vdwg.mxu0
    %1647 = vmatprep.subr.mxu0 %v1575
    %1648 = vmatpush1.msra.mxu0 %v1574
    %1649 = vmatprep.subr.mxu0 %v1571
    %1650 = vmatpush1.msra.mxu0 %v1570
    %1651 = vmatprep.subr.mxu0 %v1567
    %1652 = vmatpush1.msra.mxu0 %v1566
    %1653 = vmatprep.subr.mxu0 %v1563
    %1654 = vmatpush1.msra.mxu0 %v1562
    %1655 = vmatprep.subr.mxu0 %v1559
    %1656 = vmatpush1.msra.mxu0 %v1558
    %1657 = vmatprep.subr.mxu0 %v1555
    %1658 = vmatpush1.msra.mxu0 %v1554
    %1659 = vmatprep.subr.mxu0 %v1551
    %1660 = vmatpush1.msra.mxu0 %v1550
    %1661 = vmatprep.subr.mxu0 %v1547
    %1662 = vmatpush1.msra.mxu0 %v1546
    %1663 = vmatprep.subr.mxu0 %v1543
    %1664 = vmatpush1.msra.mxu0 %v1542
    %1665 = vmatprep.subr.mxu0 %v1539
    %1666 = vmatpush1.msra.mxu0 %v1538
    %1667 = vmatprep.subr.mxu0 %v1535
    %1668 = vmatpush1.msra.mxu0 %v1534
    %1669 = vmatprep.subr.mxu0 %v1531
    %1670 = vmatpush1.msra.mxu0 %v1530
    %1671 = vmatprep.subr.mxu0 %v1527
    %1672 = vmatpush1.msra.mxu0 %v1526
    %1673 = vmatprep.subr.mxu0 %v1523
    %1674 = vmatpush1.msra.mxu0 %v1522
    %1675 = vmatprep.subr.mxu0 %v1519
    %1676 = vmatpush1.msra.mxu0 %v1518
    %1677 = vmatprep.subr.mxu0 %v1515
    %1678 = vmatpush1.msra.mxu0 %v1514
    %1679 = vmatprep.subr.mxu0 0.0
    %1680 = vmatpush2.msra.mxu0 0.0
    %1681 = vmatprep.subr.mxu0 0.0
    %1682 = vmatpush2.msra.mxu0 0.0
    %1683 = vmatprep.subr.mxu0 0.0
    %1684 = vmatpush2.msra.mxu0 0.0
    %1685 = vmatprep.subr.mxu0 0.0
    %1686 = vmatpush2.msra.mxu0 0.0
    %1687 = vmatprep.subr.mxu0 0.0
    %1688 = vmatpush2.msra.mxu0 0.0
    %1689 = vmatprep.subr.mxu0 0.0
    %1690 = vmatpush2.msra.mxu0 0.0
    %1691 = vmatprep.subr.mxu0 0.0
    %1692 = vmatpush2.msra.mxu0 0.0
    %1693 = vmatprep.subr.mxu0 0.0
    %1694 = vmatpush2.msra.mxu0 0.0
    %1695 = vmatprep.subr.mxu0 0.0
    %1696 = vmatpush2.msra.mxu0 0.0
    %1697 = vmatprep.subr.mxu0 0.0
    %1698 = vmatpush2.msra.mxu0 0.0
    %1699 = vmatprep.subr.mxu0 0.0
    %1700 = vmatpush2.msra.mxu0 0.0
    %1701 = vmatprep.subr.mxu0 0.0
    %1702 = vmatpush2.msra.mxu0 0.0
    %1703 = vmatprep.subr.mxu0 0.0
    %1704 = vmatpush2.msra.mxu0 0.0
    %1705 = vmatprep.subr.mxu0 0.0
    %1706 = vmatpush2.msra.mxu0 0.0
    %1707 = vmatprep.subr.mxu0 0.0
    %1708 = vmatpush2.msra.mxu0 0.0
    %1709 = vmatprep.subr.mxu0 0.0
    %1710 = vmatpush2.msra.mxu0 0.0
    %1711 = vmatprep.mubr.f32.mxu0 0.0
    %1712 = vmatmul.mubr.f32.gmra.mxu0 %v1504
    %v1713 = vpop.f32.mrf.mxu0
    %v1714 = vadd.f32 0.0, %v1713
    %v1715 = vpop.f32.mrf.mxu0
    %v1716 = vadd.f32 0.0, %v1715
    %1717 = vdwg.mxu0
    %v1718 = vadd.f32 %v1508, %v1643
    %v1719 = vadd.f32 %v1509, %v1645
    %v1720 = vadd.f32 %v1510, %v1714
    %v1721 = vadd.f32 %v1511, %v1716
    %v1722 = vxor.u32 %v1718, 2147483648
    %v1723 = vmul.f32 %v1722, 1.442695
    %v1724 = vpow.pop %v1723
    %v1725 = vadd.f32 %v1724, 1.0
    %v1726 = vrcp.pop %v1725
    %v1727 = vmul.f32 1.0, %v1726
    %v1728 = vxor.u32 %v1719, 2147483648
    %v1729 = vmul.f32 %v1728, 1.442695
    %v1730 = vpow.pop %v1729
    %v1731 = vadd.f32 %v1730, 1.0
    %v1732 = vrcp.pop %v1731
    %v1733 = vmul.f32 1.0, %v1732
    %v1734 = vtanh.pop %v1720
    %v1735 = vxor.u32 %v1721, 2147483648
    %v1736 = vmul.f32 %v1735, 1.442695
    %v1737 = vpow.pop %v1736
    %v1738 = vadd.f32 %v1737, 1.0
    %v1739 = vrcp.pop %v1738
    %v1740 = vmul.f32 1.0, %v1739
    %v1741 = vmul.f32 %v1733, %v1502
    %v1742 = vmul.f32 %v1727, %v1734
    %v1743 = vadd.f32 %v1741, %v1742
    %v1744 = vtanh.pop %v1743
    %v1745 = vmul.f32 %v1740, %v1744
    %s1746 = scalar_lea.vmem [#allocation2], 48
    %1747 = vst [vmem:[%s1746] sm:$0xff] %v1745
    %s1748 = scalar_lea.vmem [#allocation4], 224
    %v1749 = vld [vmem:[%s1748] sm:$0xff]
    %v1750 = vld [vmem:[%s1748 + $0x8] sm:$0xff]
    %v1751 = vld [vmem:[%s1748 + $0x10] sm:$0xff]
    %v1752 = vld [vmem:[%s1748 + $0x18] sm:$0xff]
    %v1753 = vld [vmem:[#allocation7] sm:$0xff]
    %v1754 = vld [vmem:[#allocation7 + $0x8] sm:$0xff]
    %v1755 = vld [vmem:[#allocation7 + $0x10] sm:$0xff]
    %v1756 = vld [vmem:[#allocation7 + $0x18] sm:$0xff]
    %v1757 = vld [vmem:[#allocation7 + $0x20] sm:$0xff]
    %v1758 = vld [vmem:[#allocation7 + $0x28] sm:$0xff]
    %v1759 = vld [vmem:[#allocation7 + $0x30] sm:$0xff]
    %v1760 = vld [vmem:[#allocation7 + $0x38] sm:$0xff]
    %v1761 = vld [vmem:[#allocation7 + $0x40] sm:$0xff]
    %v1762 = vld [vmem:[#allocation7 + $0x48] sm:$0xff]
    %v1763 = vld [vmem:[#allocation7 + $0x50] sm:$0xff]
    %v1764 = vld [vmem:[#allocation7 + $0x58] sm:$0xff]
    %v1765 = vld [vmem:[#allocation7 + $0x60] sm:$0xff]
    %v1766 = vld [vmem:[#allocation7 + $0x68] sm:$0xff]
    %v1767 = vld [vmem:[#allocation7 + $0x70] sm:$0xff]
    %v1768 = vld [vmem:[#allocation7 + $0x78] sm:$0xff]
    %v1769 = vld [vmem:[#allocation7 + $0x80] sm:$0xff]
    %v1770 = vld [vmem:[#allocation7 + $0x88] sm:$0xff]
    %v1771 = vld [vmem:[#allocation7 + $0x90] sm:$0xff]
    %v1772 = vld [vmem:[#allocation7 + $0x98] sm:$0xff]
    %v1773 = vld [vmem:[#allocation7 + $0xa0] sm:$0xff]
    %v1774 = vld [vmem:[#allocation7 + $0xa8] sm:$0xff]
    %v1775 = vld [vmem:[#allocation7 + $0xb0] sm:$0xff]
    %v1776 = vld [vmem:[#allocation7 + $0xb8] sm:$0xff]
    %v1777 = vld [vmem:[#allocation7 + $0xc0] sm:$0xff]
    %v1778 = vld [vmem:[#allocation7 + $0xc8] sm:$0xff]
    %v1779 = vld [vmem:[#allocation7 + $0xd0] sm:$0xff]
    %v1780 = vld [vmem:[#allocation7 + $0xd8] sm:$0xff]
    %v1781 = vld [vmem:[#allocation7 + $0xe0] sm:$0xff]
    %v1782 = vld [vmem:[#allocation7 + $0xe8] sm:$0xff]
    %v1783 = vld [vmem:[#allocation7 + $0xf0] sm:$0xff]
    %v1784 = vld [vmem:[#allocation7 + $0xf8] sm:$0xff]
    %v1785 = vld [vmem:[#allocation7 + $0x100] sm:$0xff]
    %v1786 = vld [vmem:[#allocation7 + $0x108] sm:$0xff]
    %v1787 = vld [vmem:[#allocation7 + $0x110] sm:$0xff]
    %v1788 = vld [vmem:[#allocation7 + $0x118] sm:$0xff]
    %v1789 = vld [vmem:[#allocation7 + $0x120] sm:$0xff]
    %v1790 = vld [vmem:[#allocation7 + $0x128] sm:$0xff]
    %v1791 = vld [vmem:[#allocation7 + $0x130] sm:$0xff]
    %v1792 = vld [vmem:[#allocation7 + $0x138] sm:$0xff]
    %v1793 = vld [vmem:[#allocation7 + $0x140] sm:$0xff]
    %v1794 = vld [vmem:[#allocation7 + $0x148] sm:$0xff]
    %v1795 = vld [vmem:[#allocation7 + $0x150] sm:$0xff]
    %v1796 = vld [vmem:[#allocation7 + $0x158] sm:$0xff]
    %v1797 = vld [vmem:[#allocation7 + $0x160] sm:$0xff]
    %v1798 = vld [vmem:[#allocation7 + $0x168] sm:$0xff]
    %v1799 = vld [vmem:[#allocation7 + $0x170] sm:$0xff]
    %v1800 = vld [vmem:[#allocation7 + $0x178] sm:$0xff]
    %v1801 = vld [vmem:[#allocation7 + $0x180] sm:$0xff]
    %v1802 = vld [vmem:[#allocation7 + $0x188] sm:$0xff]
    %v1803 = vld [vmem:[#allocation7 + $0x190] sm:$0xff]
    %v1804 = vld [vmem:[#allocation7 + $0x198] sm:$0xff]
    %v1805 = vld [vmem:[#allocation7 + $0x1a0] sm:$0xff]
    %v1806 = vld [vmem:[#allocation7 + $0x1a8] sm:$0xff]
    %v1807 = vld [vmem:[#allocation7 + $0x1b0] sm:$0xff]
    %v1808 = vld [vmem:[#allocation7 + $0x1b8] sm:$0xff]
    %v1809 = vld [vmem:[#allocation7 + $0x1c0] sm:$0xff]
    %v1810 = vld [vmem:[#allocation7 + $0x1c8] sm:$0xff]
    %v1811 = vld [vmem:[#allocation7 + $0x1d0] sm:$0xff]
    %v1812 = vld [vmem:[#allocation7 + $0x1d8] sm:$0xff]
    %v1813 = vld [vmem:[#allocation7 + $0x1e0] sm:$0xff]
    %v1814 = vld [vmem:[#allocation7 + $0x1e8] sm:$0xff]
    %v1815 = vld [vmem:[#allocation7 + $0x1f0] sm:$0xff]
    %v1816 = vld [vmem:[#allocation7 + $0x1f8] sm:$0xff]
    %1817 = vmatprep.subr.mxu0 %v1814
    %1818 = vmatpush1.msra.mxu0 %v1813
    %1819 = vmatprep.subr.mxu0 %v1810
    %1820 = vmatpush1.msra.mxu0 %v1809
    %1821 = vmatprep.subr.mxu0 %v1806
    %1822 = vmatpush1.msra.mxu0 %v1805
    %1823 = vmatprep.subr.mxu0 %v1802
    %1824 = vmatpush1.msra.mxu0 %v1801
    %1825 = vmatprep.subr.mxu0 %v1798
    %1826 = vmatpush1.msra.mxu0 %v1797
    %1827 = vmatprep.subr.mxu0 %v1794
    %1828 = vmatpush1.msra.mxu0 %v1793
    %1829 = vmatprep.subr.mxu0 %v1790
    %1830 = vmatpush1.msra.mxu0 %v1789
    %1831 = vmatprep.subr.mxu0 %v1786
    %1832 = vmatpush1.msra.mxu0 %v1785
    %1833 = vmatprep.subr.mxu0 %v1782
    %1834 = vmatpush1.msra.mxu0 %v1781
    %1835 = vmatprep.subr.mxu0 %v1778
    %1836 = vmatpush1.msra.mxu0 %v1777
    %1837 = vmatprep.subr.mxu0 %v1774
    %1838 = vmatpush1.msra.mxu0 %v1773
    %1839 = vmatprep.subr.mxu0 %v1770
    %1840 = vmatpush1.msra.mxu0 %v1769
    %1841 = vmatprep.subr.mxu0 %v1766
    %1842 = vmatpush1.msra.mxu0 %v1765
    %1843 = vmatprep.subr.mxu0 %v1762
    %1844 = vmatpush1.msra.mxu0 %v1761
    %1845 = vmatprep.subr.mxu0 %v1758
    %1846 = vmatpush1.msra.mxu0 %v1757
    %1847 = vmatprep.subr.mxu0 %v1754
    %1848 = vmatpush1.msra.mxu0 %v1753
    %1849 = vmatprep.subr.mxu0 0.0
    %1850 = vmatpush2.msra.mxu0 0.0
    %1851 = vmatprep.subr.mxu0 0.0
    %1852 = vmatpush2.msra.mxu0 0.0
    %1853 = vmatprep.subr.mxu0 0.0
    %1854 = vmatpush2.msra.mxu0 0.0
    %1855 = vmatprep.subr.mxu0 0.0
    %1856 = vmatpush2.msra.mxu0 0.0
    %1857 = vmatprep.subr.mxu0 0.0
    %1858 = vmatpush2.msra.mxu0 0.0
    %1859 = vmatprep.subr.mxu0 0.0
    %1860 = vmatpush2.msra.mxu0 0.0
    %1861 = vmatprep.subr.mxu0 0.0
    %1862 = vmatpush2.msra.mxu0 0.0
    %1863 = vmatprep.subr.mxu0 0.0
    %1864 = vmatpush2.msra.mxu0 0.0
    %1865 = vmatprep.subr.mxu0 0.0
    %1866 = vmatpush2.msra.mxu0 0.0
    %1867 = vmatprep.subr.mxu0 0.0
    %1868 = vmatpush2.msra.mxu0 0.0
    %1869 = vmatprep.subr.mxu0 0.0
    %1870 = vmatpush2.msra.mxu0 0.0
    %1871 = vmatprep.subr.mxu0 0.0
    %1872 = vmatpush2.msra.mxu0 0.0
    %1873 = vmatprep.subr.mxu0 0.0
    %1874 = vmatpush2.msra.mxu0 0.0
    %1875 = vmatprep.subr.mxu0 0.0
    %1876 = vmatpush2.msra.mxu0 0.0
    %1877 = vmatprep.subr.mxu0 0.0
    %1878 = vmatpush2.msra.mxu0 0.0
    %1879 = vmatprep.subr.mxu0 0.0
    %1880 = vmatpush2.msra.mxu0 0.0
    %1881 = vmatprep.mubr.f32.mxu0 0.0
    %1882 = vmatmul.mubr.f32.gmra.mxu0 %v1745
    %v1883 = vpop.f32.mrf.mxu0
    %v1884 = vadd.f32 0.0, %v1883
    %v1885 = vpop.f32.mrf.mxu0
    %v1886 = vadd.f32 0.0, %v1885
    %1887 = vdwg.mxu0
    %1888 = vmatprep.subr.mxu0 %v1816
    %1889 = vmatpush1.msra.mxu0 %v1815
    %1890 = vmatprep.subr.mxu0 %v1812
    %1891 = vmatpush1.msra.mxu0 %v1811
    %1892 = vmatprep.subr.mxu0 %v1808
    %1893 = vmatpush1.msra.mxu0 %v1807
    %1894 = vmatprep.subr.mxu0 %v1804
    %1895 = vmatpush1.msra.mxu0 %v1803
    %1896 = vmatprep.subr.mxu0 %v1800
    %1897 = vmatpush1.msra.mxu0 %v1799
    %1898 = vmatprep.subr.mxu0 %v1796
    %1899 = vmatpush1.msra.mxu0 %v1795
    %1900 = vmatprep.subr.mxu0 %v1792
    %1901 = vmatpush1.msra.mxu0 %v1791
    %1902 = vmatprep.subr.mxu0 %v1788
    %1903 = vmatpush1.msra.mxu0 %v1787
    %1904 = vmatprep.subr.mxu0 %v1784
    %1905 = vmatpush1.msra.mxu0 %v1783
    %1906 = vmatprep.subr.mxu0 %v1780
    %1907 = vmatpush1.msra.mxu0 %v1779
    %1908 = vmatprep.subr.mxu0 %v1776
    %1909 = vmatpush1.msra.mxu0 %v1775
    %1910 = vmatprep.subr.mxu0 %v1772
    %1911 = vmatpush1.msra.mxu0 %v1771
    %1912 = vmatprep.subr.mxu0 %v1768
    %1913 = vmatpush1.msra.mxu0 %v1767
    %1914 = vmatprep.subr.mxu0 %v1764
    %1915 = vmatpush1.msra.mxu0 %v1763
    %1916 = vmatprep.subr.mxu0 %v1760
    %1917 = vmatpush1.msra.mxu0 %v1759
    %1918 = vmatprep.subr.mxu0 %v1756
    %1919 = vmatpush1.msra.mxu0 %v1755
    %1920 = vmatprep.subr.mxu0 0.0
    %1921 = vmatpush2.msra.mxu0 0.0
    %1922 = vmatprep.subr.mxu0 0.0
    %1923 = vmatpush2.msra.mxu0 0.0
    %1924 = vmatprep.subr.mxu0 0.0
    %1925 = vmatpush2.msra.mxu0 0.0
    %1926 = vmatprep.subr.mxu0 0.0
    %1927 = vmatpush2.msra.mxu0 0.0
    %1928 = vmatprep.subr.mxu0 0.0
    %1929 = vmatpush2.msra.mxu0 0.0
    %1930 = vmatprep.subr.mxu0 0.0
    %1931 = vmatpush2.msra.mxu0 0.0
    %1932 = vmatprep.subr.mxu0 0.0
    %1933 = vmatpush2.msra.mxu0 0.0
    %1934 = vmatprep.subr.mxu0 0.0
    %1935 = vmatpush2.msra.mxu0 0.0
    %1936 = vmatprep.subr.mxu0 0.0
    %1937 = vmatpush2.msra.mxu0 0.0
    %1938 = vmatprep.subr.mxu0 0.0
    %1939 = vmatpush2.msra.mxu0 0.0
    %1940 = vmatprep.subr.mxu0 0.0
    %1941 = vmatpush2.msra.mxu0 0.0
    %1942 = vmatprep.subr.mxu0 0.0
    %1943 = vmatpush2.msra.mxu0 0.0
    %1944 = vmatprep.subr.mxu0 0.0
    %1945 = vmatpush2.msra.mxu0 0.0
    %1946 = vmatprep.subr.mxu0 0.0
    %1947 = vmatpush2.msra.mxu0 0.0
    %1948 = vmatprep.subr.mxu0 0.0
    %1949 = vmatpush2.msra.mxu0 0.0
    %1950 = vmatprep.subr.mxu0 0.0
    %1951 = vmatpush2.msra.mxu0 0.0
    %1952 = vmatprep.mubr.f32.mxu0 0.0
    %1953 = vmatmul.mubr.f32.gmra.mxu0 %v1745
    %v1954 = vpop.f32.mrf.mxu0
    %v1955 = vadd.f32 0.0, %v1954
    %v1956 = vpop.f32.mrf.mxu0
    %v1957 = vadd.f32 0.0, %v1956
    %1958 = vdwg.mxu0
    %v1959 = vadd.f32 %v1749, %v1884
    %v1960 = vadd.f32 %v1750, %v1886
    %v1961 = vadd.f32 %v1751, %v1955
    %v1962 = vadd.f32 %v1752, %v1957
    %v1963 = vxor.u32 %v1959, 2147483648
    %v1964 = vmul.f32 %v1963, 1.442695
    %v1965 = vpow.pop %v1964
    %v1966 = vadd.f32 %v1965, 1.0
    %v1967 = vrcp.pop %v1966
    %v1968 = vmul.f32 1.0, %v1967
    %v1969 = vxor.u32 %v1960, 2147483648
    %v1970 = vmul.f32 %v1969, 1.442695
    %v1971 = vpow.pop %v1970
    %v1972 = vadd.f32 %v1971, 1.0
    %v1973 = vrcp.pop %v1972
    %v1974 = vmul.f32 1.0, %v1973
    %v1975 = vtanh.pop %v1961
    %v1976 = vxor.u32 %v1962, 2147483648
    %v1977 = vmul.f32 %v1976, 1.442695
    %v1978 = vpow.pop %v1977
    %v1979 = vadd.f32 %v1978, 1.0
    %v1980 = vrcp.pop %v1979
    %v1981 = vmul.f32 1.0, %v1980
    %v1982 = vmul.f32 %v1974, %v1743
    %v1983 = vmul.f32 %v1968, %v1975
    %v1984 = vadd.f32 %v1982, %v1983
    %v1985 = vtanh.pop %v1984
    %v1986 = vmul.f32 %v1981, %v1985
    %s1987 = scalar_lea.vmem [#allocation2], 56
    %1988 = vst [vmem:[%s1987] sm:$0xff] %v1986
    %1989 = vst [vmem:[#allocation11] sm:$0xff] %v1986
    %1990 = vst [vmem:[#allocation13] sm:$0xff] %v1984
    %v1991 = vld [vmem:[#allocation2] sm:$0xff]
    %v1992 = vld [vmem:[#allocation2 + $0x8] sm:$0xff]
    %v1993 = vld [vmem:[#allocation2 + $0x10] sm:$0xff]
    %v1994 = vld [vmem:[#allocation2 + $0x18] sm:$0xff]
    %v1995 = vld [vmem:[#allocation2 + $0x20] sm:$0xff]
    %v1996 = vld [vmem:[#allocation2 + $0x28] sm:$0xff]
    %v1997 = vld [vmem:[#allocation2 + $0x30] sm:$0xff]
    %v1998 = vld [vmem:[#allocation2 + $0x38] sm:$0xff]
    %v1999 = vld [vmem:[#allocation9] sm:$0xff]
    %v2000 = vld [vmem:[#allocation9 + $0x8] sm:$0xff]
    %v2001 = vld [vmem:[#allocation9 + $0x10] sm:$0xff]
    %v2002 = vld [vmem:[#allocation9 + $0x18] sm:$0xff]
    %v2003 = vld [vmem:[#allocation9 + $0x20] sm:$0xff]
    %v2004 = vld [vmem:[#allocation9 + $0x28] sm:$0xff]
    %v2005 = vld [vmem:[#allocation9 + $0x30] sm:$0xff]
    %v2006 = vld [vmem:[#allocation9 + $0x38] sm:$0xff]
    %v2007 = vld [vmem:[#allocation9 + $0x40] sm:$0xff]
    %v2008 = vld [vmem:[#allocation9 + $0x48] sm:$0xff]
    %v2009 = vld [vmem:[#allocation9 + $0x50] sm:$0xff]
    %v2010 = vld [vmem:[#allocation9 + $0x58] sm:$0xff]
    %v2011 = vld [vmem:[#allocation9 + $0x60] sm:$0xff]
    %v2012 = vld [vmem:[#allocation9 + $0x68] sm:$0xff]
    %v2013 = vld [vmem:[#allocation9 + $0x70] sm:$0xff]
    %v2014 = vld [vmem:[#allocation9 + $0x78] sm:$0xff]
    %v2015 = vld [vmem:[#allocation9 + $0x80] sm:$0xff]
    %v2016 = vld [vmem:[#allocation9 + $0x88] sm:$0xff]
    %v2017 = vld [vmem:[#allocation9 + $0x90] sm:$0xff]
    %v2018 = vld [vmem:[#allocation9 + $0x98] sm:$0xff]
    %v2019 = vld [vmem:[#allocation9 + $0xa0] sm:$0xff]
    %v2020 = vld [vmem:[#allocation9 + $0xa8] sm:$0xff]
    %v2021 = vld [vmem:[#allocation9 + $0xb0] sm:$0xff]
    %v2022 = vld [vmem:[#allocation9 + $0xb8] sm:$0xff]
    %v2023 = vld [vmem:[#allocation9 + $0xc0] sm:$0xff]
    %v2024 = vld [vmem:[#allocation9 + $0xc8] sm:$0xff]
    %v2025 = vld [vmem:[#allocation9 + $0xd0] sm:$0xff]
    %v2026 = vld [vmem:[#allocation9 + $0xd8] sm:$0xff]
    %v2027 = vld [vmem:[#allocation9 + $0xe0] sm:$0xff]
    %v2028 = vld [vmem:[#allocation9 + $0xe8] sm:$0xff]
    %v2029 = vld [vmem:[#allocation9 + $0xf0] sm:$0xff]
    %v2030 = vld [vmem:[#allocation9 + $0xf8] sm:$0xff]
    %v2031 = vld [vmem:[#allocation9 + $0x100] sm:$0xff]
    %v2032 = vld [vmem:[#allocation9 + $0x108] sm:$0xff]
    %v2033 = vld [vmem:[#allocation9 + $0x110] sm:$0xff]
    %v2034 = vld [vmem:[#allocation9 + $0x118] sm:$0xff]
    %v2035 = vld [vmem:[#allocation9 + $0x120] sm:$0xff]
    %v2036 = vld [vmem:[#allocation9 + $0x128] sm:$0xff]
    %v2037 = vld [vmem:[#allocation9 + $0x130] sm:$0xff]
    %v2038 = vld [vmem:[#allocation9 + $0x138] sm:$0xff]
    %v2039 = vld [vmem:[#allocation9 + $0x140] sm:$0xff]
    %v2040 = vld [vmem:[#allocation9 + $0x148] sm:$0xff]
    %v2041 = vld [vmem:[#allocation9 + $0x150] sm:$0xff]
    %v2042 = vld [vmem:[#allocation9 + $0x158] sm:$0xff]
    %v2043 = vld [vmem:[#allocation9 + $0x160] sm:$0xff]
    %v2044 = vld [vmem:[#allocation9 + $0x168] sm:$0xff]
    %v2045 = vld [vmem:[#allocation9 + $0x170] sm:$0xff]
    %v2046 = vld [vmem:[#allocation9 + $0x178] sm:$0xff]
    %v2047 = vld [vmem:[#allocation9 + $0x180] sm:$0xff]
    %v2048 = vld [vmem:[#allocation9 + $0x188] sm:$0xff]
    %v2049 = vld [vmem:[#allocation9 + $0x190] sm:$0xff]
    %v2050 = vld [vmem:[#allocation9 + $0x198] sm:$0xff]
    %v2051 = vld [vmem:[#allocation9 + $0x1a0] sm:$0xff]
    %v2052 = vld [vmem:[#allocation9 + $0x1a8] sm:$0xff]
    %v2053 = vld [vmem:[#allocation9 + $0x1b0] sm:$0xff]
    %v2054 = vld [vmem:[#allocation9 + $0x1b8] sm:$0xff]
    %v2055 = vld [vmem:[#allocation9 + $0x1c0] sm:$0xff]
    %v2056 = vld [vmem:[#allocation9 + $0x1c8] sm:$0xff]
    %v2057 = vld [vmem:[#allocation9 + $0x1d0] sm:$0xff]
    %v2058 = vld [vmem:[#allocation9 + $0x1d8] sm:$0xff]
    %v2059 = vld [vmem:[#allocation9 + $0x1e0] sm:$0xff]
    %v2060 = vld [vmem:[#allocation9 + $0x1e8] sm:$0xff]
    %v2061 = vld [vmem:[#allocation9 + $0x1f0] sm:$0xff]
    %v2062 = vld [vmem:[#allocation9 + $0x1f8] sm:$0xff]
    %v2063 = vld [vmem:[%s3] sm:$0xf]
    %v2065 = vlaneseq
    %v2066 = vshrl.u32 %v2065, 7
    %v2067 = vsub.s32 0, %v2066
    %v2068 = vrot.slane %v2063, %v2067
    %v2069 = vlaneseq
    %v2070 = vshrl.u32 %v2069, 7
    %v2071 = vsub.s32 1, %v2070
    %v2072 = vrot.slane %v2063, %v2071
    %v2073 = vlaneseq
    %v2074 = vshrl.u32 %v2073, 7
    %v2075 = vsub.s32 2, %v2074
    %v2076 = vrot.slane %v2063, %v2075
    %v2077 = vlaneseq
    %v2078 = vshrl.u32 %v2077, 7
    %v2079 = vsub.s32 3, %v2078
    %v2080 = vrot.slane %v2063, %v2079
    %2085 = vmatprep.subr.mxu0 %v2060
    %2086 = vmatpush1.msra.mxu0 %v2059
    %2087 = vmatprep.subr.mxu0 %v2056
    %2088 = vmatpush1.msra.mxu0 %v2055
    %2089 = vmatprep.subr.mxu0 %v2052
    %2090 = vmatpush1.msra.mxu0 %v2051
    %2091 = vmatprep.subr.mxu0 %v2048
    %2092 = vmatpush1.msra.mxu0 %v2047
    %2093 = vmatprep.subr.mxu0 %v2044
    %2094 = vmatpush1.msra.mxu0 %v2043
    %2095 = vmatprep.subr.mxu0 %v2040
    %2096 = vmatpush1.msra.mxu0 %v2039
    %2097 = vmatprep.subr.mxu0 %v2036
    %2098 = vmatpush1.msra.mxu0 %v2035
    %2099 = vmatprep.subr.mxu0 %v2032
    %2100 = vmatpush1.msra.mxu0 %v2031
    %2101 = vmatprep.subr.mxu0 %v2028
    %2102 = vmatpush1.msra.mxu0 %v2027
    %2103 = vmatprep.subr.mxu0 %v2024
    %2104 = vmatpush1.msra.mxu0 %v2023
    %2105 = vmatprep.subr.mxu0 %v2020
    %2106 = vmatpush1.msra.mxu0 %v2019
    %2107 = vmatprep.subr.mxu0 %v2016
    %2108 = vmatpush1.msra.mxu0 %v2015
    %2109 = vmatprep.subr.mxu0 %v2012
    %2110 = vmatpush1.msra.mxu0 %v2011
    %2111 = vmatprep.subr.mxu0 %v2008
    %2112 = vmatpush1.msra.mxu0 %v2007
    %2113 = vmatprep.subr.mxu0 %v2004
    %2114 = vmatpush1.msra.mxu0 %v2003
    %2115 = vmatprep.subr.mxu0 %v2000
    %2116 = vmatpush1.msra.mxu0 %v1999
    %2117 = vmatprep.subr.mxu0 0.0
    %2118 = vmatpush2.msra.mxu0 0.0
    %2119 = vmatprep.subr.mxu0 0.0
    %2120 = vmatpush2.msra.mxu0 0.0
    %2121 = vmatprep.subr.mxu0 0.0
    %2122 = vmatpush2.msra.mxu0 0.0
    %2123 = vmatprep.subr.mxu0 0.0
    %2124 = vmatpush2.msra.mxu0 0.0
    %2125 = vmatprep.subr.mxu0 0.0
    %2126 = vmatpush2.msra.mxu0 0.0
    %2127 = vmatprep.subr.mxu0 0.0
    %2128 = vmatpush2.msra.mxu0 0.0
    %2129 = vmatprep.subr.mxu0 0.0
    %2130 = vmatpush2.msra.mxu0 0.0
    %2131 = vmatprep.subr.mxu0 0.0
    %2132 = vmatpush2.msra.mxu0 0.0
    %2133 = vmatprep.subr.mxu0 0.0
    %2134 = vmatpush2.msra.mxu0 0.0
    %2135 = vmatprep.subr.mxu0 0.0
    %2136 = vmatpush2.msra.mxu0 0.0
    %2137 = vmatprep.subr.mxu0 0.0
    %2138 = vmatpush2.msra.mxu0 0.0
    %2139 = vmatprep.subr.mxu0 0.0
    %2140 = vmatpush2.msra.mxu0 0.0
    %2141 = vmatprep.subr.mxu0 0.0
    %2142 = vmatpush2.msra.mxu0 0.0
    %2143 = vmatprep.subr.mxu0 0.0
    %2144 = vmatpush2.msra.mxu0 0.0
    %2145 = vmatprep.subr.mxu0 0.0
    %2146 = vmatpush2.msra.mxu0 0.0
    %2147 = vmatprep.subr.mxu0 0.0
    %2148 = vmatpush2.msra.mxu0 0.0
    %2149 = vmatprep.mubr.f32.mxu0 0.0
    %2150 = vmatmul.mubr.f32.gmra.mxu0 %v1991
    %v2151 = vpop.f32.mrf.mxu0
    %v2152 = vadd.f32 %v2068, %v2151
    %v2153 = vpop.f32.mrf.mxu0
    %v2154 = vadd.f32 %v2072, %v2153
    %2155 = vmatprep.mubr.f32.mxu0 0.0
    %2156 = vmatmul.mubr.f32.gmra.mxu0 %v1992
    %v2157 = vpop.f32.mrf.mxu0
    %v2158 = vadd.f32 %v2068, %v2157
    %v2159 = vpop.f32.mrf.mxu0
    %v2160 = vadd.f32 %v2072, %v2159
    %2161 = vmatprep.mubr.f32.mxu0 0.0
    %2162 = vmatmul.mubr.f32.gmra.mxu0 %v1993
    %v2163 = vpop.f32.mrf.mxu0
    %v2164 = vadd.f32 %v2068, %v2163
    %v2165 = vpop.f32.mrf.mxu0
    %v2166 = vadd.f32 %v2072, %v2165
    %2167 = vmatprep.mubr.f32.mxu0 0.0
    %2168 = vmatmul.mubr.f32.gmra.mxu0 %v1994
    %v2169 = vpop.f32.mrf.mxu0
    %v2170 = vadd.f32 %v2068, %v2169
    %v2171 = vpop.f32.mrf.mxu0
    %v2172 = vadd.f32 %v2072, %v2171
    %2173 = vmatprep.mubr.f32.mxu0 0.0
    %2174 = vmatmul.mubr.f32.gmra.mxu0 %v1995
    %v2175 = vpop.f32.mrf.mxu0
    %v2176 = vadd.f32 %v2068, %v2175
    %v2177 = vpop.f32.mrf.mxu0
    %v2178 = vadd.f32 %v2072, %v2177
    %2179 = vmatprep.mubr.f32.mxu0 0.0
    %2180 = vmatmul.mubr.f32.gmra.mxu0 %v1996
    %v2181 = vpop.f32.mrf.mxu0
    %v2182 = vadd.f32 %v2068, %v2181
    %v2183 = vpop.f32.mrf.mxu0
    %v2184 = vadd.f32 %v2072, %v2183
    %2185 = vmatprep.mubr.f32.mxu0 0.0
    %2186 = vmatmul.mubr.f32.gmra.mxu0 %v1997
    %v2187 = vpop.f32.mrf.mxu0
    %v2188 = vadd.f32 %v2068, %v2187
    %v2189 = vpop.f32.mrf.mxu0
    %v2190 = vadd.f32 %v2072, %v2189
    %2191 = vmatprep.mubr.f32.mxu0 0.0
    %2192 = vmatmul.mubr.f32.gmra.mxu0 %v1998
    %v2193 = vpop.f32.mrf.mxu0
    %v2194 = vadd.f32 %v2068, %v2193
    %v2195 = vpop.f32.mrf.mxu0
    %v2196 = vadd.f32 %v2072, %v2195
    %2197 = vdwg.mxu0
    %2198 = vmatprep.subr.mxu0 %v2062
    %2199 = vmatpush1.msra.mxu0 %v2061
    %2200 = vmatprep.subr.mxu0 %v2058
    %2201 = vmatpush1.msra.mxu0 %v2057
    %2202 = vmatprep.subr.mxu0 %v2054
    %2203 = vmatpush1.msra.mxu0 %v2053
    %2204 = vmatprep.subr.mxu0 %v2050
    %2205 = vmatpush1.msra.mxu0 %v2049
    %2206 = vmatprep.subr.mxu0 %v2046
    %2207 = vmatpush1.msra.mxu0 %v2045
    %2208 = vmatprep.subr.mxu0 %v2042
    %2209 = vmatpush1.msra.mxu0 %v2041
    %2210 = vmatprep.subr.mxu0 %v2038
    %2211 = vmatpush1.msra.mxu0 %v2037
    %2212 = vmatprep.subr.mxu0 %v2034
    %2213 = vmatpush1.msra.mxu0 %v2033
    %2214 = vmatprep.subr.mxu0 %v2030
    %2215 = vmatpush1.msra.mxu0 %v2029
    %2216 = vmatprep.subr.mxu0 %v2026
    %2217 = vmatpush1.msra.mxu0 %v2025
    %2218 = vmatprep.subr.mxu0 %v2022
    %2219 = vmatpush1.msra.mxu0 %v2021
    %2220 = vmatprep.subr.mxu0 %v2018
    %2221 = vmatpush1.msra.mxu0 %v2017
    %2222 = vmatprep.subr.mxu0 %v2014
    %2223 = vmatpush1.msra.mxu0 %v2013
    %2224 = vmatprep.subr.mxu0 %v2010
    %2225 = vmatpush1.msra.mxu0 %v2009
    %2226 = vmatprep.subr.mxu0 %v2006
    %2227 = vmatpush1.msra.mxu0 %v2005
    %2228 = vmatprep.subr.mxu0 %v2002
    %2229 = vmatpush1.msra.mxu0 %v2001
    %2230 = vmatprep.subr.mxu0 0.0
    %2231 = vmatpush2.msra.mxu0 0.0
    %2232 = vmatprep.subr.mxu0 0.0
    %2233 = vmatpush2.msra.mxu0 0.0
    %2234 = vmatprep.subr.mxu0 0.0
    %2235 = vmatpush2.msra.mxu0 0.0
    %2236 = vmatprep.subr.mxu0 0.0
    %2237 = vmatpush2.msra.mxu0 0.0
    %2238 = vmatprep.subr.mxu0 0.0
    %2239 = vmatpush2.msra.mxu0 0.0
    %2240 = vmatprep.subr.mxu0 0.0
    %2241 = vmatpush2.msra.mxu0 0.0
    %2242 = vmatprep.subr.mxu0 0.0
    %2243 = vmatpush2.msra.mxu0 0.0
    %2244 = vmatprep.subr.mxu0 0.0
    %2245 = vmatpush2.msra.mxu0 0.0
    %2246 = vmatprep.subr.mxu0 0.0
    %2247 = vmatpush2.msra.mxu0 0.0
    %2248 = vmatprep.subr.mxu0 0.0
    %2249 = vmatpush2.msra.mxu0 0.0
    %2250 = vmatprep.subr.mxu0 0.0
    %2251 = vmatpush2.msra.mxu0 0.0
    %2252 = vmatprep.subr.mxu0 0.0
    %2253 = vmatpush2.msra.mxu0 0.0
    %2254 = vmatprep.subr.mxu0 0.0
    %2255 = vmatpush2.msra.mxu0 0.0
    %2256 = vmatprep.subr.mxu0 0.0
    %2257 = vmatpush2.msra.mxu0 0.0
    %2258 = vmatprep.subr.mxu0 0.0
    %2259 = vmatpush2.msra.mxu0 0.0
    %2260 = vmatprep.subr.mxu0 0.0
    %2261 = vmatpush2.msra.mxu0 0.0
    %2262 = vmatprep.mubr.f32.mxu0 0.0
    %2263 = vmatmul.mubr.f32.gmra.mxu0 %v1991
    %v2264 = vpop.f32.mrf.mxu0
    %v2265 = vadd.f32 %v2076, %v2264
    %v2266 = vpop.f32.mrf.mxu0
    %v2267 = vadd.f32 %v2080, %v2266
    %2268 = vmatprep.mubr.f32.mxu0 0.0
    %2269 = vmatmul.mubr.f32.gmra.mxu0 %v1992
    %v2270 = vpop.f32.mrf.mxu0
    %v2271 = vadd.f32 %v2076, %v2270
    %v2272 = vpop.f32.mrf.mxu0
    %v2273 = vadd.f32 %v2080, %v2272
    %2274 = vmatprep.mubr.f32.mxu0 0.0
    %2275 = vmatmul.mubr.f32.gmra.mxu0 %v1993
    %v2276 = vpop.f32.mrf.mxu0
    %v2277 = vadd.f32 %v2076, %v2276
    %v2278 = vpop.f32.mrf.mxu0
    %v2279 = vadd.f32 %v2080, %v2278
    %2280 = vmatprep.mubr.f32.mxu0 0.0
    %2281 = vmatmul.mubr.f32.gmra.mxu0 %v1994
    %v2282 = vpop.f32.mrf.mxu0
    %v2283 = vadd.f32 %v2076, %v2282
    %v2284 = vpop.f32.mrf.mxu0
    %v2285 = vadd.f32 %v2080, %v2284
    %2286 = vmatprep.mubr.f32.mxu0 0.0
    %2287 = vmatmul.mubr.f32.gmra.mxu0 %v1995
    %v2288 = vpop.f32.mrf.mxu0
    %v2289 = vadd.f32 %v2076, %v2288
    %v2290 = vpop.f32.mrf.mxu0
    %v2291 = vadd.f32 %v2080, %v2290
    %2292 = vmatprep.mubr.f32.mxu0 0.0
    %2293 = vmatmul.mubr.f32.gmra.mxu0 %v1996
    %v2294 = vpop.f32.mrf.mxu0
    %v2295 = vadd.f32 %v2076, %v2294
    %v2296 = vpop.f32.mrf.mxu0
    %v2297 = vadd.f32 %v2080, %v2296
    %2298 = vmatprep.mubr.f32.mxu0 0.0
    %2299 = vmatmul.mubr.f32.gmra.mxu0 %v1997
    %v2300 = vpop.f32.mrf.mxu0
    %v2301 = vadd.f32 %v2076, %v2300
    %v2302 = vpop.f32.mrf.mxu0
    %v2303 = vadd.f32 %v2080, %v2302
    %2304 = vmatprep.mubr.f32.mxu0 0.0
    %2305 = vmatmul.mubr.f32.gmra.mxu0 %v1998
    %v2306 = vpop.f32.mrf.mxu0
    %v2307 = vadd.f32 %v2076, %v2306
    %v2308 = vpop.f32.mrf.mxu0
    %v2309 = vadd.f32 %v2080, %v2308
    %2310 = vdwg.mxu0
    %2311 = vst [vmem:[#allocation3] sm:$0xff] %v2152
    %2312 = vst [vmem:[#allocation3 + $0x8] sm:$0xff] %v2154
    %2313 = vst [vmem:[#allocation3 + $0x10] sm:$0xff] %v2265
    %2314 = vst [vmem:[#allocation3 + $0x18] sm:$0xff] %v2267
    %2315 = vst [vmem:[#allocation3 + $0x20] sm:$0xff] %v2158
    %2316 = vst [vmem:[#allocation3 + $0x28] sm:$0xff] %v2160
    %2317 = vst [vmem:[#allocation3 + $0x30] sm:$0xff] %v2271
    %2318 = vst [vmem:[#allocation3 + $0x38] sm:$0xff] %v2273
    %2319 = vst [vmem:[#allocation3 + $0x40] sm:$0xff] %v2164
    %2320 = vst [vmem:[#allocation3 + $0x48] sm:$0xff] %v2166
    %2321 = vst [vmem:[#allocation3 + $0x50] sm:$0xff] %v2277
    %2322 = vst [vmem:[#allocation3 + $0x58] sm:$0xff] %v2279
    %2323 = vst [vmem:[#allocation3 + $0x60] sm:$0xff] %v2170
    %2324 = vst [vmem:[#allocation3 + $0x68] sm:$0xff] %v2172
    %2325 = vst [vmem:[#allocation3 + $0x70] sm:$0xff] %v2283
    %2326 = vst [vmem:[#allocation3 + $0x78] sm:$0xff] %v2285
    %2327 = vst [vmem:[#allocation3 + $0x80] sm:$0xff] %v2176
    %2328 = vst [vmem:[#allocation3 + $0x88] sm:$0xff] %v2178
    %2329 = vst [vmem:[#allocation3 + $0x90] sm:$0xff] %v2289
    %2330 = vst [vmem:[#allocation3 + $0x98] sm:$0xff] %v2291
    %2331 = vst [vmem:[#allocation3 + $0xa0] sm:$0xff] %v2182
    %2332 = vst [vmem:[#allocation3 + $0xa8] sm:$0xff] %v2184
    %2333 = vst [vmem:[#allocation3 + $0xb0] sm:$0xff] %v2295
    %2334 = vst [vmem:[#allocation3 + $0xb8] sm:$0xff] %v2297
    %2335 = vst [vmem:[#allocation3 + $0xc0] sm:$0xff] %v2188
    %2336 = vst [vmem:[#allocation3 + $0xc8] sm:$0xff] %v2190
    %2337 = vst [vmem:[#allocation3 + $0xd0] sm:$0xff] %v2301
    %2338 = vst [vmem:[#allocation3 + $0xd8] sm:$0xff] %v2303
    %2339 = vst [vmem:[#allocation3 + $0xe0] sm:$0xff] %v2194
    %2340 = vst [vmem:[#allocation3 + $0xe8] sm:$0xff] %v2196
    %2341 = vst [vmem:[#allocation3 + $0xf0] sm:$0xff] %v2307
    %2342 = vst [vmem:[#allocation3 + $0xf8] sm:$0xff] %v2309
    %v2343 = vld [vmem:[#allocation3] sm:$0xff]
    %v2344 = vld [vmem:[#allocation3 + $0x8] sm:$0xff]
    %v2345 = vld [vmem:[#allocation3 + $0x10] sm:$0xff]
    %v2346 = vld [vmem:[#allocation3 + $0x18] sm:$0xff]
    %s2347 = scalar_lea.vmem [#allocation7], 512
    %v2348 = vld [vmem:[%s2347] sm:$0xff]
    %v2349 = vld [vmem:[%s2347 + $0x8] sm:$0xff]
    %v2350 = vld [vmem:[%s2347 + $0x10] sm:$0xff]
    %v2351 = vld [vmem:[%s2347 + $0x18] sm:$0xff]
    %v2352 = vld [vmem:[%s2347 + $0x20] sm:$0xff]
    %v2353 = vld [vmem:[%s2347 + $0x28] sm:$0xff]
    %v2354 = vld [vmem:[%s2347 + $0x30] sm:$0xff]
    %v2355 = vld [vmem:[%s2347 + $0x38] sm:$0xff]
    %v2356 = vld [vmem:[%s2347 + $0x40] sm:$0xff]
    %v2357 = vld [vmem:[%s2347 + $0x48] sm:$0xff]
    %v2358 = vld [vmem:[%s2347 + $0x50] sm:$0xff]
    %v2359 = vld [vmem:[%s2347 + $0x58] sm:$0xff]
    %v2360 = vld [vmem:[%s2347 + $0x60] sm:$0xff]
    %v2361 = vld [vmem:[%s2347 + $0x68] sm:$0xff]
    %v2362 = vld [vmem:[%s2347 + $0x70] sm:$0xff]
    %v2363 = vld [vmem:[%s2347 + $0x78] sm:$0xff]
    %v2364 = vld [vmem:[%s2347 + $0x80] sm:$0xff]
    %v2365 = vld [vmem:[%s2347 + $0x88] sm:$0xff]
    %v2366 = vld [vmem:[%s2347 + $0x90] sm:$0xff]
    %v2367 = vld [vmem:[%s2347 + $0x98] sm:$0xff]
    %v2368 = vld [vmem:[%s2347 + $0xa0] sm:$0xff]
    %v2369 = vld [vmem:[%s2347 + $0xa8] sm:$0xff]
    %v2370 = vld [vmem:[%s2347 + $0xb0] sm:$0xff]
    %v2371 = vld [vmem:[%s2347 + $0xb8] sm:$0xff]
    %v2372 = vld [vmem:[%s2347 + $0xc0] sm:$0xff]
    %v2373 = vld [vmem:[%s2347 + $0xc8] sm:$0xff]
    %v2374 = vld [vmem:[%s2347 + $0xd0] sm:$0xff]
    %v2375 = vld [vmem:[%s2347 + $0xd8] sm:$0xff]
    %v2376 = vld [vmem:[%s2347 + $0xe0] sm:$0xff]
    %v2377 = vld [vmem:[%s2347 + $0xe8] sm:$0xff]
    %v2378 = vld [vmem:[%s2347 + $0xf0] sm:$0xff]
    %v2379 = vld [vmem:[%s2347 + $0xf8] sm:$0xff]
    %v2380 = vld [vmem:[%s2347 + $0x100] sm:$0xff]
    %v2381 = vld [vmem:[%s2347 + $0x108] sm:$0xff]
    %v2382 = vld [vmem:[%s2347 + $0x110] sm:$0xff]
    %v2383 = vld [vmem:[%s2347 + $0x118] sm:$0xff]
    %v2384 = vld [vmem:[%s2347 + $0x120] sm:$0xff]
    %v2385 = vld [vmem:[%s2347 + $0x128] sm:$0xff]
    %v2386 = vld [vmem:[%s2347 + $0x130] sm:$0xff]
    %v2387 = vld [vmem:[%s2347 + $0x138] sm:$0xff]
    %v2388 = vld [vmem:[%s2347 + $0x140] sm:$0xff]
    %v2389 = vld [vmem:[%s2347 + $0x148] sm:$0xff]
    %v2390 = vld [vmem:[%s2347 + $0x150] sm:$0xff]
    %v2391 = vld [vmem:[%s2347 + $0x158] sm:$0xff]
    %v2392 = vld [vmem:[%s2347 + $0x160] sm:$0xff]
    %v2393 = vld [vmem:[%s2347 + $0x168] sm:$0xff]
    %v2394 = vld [vmem:[%s2347 + $0x170] sm:$0xff]
    %v2395 = vld [vmem:[%s2347 + $0x178] sm:$0xff]
    %v2396 = vld [vmem:[%s2347 + $0x180] sm:$0xff]
    %v2397 = vld [vmem:[%s2347 + $0x188] sm:$0xff]
    %v2398 = vld [vmem:[%s2347 + $0x190] sm:$0xff]
    %v2399 = vld [vmem:[%s2347 + $0x198] sm:$0xff]
    %v2400 = vld [vmem:[%s2347 + $0x1a0] sm:$0xff]
    %v2401 = vld [vmem:[%s2347 + $0x1a8] sm:$0xff]
    %v2402 = vld [vmem:[%s2347 + $0x1b0] sm:$0xff]
    %v2403 = vld [vmem:[%s2347 + $0x1b8] sm:$0xff]
    %v2404 = vld [vmem:[%s2347 + $0x1c0] sm:$0xff]
    %v2405 = vld [vmem:[%s2347 + $0x1c8] sm:$0xff]
    %v2406 = vld [vmem:[%s2347 + $0x1d0] sm:$0xff]
    %v2407 = vld [vmem:[%s2347 + $0x1d8] sm:$0xff]
    %v2408 = vld [vmem:[%s2347 + $0x1e0] sm:$0xff]
    %v2409 = vld [vmem:[%s2347 + $0x1e8] sm:$0xff]
    %v2410 = vld [vmem:[%s2347 + $0x1f0] sm:$0xff]
    %v2411 = vld [vmem:[%s2347 + $0x1f8] sm:$0xff]
    %2412 = vmatprep.subr.mxu0 %v2409
    %2413 = vmatpush1.msra.mxu0 %v2408
    %2414 = vmatprep.subr.mxu0 %v2405
    %2415 = vmatpush1.msra.mxu0 %v2404
    %2416 = vmatprep.subr.mxu0 %v2401
    %2417 = vmatpush1.msra.mxu0 %v2400
    %2418 = vmatprep.subr.mxu0 %v2397
    %2419 = vmatpush1.msra.mxu0 %v2396
    %2420 = vmatprep.subr.mxu0 %v2393
    %2421 = vmatpush1.msra.mxu0 %v2392
    %2422 = vmatprep.subr.mxu0 %v2389
    %2423 = vmatpush1.msra.mxu0 %v2388
    %2424 = vmatprep.subr.mxu0 %v2385
    %2425 = vmatpush1.msra.mxu0 %v2384
    %2426 = vmatprep.subr.mxu0 %v2381
    %2427 = vmatpush1.msra.mxu0 %v2380
    %2428 = vmatprep.subr.mxu0 %v2377
    %2429 = vmatpush1.msra.mxu0 %v2376
    %2430 = vmatprep.subr.mxu0 %v2373
    %2431 = vmatpush1.msra.mxu0 %v2372
    %2432 = vmatprep.subr.mxu0 %v2369
    %2433 = vmatpush1.msra.mxu0 %v2368
    %2434 = vmatprep.subr.mxu0 %v2365
    %2435 = vmatpush1.msra.mxu0 %v2364
    %2436 = vmatprep.subr.mxu0 %v2361
    %2437 = vmatpush1.msra.mxu0 %v2360
    %2438 = vmatprep.subr.mxu0 %v2357
    %2439 = vmatpush1.msra.mxu0 %v2356
    %2440 = vmatprep.subr.mxu0 %v2353
    %2441 = vmatpush1.msra.mxu0 %v2352
    %2442 = vmatprep.subr.mxu0 %v2349
    %2443 = vmatpush1.msra.mxu0 %v2348
    %2444 = vmatprep.subr.mxu0 0.0
    %2445 = vmatpush2.msra.mxu0 0.0
    %2446 = vmatprep.subr.mxu0 0.0
    %2447 = vmatpush2.msra.mxu0 0.0
    %2448 = vmatprep.subr.mxu0 0.0
    %2449 = vmatpush2.msra.mxu0 0.0
    %2450 = vmatprep.subr.mxu0 0.0
    %2451 = vmatpush2.msra.mxu0 0.0
    %2452 = vmatprep.subr.mxu0 0.0
    %2453 = vmatpush2.msra.mxu0 0.0
    %2454 = vmatprep.subr.mxu0 0.0
    %2455 = vmatpush2.msra.mxu0 0.0
    %2456 = vmatprep.subr.mxu0 0.0
    %2457 = vmatpush2.msra.mxu0 0.0
    %2458 = vmatprep.subr.mxu0 0.0
    %2459 = vmatpush2.msra.mxu0 0.0
    %2460 = vmatprep.subr.mxu0 0.0
    %2461 = vmatpush2.msra.mxu0 0.0
    %2462 = vmatprep.subr.mxu0 0.0
    %2463 = vmatpush2.msra.mxu0 0.0
    %2464 = vmatprep.subr.mxu0 0.0
    %2465 = vmatpush2.msra.mxu0 0.0
    %2466 = vmatprep.subr.mxu0 0.0
    %2467 = vmatpush2.msra.mxu0 0.0
    %2468 = vmatprep.subr.mxu0 0.0
    %2469 = vmatpush2.msra.mxu0 0.0
    %2470 = vmatprep.subr.mxu0 0.0
    %2471 = vmatpush2.msra.mxu0 0.0
    %2472 = vmatprep.subr.mxu0 0.0
    %2473 = vmatpush2.msra.mxu0 0.0
    %2474 = vmatprep.subr.mxu0 0.0
    %2475 = vmatpush2.msra.mxu0 0.0
    %2476 = vmatprep.mubr.f32.mxu0 0.0
    %2477 = vmatmul.mubr.f32.gmra.mxu0 0.0
    %v2478 = vpop.f32.mrf.mxu0
    %v2479 = vadd.f32 0.0, %v2478
    %v2480 = vpop.f32.mrf.mxu0
    %v2481 = vadd.f32 0.0, %v2480
    %2482 = vdwg.mxu0
    %2483 = vmatprep.subr.mxu0 %v2411
    %2484 = vmatpush1.msra.mxu0 %v2410
    %2485 = vmatprep.subr.mxu0 %v2407
    %2486 = vmatpush1.msra.mxu0 %v2406
    %2487 = vmatprep.subr.mxu0 %v2403
    %2488 = vmatpush1.msra.mxu0 %v2402
    %2489 = vmatprep.subr.mxu0 %v2399
    %2490 = vmatpush1.msra.mxu0 %v2398
    %2491 = vmatprep.subr.mxu0 %v2395
    %2492 = vmatpush1.msra.mxu0 %v2394
    %2493 = vmatprep.subr.mxu0 %v2391
    %2494 = vmatpush1.msra.mxu0 %v2390
    %2495 = vmatprep.subr.mxu0 %v2387
    %2496 = vmatpush1.msra.mxu0 %v2386
    %2497 = vmatprep.subr.mxu0 %v2383
    %2498 = vmatpush1.msra.mxu0 %v2382
    %2499 = vmatprep.subr.mxu0 %v2379
    %2500 = vmatpush1.msra.mxu0 %v2378
    %2501 = vmatprep.subr.mxu0 %v2375
    %2502 = vmatpush1.msra.mxu0 %v2374
    %2503 = vmatprep.subr.mxu0 %v2371
    %2504 = vmatpush1.msra.mxu0 %v2370
    %2505 = vmatprep.subr.mxu0 %v2367
    %2506 = vmatpush1.msra.mxu0 %v2366
    %2507 = vmatprep.subr.mxu0 %v2363
    %2508 = vmatpush1.msra.mxu0 %v2362
    %2509 = vmatprep.subr.mxu0 %v2359
    %2510 = vmatpush1.msra.mxu0 %v2358
    %2511 = vmatprep.subr.mxu0 %v2355
    %2512 = vmatpush1.msra.mxu0 %v2354
    %2513 = vmatprep.subr.mxu0 %v2351
    %2514 = vmatpush1.msra.mxu0 %v2350
    %2515 = vmatprep.subr.mxu0 0.0
    %2516 = vmatpush2.msra.mxu0 0.0
    %2517 = vmatprep.subr.mxu0 0.0
    %2518 = vmatpush2.msra.mxu0 0.0
    %2519 = vmatprep.subr.mxu0 0.0
    %2520 = vmatpush2.msra.mxu0 0.0
    %2521 = vmatprep.subr.mxu0 0.0
    %2522 = vmatpush2.msra.mxu0 0.0
    %2523 = vmatprep.subr.mxu0 0.0
    %2524 = vmatpush2.msra.mxu0 0.0
    %2525 = vmatprep.subr.mxu0 0.0
    %2526 = vmatpush2.msra.mxu0 0.0
    %2527 = vmatprep.subr.mxu0 0.0
    %2528 = vmatpush2.msra.mxu0 0.0
    %2529 = vmatprep.subr.mxu0 0.0
    %2530 = vmatpush2.msra.mxu0 0.0
    %2531 = vmatprep.subr.mxu0 0.0
    %2532 = vmatpush2.msra.mxu0 0.0
    %2533 = vmatprep.subr.mxu0 0.0
    %2534 = vmatpush2.msra.mxu0 0.0
    %2535 = vmatprep.subr.mxu0 0.0
    %2536 = vmatpush2.msra.mxu0 0.0
    %2537 = vmatprep.subr.mxu0 0.0
    %2538 = vmatpush2.msra.mxu0 0.0
    %2539 = vmatprep.subr.mxu0 0.0
    %2540 = vmatpush2.msra.mxu0 0.0
    %2541 = vmatprep.subr.mxu0 0.0
    %2542 = vmatpush2.msra.mxu0 0.0
    %2543 = vmatprep.subr.mxu0 0.0
    %2544 = vmatpush2.msra.mxu0 0.0
    %2545 = vmatprep.subr.mxu0 0.0
    %2546 = vmatpush2.msra.mxu0 0.0
    %2547 = vmatprep.mubr.f32.mxu0 0.0
    %2548 = vmatmul.mubr.f32.gmra.mxu0 0.0
    %v2549 = vpop.f32.mrf.mxu0
    %v2550 = vadd.f32 0.0, %v2549
    %v2551 = vpop.f32.mrf.mxu0
    %v2552 = vadd.f32 0.0, %v2551
    %2553 = vdwg.mxu0
    %v2554 = vadd.f32 %v2343, %v2479
    %v2555 = vadd.f32 %v2344, %v2481
    %v2556 = vadd.f32 %v2345, %v2550
    %v2557 = vadd.f32 %v2346, %v2552
    %v2558 = vxor.u32 %v2554, 2147483648
    %v2559 = vmul.f32 %v2558, 1.442695
    %v2560 = vpow.pop %v2559
    %v2561 = vadd.f32 %v2560, 1.0
    %v2562 = vrcp.pop %v2561
    %v2563 = vmul.f32 1.0, %v2562
    %v2564 = vxor.u32 %v2555, 2147483648
    %v2565 = vmul.f32 %v2564, 1.442695
    %v2566 = vpow.pop %v2565
    %v2567 = vadd.f32 %v2566, 1.0
    %v2568 = vrcp.pop %v2567
    %v2569 = vmul.f32 1.0, %v2568
    %v2570 = vtanh.pop %v2556
    %v2571 = vxor.u32 %v2557, 2147483648
    %v2572 = vmul.f32 %v2571, 1.442695
    %v2573 = vpow.pop %v2572
    %v2574 = vadd.f32 %v2573, 1.0
    %v2575 = vrcp.pop %v2574
    %v2576 = vmul.f32 1.0, %v2575
    %v2577 = vmul.f32 %v2569, 0.0
    %v2578 = vmul.f32 %v2563, %v2570
    %v2579 = vadd.f32 %v2577, %v2578
    %v2580 = vtanh.pop %v2579
    %v2581 = vmul.f32 %v2576, %v2580
    %2582 = vst [vmem:[#allocation10] sm:$0xff] %v2581
    %s2583 = scalar_lea.vmem [#allocation3], 32
    %v2584 = vld [vmem:[%s2583] sm:$0xff]
    %v2585 = vld [vmem:[%s2583 + $0x8] sm:$0xff]
    %v2586 = vld [vmem:[%s2583 + $0x10] sm:$0xff]
    %v2587 = vld [vmem:[%s2583 + $0x18] sm:$0xff]
    %v2588 = vld [vmem:[%s2347] sm:$0xff]
    %v2589 = vld [vmem:[%s2347 + $0x8] sm:$0xff]
    %v2590 = vld [vmem:[%s2347 + $0x10] sm:$0xff]
    %v2591 = vld [vmem:[%s2347 + $0x18] sm:$0xff]
    %v2592 = vld [vmem:[%s2347 + $0x20] sm:$0xff]
    %v2593 = vld [vmem:[%s2347 + $0x28] sm:$0xff]
    %v2594 = vld [vmem:[%s2347 + $0x30] sm:$0xff]
    %v2595 = vld [vmem:[%s2347 + $0x38] sm:$0xff]
    %v2596 = vld [vmem:[%s2347 + $0x40] sm:$0xff]
    %v2597 = vld [vmem:[%s2347 + $0x48] sm:$0xff]
    %v2598 = vld [vmem:[%s2347 + $0x50] sm:$0xff]
    %v2599 = vld [vmem:[%s2347 + $0x58] sm:$0xff]
    %v2600 = vld [vmem:[%s2347 + $0x60] sm:$0xff]
    %v2601 = vld [vmem:[%s2347 + $0x68] sm:$0xff]
    %v2602 = vld [vmem:[%s2347 + $0x70] sm:$0xff]
    %v2603 = vld [vmem:[%s2347 + $0x78] sm:$0xff]
    %v2604 = vld [vmem:[%s2347 + $0x80] sm:$0xff]
    %v2605 = vld [vmem:[%s2347 + $0x88] sm:$0xff]
    %v2606 = vld [vmem:[%s2347 + $0x90] sm:$0xff]
    %v2607 = vld [vmem:[%s2347 + $0x98] sm:$0xff]
    %v2608 = vld [vmem:[%s2347 + $0xa0] sm:$0xff]
    %v2609 = vld [vmem:[%s2347 + $0xa8] sm:$0xff]
    %v2610 = vld [vmem:[%s2347 + $0xb0] sm:$0xff]
    %v2611 = vld [vmem:[%s2347 + $0xb8] sm:$0xff]
    %v2612 = vld [vmem:[%s2347 + $0xc0] sm:$0xff]
    %v2613 = vld [vmem:[%s2347 + $0xc8] sm:$0xff]
    %v2614 = vld [vmem:[%s2347 + $0xd0] sm:$0xff]
    %v2615 = vld [vmem:[%s2347 + $0xd8] sm:$0xff]
    %v2616 = vld [vmem:[%s2347 + $0xe0] sm:$0xff]
    %v2617 = vld [vmem:[%s2347 + $0xe8] sm:$0xff]
    %v2618 = vld [vmem:[%s2347 + $0xf0] sm:$0xff]
    %v2619 = vld [vmem:[%s2347 + $0xf8] sm:$0xff]
    %v2620 = vld [vmem:[%s2347 + $0x100] sm:$0xff]
    %v2621 = vld [vmem:[%s2347 + $0x108] sm:$0xff]
    %v2622 = vld [vmem:[%s2347 + $0x110] sm:$0xff]
    %v2623 = vld [vmem:[%s2347 + $0x118] sm:$0xff]
    %v2624 = vld [vmem:[%s2347 + $0x120] sm:$0xff]
    %v2625 = vld [vmem:[%s2347 + $0x128] sm:$0xff]
    %v2626 = vld [vmem:[%s2347 + $0x130] sm:$0xff]
    %v2627 = vld [vmem:[%s2347 + $0x138] sm:$0xff]
    %v2628 = vld [vmem:[%s2347 + $0x140] sm:$0xff]
    %v2629 = vld [vmem:[%s2347 + $0x148] sm:$0xff]
    %v2630 = vld [vmem:[%s2347 + $0x150] sm:$0xff]
    %v2631 = vld [vmem:[%s2347 + $0x158] sm:$0xff]
    %v2632 = vld [vmem:[%s2347 + $0x160] sm:$0xff]
    %v2633 = vld [vmem:[%s2347 + $0x168] sm:$0xff]
    %v2634 = vld [vmem:[%s2347 + $0x170] sm:$0xff]
    %v2635 = vld [vmem:[%s2347 + $0x178] sm:$0xff]
    %v2636 = vld [vmem:[%s2347 + $0x180] sm:$0xff]
    %v2637 = vld [vmem:[%s2347 + $0x188] sm:$0xff]
    %v2638 = vld [vmem:[%s2347 + $0x190] sm:$0xff]
    %v2639 = vld [vmem:[%s2347 + $0x198] sm:$0xff]
    %v2640 = vld [vmem:[%s2347 + $0x1a0] sm:$0xff]
    %v2641 = vld [vmem:[%s2347 + $0x1a8] sm:$0xff]
    %v2642 = vld [vmem:[%s2347 + $0x1b0] sm:$0xff]
    %v2643 = vld [vmem:[%s2347 + $0x1b8] sm:$0xff]
    %v2644 = vld [vmem:[%s2347 + $0x1c0] sm:$0xff]
    %v2645 = vld [vmem:[%s2347 + $0x1c8] sm:$0xff]
    %v2646 = vld [vmem:[%s2347 + $0x1d0] sm:$0xff]
    %v2647 = vld [vmem:[%s2347 + $0x1d8] sm:$0xff]
    %v2648 = vld [vmem:[%s2347 + $0x1e0] sm:$0xff]
    %v2649 = vld [vmem:[%s2347 + $0x1e8] sm:$0xff]
    %v2650 = vld [vmem:[%s2347 + $0x1f0] sm:$0xff]
    %v2651 = vld [vmem:[%s2347 + $0x1f8] sm:$0xff]
    %2652 = vmatprep.subr.mxu0 %v2649
    %2653 = vmatpush1.msra.mxu0 %v2648
    %2654 = vmatprep.subr.mxu0 %v2645
    %2655 = vmatpush1.msra.mxu0 %v2644
    %2656 = vmatprep.subr.mxu0 %v2641
    %2657 = vmatpush1.msra.mxu0 %v2640
    %2658 = vmatprep.subr.mxu0 %v2637
    %2659 = vmatpush1.msra.mxu0 %v2636
    %2660 = vmatprep.subr.mxu0 %v2633
    %2661 = vmatpush1.msra.mxu0 %v2632
    %2662 = vmatprep.subr.mxu0 %v2629
    %2663 = vmatpush1.msra.mxu0 %v2628
    %2664 = vmatprep.subr.mxu0 %v2625
    %2665 = vmatpush1.msra.mxu0 %v2624
    %2666 = vmatprep.subr.mxu0 %v2621
    %2667 = vmatpush1.msra.mxu0 %v2620
    %2668 = vmatprep.subr.mxu0 %v2617
    %2669 = vmatpush1.msra.mxu0 %v2616
    %2670 = vmatprep.subr.mxu0 %v2613
    %2671 = vmatpush1.msra.mxu0 %v2612
    %2672 = vmatprep.subr.mxu0 %v2609
    %2673 = vmatpush1.msra.mxu0 %v2608
    %2674 = vmatprep.subr.mxu0 %v2605
    %2675 = vmatpush1.msra.mxu0 %v2604
    %2676 = vmatprep.subr.mxu0 %v2601
    %2677 = vmatpush1.msra.mxu0 %v2600
    %2678 = vmatprep.subr.mxu0 %v2597
    %2679 = vmatpush1.msra.mxu0 %v2596
    %2680 = vmatprep.subr.mxu0 %v2593
    %2681 = vmatpush1.msra.mxu0 %v2592
    %2682 = vmatprep.subr.mxu0 %v2589
    %2683 = vmatpush1.msra.mxu0 %v2588
    %2684 = vmatprep.subr.mxu0 0.0
    %2685 = vmatpush2.msra.mxu0 0.0
    %2686 = vmatprep.subr.mxu0 0.0
    %2687 = vmatpush2.msra.mxu0 0.0
    %2688 = vmatprep.subr.mxu0 0.0
    %2689 = vmatpush2.msra.mxu0 0.0
    %2690 = vmatprep.subr.mxu0 0.0
    %2691 = vmatpush2.msra.mxu0 0.0
    %2692 = vmatprep.subr.mxu0 0.0
    %2693 = vmatpush2.msra.mxu0 0.0
    %2694 = vmatprep.subr.mxu0 0.0
    %2695 = vmatpush2.msra.mxu0 0.0
    %2696 = vmatprep.subr.mxu0 0.0
    %2697 = vmatpush2.msra.mxu0 0.0
    %2698 = vmatprep.subr.mxu0 0.0
    %2699 = vmatpush2.msra.mxu0 0.0
    %2700 = vmatprep.subr.mxu0 0.0
    %2701 = vmatpush2.msra.mxu0 0.0
    %2702 = vmatprep.subr.mxu0 0.0
    %2703 = vmatpush2.msra.mxu0 0.0
    %2704 = vmatprep.subr.mxu0 0.0
    %2705 = vmatpush2.msra.mxu0 0.0
    %2706 = vmatprep.subr.mxu0 0.0
    %2707 = vmatpush2.msra.mxu0 0.0
    %2708 = vmatprep.subr.mxu0 0.0
    %2709 = vmatpush2.msra.mxu0 0.0
    %2710 = vmatprep.subr.mxu0 0.0
    %2711 = vmatpush2.msra.mxu0 0.0
    %2712 = vmatprep.subr.mxu0 0.0
    %2713 = vmatpush2.msra.mxu0 0.0
    %2714 = vmatprep.subr.mxu0 0.0
    %2715 = vmatpush2.msra.mxu0 0.0
    %2716 = vmatprep.mubr.f32.mxu0 0.0
    %2717 = vmatmul.mubr.f32.gmra.mxu0 %v2581
    %v2718 = vpop.f32.mrf.mxu0
    %v2719 = vadd.f32 0.0, %v2718
    %v2720 = vpop.f32.mrf.mxu0
    %v2721 = vadd.f32 0.0, %v2720
    %2722 = vdwg.mxu0
    %2723 = vmatprep.subr.mxu0 %v2651
    %2724 = vmatpush1.msra.mxu0 %v2650
    %2725 = vmatprep.subr.mxu0 %v2647
    %2726 = vmatpush1.msra.mxu0 %v2646
    %2727 = vmatprep.subr.mxu0 %v2643
    %2728 = vmatpush1.msra.mxu0 %v2642
    %2729 = vmatprep.subr.mxu0 %v2639
    %2730 = vmatpush1.msra.mxu0 %v2638
    %2731 = vmatprep.subr.mxu0 %v2635
    %2732 = vmatpush1.msra.mxu0 %v2634
    %2733 = vmatprep.subr.mxu0 %v2631
    %2734 = vmatpush1.msra.mxu0 %v2630
    %2735 = vmatprep.subr.mxu0 %v2627
    %2736 = vmatpush1.msra.mxu0 %v2626
    %2737 = vmatprep.subr.mxu0 %v2623
    %2738 = vmatpush1.msra.mxu0 %v2622
    %2739 = vmatprep.subr.mxu0 %v2619
    %2740 = vmatpush1.msra.mxu0 %v2618
    %2741 = vmatprep.subr.mxu0 %v2615
    %2742 = vmatpush1.msra.mxu0 %v2614
    %2743 = vmatprep.subr.mxu0 %v2611
    %2744 = vmatpush1.msra.mxu0 %v2610
    %2745 = vmatprep.subr.mxu0 %v2607
    %2746 = vmatpush1.msra.mxu0 %v2606
    %2747 = vmatprep.subr.mxu0 %v2603
    %2748 = vmatpush1.msra.mxu0 %v2602
    %2749 = vmatprep.subr.mxu0 %v2599
    %2750 = vmatpush1.msra.mxu0 %v2598
    %2751 = vmatprep.subr.mxu0 %v2595
    %2752 = vmatpush1.msra.mxu0 %v2594
    %2753 = vmatprep.subr.mxu0 %v2591
    %2754 = vmatpush1.msra.mxu0 %v2590
    %2755 = vmatprep.subr.mxu0 0.0
    %2756 = vmatpush2.msra.mxu0 0.0
    %2757 = vmatprep.subr.mxu0 0.0
    %2758 = vmatpush2.msra.mxu0 0.0
    %2759 = vmatprep.subr.mxu0 0.0
    %2760 = vmatpush2.msra.mxu0 0.0
    %2761 = vmatprep.subr.mxu0 0.0
    %2762 = vmatpush2.msra.mxu0 0.0
    %2763 = vmatprep.subr.mxu0 0.0
    %2764 = vmatpush2.msra.mxu0 0.0
    %2765 = vmatprep.subr.mxu0 0.0
    %2766 = vmatpush2.msra.mxu0 0.0
    %2767 = vmatprep.subr.mxu0 0.0
    %2768 = vmatpush2.msra.mxu0 0.0
    %2769 = vmatprep.subr.mxu0 0.0
    %2770 = vmatpush2.msra.mxu0 0.0
    %2771 = vmatprep.subr.mxu0 0.0
    %2772 = vmatpush2.msra.mxu0 0.0
    %2773 = vmatprep.subr.mxu0 0.0
    %2774 = vmatpush2.msra.mxu0 0.0
    %2775 = vmatprep.subr.mxu0 0.0
    %2776 = vmatpush2.msra.mxu0 0.0
    %2777 = vmatprep.subr.mxu0 0.0
    %2778 = vmatpush2.msra.mxu0 0.0
    %2779 = vmatprep.subr.mxu0 0.0
    %2780 = vmatpush2.msra.mxu0 0.0
    %2781 = vmatprep.subr.mxu0 0.0
    %2782 = vmatpush2.msra.mxu0 0.0
    %2783 = vmatprep.subr.mxu0 0.0
    %2784 = vmatpush2.msra.mxu0 0.0
    %2785 = vmatprep.subr.mxu0 0.0
    %2786 = vmatpush2.msra.mxu0 0.0
    %2787 = vmatprep.mubr.f32.mxu0 0.0
    %2788 = vmatmul.mubr.f32.gmra.mxu0 %v2581
    %v2789 = vpop.f32.mrf.mxu0
    %v2790 = vadd.f32 0.0, %v2789
    %v2791 = vpop.f32.mrf.mxu0
    %v2792 = vadd.f32 0.0, %v2791
    %2793 = vdwg.mxu0
    %v2794 = vadd.f32 %v2584, %v2719
    %v2795 = vadd.f32 %v2585, %v2721
    %v2796 = vadd.f32 %v2586, %v2790
    %v2797 = vadd.f32 %v2587, %v2792
    %v2798 = vxor.u32 %v2794, 2147483648
    %v2799 = vmul.f32 %v2798, 1.442695
    %v2800 = vpow.pop %v2799
    %v2801 = vadd.f32 %v2800, 1.0
    %v2802 = vrcp.pop %v2801
    %v2803 = vmul.f32 1.0, %v2802
    %v2804 = vxor.u32 %v2795, 2147483648
    %v2805 = vmul.f32 %v2804, 1.442695
    %v2806 = vpow.pop %v2805
    %v2807 = vadd.f32 %v2806, 1.0
    %v2808 = vrcp.pop %v2807
    %v2809 = vmul.f32 1.0, %v2808
    %v2810 = vtanh.pop %v2796
    %v2811 = vxor.u32 %v2797, 2147483648
    %v2812 = vmul.f32 %v2811, 1.442695
    %v2813 = vpow.pop %v2812
    %v2814 = vadd.f32 %v2813, 1.0
    %v2815 = vrcp.pop %v2814
    %v2816 = vmul.f32 1.0, %v2815
    %v2817 = vmul.f32 %v2809, %v2579
    %v2818 = vmul.f32 %v2803, %v2810
    %v2819 = vadd.f32 %v2817, %v2818
    %v2820 = vtanh.pop %v2819
    %v2821 = vmul.f32 %v2816, %v2820
    %s2822 = scalar_lea.vmem [#allocation10], 8
    %2823 = vst [vmem:[%s2822] sm:$0xff] %v2821
    %s2824 = scalar_lea.vmem [#allocation3], 64
    %v2825 = vld [vmem:[%s2824] sm:$0xff]
    %v2826 = vld [vmem:[%s2824 + $0x8] sm:$0xff]
    %v2827 = vld [vmem:[%s2824 + $0x10] sm:$0xff]
    %v2828 = vld [vmem:[%s2824 + $0x18] sm:$0xff]
    %v2829 = vld [vmem:[%s2347] sm:$0xff]
    %v2830 = vld [vmem:[%s2347 + $0x8] sm:$0xff]
    %v2831 = vld [vmem:[%s2347 + $0x10] sm:$0xff]
    %v2832 = vld [vmem:[%s2347 + $0x18] sm:$0xff]
    %v2833 = vld [vmem:[%s2347 + $0x20] sm:$0xff]
    %v2834 = vld [vmem:[%s2347 + $0x28] sm:$0xff]
    %v2835 = vld [vmem:[%s2347 + $0x30] sm:$0xff]
    %v2836 = vld [vmem:[%s2347 + $0x38] sm:$0xff]
    %v2837 = vld [vmem:[%s2347 + $0x40] sm:$0xff]
    %v2838 = vld [vmem:[%s2347 + $0x48] sm:$0xff]
    %v2839 = vld [vmem:[%s2347 + $0x50] sm:$0xff]
    %v2840 = vld [vmem:[%s2347 + $0x58] sm:$0xff]
    %v2841 = vld [vmem:[%s2347 + $0x60] sm:$0xff]
    %v2842 = vld [vmem:[%s2347 + $0x68] sm:$0xff]
    %v2843 = vld [vmem:[%s2347 + $0x70] sm:$0xff]
    %v2844 = vld [vmem:[%s2347 + $0x78] sm:$0xff]
    %v2845 = vld [vmem:[%s2347 + $0x80] sm:$0xff]
    %v2846 = vld [vmem:[%s2347 + $0x88] sm:$0xff]
    %v2847 = vld [vmem:[%s2347 + $0x90] sm:$0xff]
    %v2848 = vld [vmem:[%s2347 + $0x98] sm:$0xff]
    %v2849 = vld [vmem:[%s2347 + $0xa0] sm:$0xff]
    %v2850 = vld [vmem:[%s2347 + $0xa8] sm:$0xff]
    %v2851 = vld [vmem:[%s2347 + $0xb0] sm:$0xff]
    %v2852 = vld [vmem:[%s2347 + $0xb8] sm:$0xff]
    %v2853 = vld [vmem:[%s2347 + $0xc0] sm:$0xff]
    %v2854 = vld [vmem:[%s2347 + $0xc8] sm:$0xff]
    %v2855 = vld [vmem:[%s2347 + $0xd0] sm:$0xff]
    %v2856 = vld [vmem:[%s2347 + $0xd8] sm:$0xff]
    %v2857 = vld [vmem:[%s2347 + $0xe0] sm:$0xff]
    %v2858 = vld [vmem:[%s2347 + $0xe8] sm:$0xff]
    %v2859 = vld [vmem:[%s2347 + $0xf0] sm:$0xff]
    %v2860 = vld [vmem:[%s2347 + $0xf8] sm:$0xff]
    %v2861 = vld [vmem:[%s2347 + $0x100] sm:$0xff]
    %v2862 = vld [vmem:[%s2347 + $0x108] sm:$0xff]
    %v2863 = vld [vmem:[%s2347 + $0x110] sm:$0xff]
    %v2864 = vld [vmem:[%s2347 + $0x118] sm:$0xff]
    %v2865 = vld [vmem:[%s2347 + $0x120] sm:$0xff]
    %v2866 = vld [vmem:[%s2347 + $0x128] sm:$0xff]
    %v2867 = vld [vmem:[%s2347 + $0x130] sm:$0xff]
    %v2868 = vld [vmem:[%s2347 + $0x138] sm:$0xff]
    %v2869 = vld [vmem:[%s2347 + $0x140] sm:$0xff]
    %v2870 = vld [vmem:[%s2347 + $0x148] sm:$0xff]
    %v2871 = vld [vmem:[%s2347 + $0x150] sm:$0xff]
    %v2872 = vld [vmem:[%s2347 + $0x158] sm:$0xff]
    %v2873 = vld [vmem:[%s2347 + $0x160] sm:$0xff]
    %v2874 = vld [vmem:[%s2347 + $0x168] sm:$0xff]
    %v2875 = vld [vmem:[%s2347 + $0x170] sm:$0xff]
    %v2876 = vld [vmem:[%s2347 + $0x178] sm:$0xff]
    %v2877 = vld [vmem:[%s2347 + $0x180] sm:$0xff]
    %v2878 = vld [vmem:[%s2347 + $0x188] sm:$0xff]
    %v2879 = vld [vmem:[%s2347 + $0x190] sm:$0xff]
    %v2880 = vld [vmem:[%s2347 + $0x198] sm:$0xff]
    %v2881 = vld [vmem:[%s2347 + $0x1a0] sm:$0xff]
    %v2882 = vld [vmem:[%s2347 + $0x1a8] sm:$0xff]
    %v2883 = vld [vmem:[%s2347 + $0x1b0] sm:$0xff]
    %v2884 = vld [vmem:[%s2347 + $0x1b8] sm:$0xff]
    %v2885 = vld [vmem:[%s2347 + $0x1c0] sm:$0xff]
    %v2886 = vld [vmem:[%s2347 + $0x1c8] sm:$0xff]
    %v2887 = vld [vmem:[%s2347 + $0x1d0] sm:$0xff]
    %v2888 = vld [vmem:[%s2347 + $0x1d8] sm:$0xff]
    %v2889 = vld [vmem:[%s2347 + $0x1e0] sm:$0xff]
    %v2890 = vld [vmem:[%s2347 + $0x1e8] sm:$0xff]
    %v2891 = vld [vmem:[%s2347 + $0x1f0] sm:$0xff]
    %v2892 = vld [vmem:[%s2347 + $0x1f8] sm:$0xff]
    %2893 = vmatprep.subr.mxu0 %v2890
    %2894 = vmatpush1.msra.mxu0 %v2889
    %2895 = vmatprep.subr.mxu0 %v2886
    %2896 = vmatpush1.msra.mxu0 %v2885
    %2897 = vmatprep.subr.mxu0 %v2882
    %2898 = vmatpush1.msra.mxu0 %v2881
    %2899 = vmatprep.subr.mxu0 %v2878
    %2900 = vmatpush1.msra.mxu0 %v2877
    %2901 = vmatprep.subr.mxu0 %v2874
    %2902 = vmatpush1.msra.mxu0 %v2873
    %2903 = vmatprep.subr.mxu0 %v2870
    %2904 = vmatpush1.msra.mxu0 %v2869
    %2905 = vmatprep.subr.mxu0 %v2866
    %2906 = vmatpush1.msra.mxu0 %v2865
    %2907 = vmatprep.subr.mxu0 %v2862
    %2908 = vmatpush1.msra.mxu0 %v2861
    %2909 = vmatprep.subr.mxu0 %v2858
    %2910 = vmatpush1.msra.mxu0 %v2857
    %2911 = vmatprep.subr.mxu0 %v2854
    %2912 = vmatpush1.msra.mxu0 %v2853
    %2913 = vmatprep.subr.mxu0 %v2850
    %2914 = vmatpush1.msra.mxu0 %v2849
    %2915 = vmatprep.subr.mxu0 %v2846
    %2916 = vmatpush1.msra.mxu0 %v2845
    %2917 = vmatprep.subr.mxu0 %v2842
    %2918 = vmatpush1.msra.mxu0 %v2841
    %2919 = vmatprep.subr.mxu0 %v2838
    %2920 = vmatpush1.msra.mxu0 %v2837
    %2921 = vmatprep.subr.mxu0 %v2834
    %2922 = vmatpush1.msra.mxu0 %v2833
    %2923 = vmatprep.subr.mxu0 %v2830
    %2924 = vmatpush1.msra.mxu0 %v2829
    %2925 = vmatprep.subr.mxu0 0.0
    %2926 = vmatpush2.msra.mxu0 0.0
    %2927 = vmatprep.subr.mxu0 0.0
    %2928 = vmatpush2.msra.mxu0 0.0
    %2929 = vmatprep.subr.mxu0 0.0
    %2930 = vmatpush2.msra.mxu0 0.0
    %2931 = vmatprep.subr.mxu0 0.0
    %2932 = vmatpush2.msra.mxu0 0.0
    %2933 = vmatprep.subr.mxu0 0.0
    %2934 = vmatpush2.msra.mxu0 0.0
    %2935 = vmatprep.subr.mxu0 0.0
    %2936 = vmatpush2.msra.mxu0 0.0
    %2937 = vmatprep.subr.mxu0 0.0
    %2938 = vmatpush2.msra.mxu0 0.0
    %2939 = vmatprep.subr.mxu0 0.0
    %2940 = vmatpush2.msra.mxu0 0.0
    %2941 = vmatprep.subr.mxu0 0.0
    %2942 = vmatpush2.msra.mxu0 0.0
    %2943 = vmatprep.subr.mxu0 0.0
    %2944 = vmatpush2.msra.mxu0 0.0
    %2945 = vmatprep.subr.mxu0 0.0
    %2946 = vmatpush2.msra.mxu0 0.0
    %2947 = vmatprep.subr.mxu0 0.0
    %2948 = vmatpush2.msra.mxu0 0.0
    %2949 = vmatprep.subr.mxu0 0.0
    %2950 = vmatpush2.msra.mxu0 0.0
    %2951 = vmatprep.subr.mxu0 0.0
    %2952 = vmatpush2.msra.mxu0 0.0
    %2953 = vmatprep.subr.mxu0 0.0
    %2954 = vmatpush2.msra.mxu0 0.0
    %2955 = vmatprep.subr.mxu0 0.0
    %2956 = vmatpush2.msra.mxu0 0.0
    %2957 = vmatprep.mubr.f32.mxu0 0.0
    %2958 = vmatmul.mubr.f32.gmra.mxu0 %v2821
    %v2959 = vpop.f32.mrf.mxu0
    %v2960 = vadd.f32 0.0, %v2959
    %v2961 = vpop.f32.mrf.mxu0
    %v2962 = vadd.f32 0.0, %v2961
    %2963 = vdwg.mxu0
    %2964 = vmatprep.subr.mxu0 %v2892
    %2965 = vmatpush1.msra.mxu0 %v2891
    %2966 = vmatprep.subr.mxu0 %v2888
    %2967 = vmatpush1.msra.mxu0 %v2887
    %2968 = vmatprep.subr.mxu0 %v2884
    %2969 = vmatpush1.msra.mxu0 %v2883
    %2970 = vmatprep.subr.mxu0 %v2880
    %2971 = vmatpush1.msra.mxu0 %v2879
    %2972 = vmatprep.subr.mxu0 %v2876
    %2973 = vmatpush1.msra.mxu0 %v2875
    %2974 = vmatprep.subr.mxu0 %v2872
    %2975 = vmatpush1.msra.mxu0 %v2871
    %2976 = vmatprep.subr.mxu0 %v2868
    %2977 = vmatpush1.msra.mxu0 %v2867
    %2978 = vmatprep.subr.mxu0 %v2864
    %2979 = vmatpush1.msra.mxu0 %v2863
    %2980 = vmatprep.subr.mxu0 %v2860
    %2981 = vmatpush1.msra.mxu0 %v2859
    %2982 = vmatprep.subr.mxu0 %v2856
    %2983 = vmatpush1.msra.mxu0 %v2855
    %2984 = vmatprep.subr.mxu0 %v2852
    %2985 = vmatpush1.msra.mxu0 %v2851
    %2986 = vmatprep.subr.mxu0 %v2848
    %2987 = vmatpush1.msra.mxu0 %v2847
    %2988 = vmatprep.subr.mxu0 %v2844
    %2989 = vmatpush1.msra.mxu0 %v2843
    %2990 = vmatprep.subr.mxu0 %v2840
    %2991 = vmatpush1.msra.mxu0 %v2839
    %2992 = vmatprep.subr.mxu0 %v2836
    %2993 = vmatpush1.msra.mxu0 %v2835
    %2994 = vmatprep.subr.mxu0 %v2832
    %2995 = vmatpush1.msra.mxu0 %v2831
    %2996 = vmatprep.subr.mxu0 0.0
    %2997 = vmatpush2.msra.mxu0 0.0
    %2998 = vmatprep.subr.mxu0 0.0
    %2999 = vmatpush2.msra.mxu0 0.0
    %3000 = vmatprep.subr.mxu0 0.0
    %3001 = vmatpush2.msra.mxu0 0.0
    %3002 = vmatprep.subr.mxu0 0.0
    %3003 = vmatpush2.msra.mxu0 0.0
    %3004 = vmatprep.subr.mxu0 0.0
    %3005 = vmatpush2.msra.mxu0 0.0
    %3006 = vmatprep.subr.mxu0 0.0
    %3007 = vmatpush2.msra.mxu0 0.0
    %3008 = vmatprep.subr.mxu0 0.0
    %3009 = vmatpush2.msra.mxu0 0.0
    %3010 = vmatprep.subr.mxu0 0.0
    %3011 = vmatpush2.msra.mxu0 0.0
    %3012 = vmatprep.subr.mxu0 0.0
    %3013 = vmatpush2.msra.mxu0 0.0
    %3014 = vmatprep.subr.mxu0 0.0
    %3015 = vmatpush2.msra.mxu0 0.0
    %3016 = vmatprep.subr.mxu0 0.0
    %3017 = vmatpush2.msra.mxu0 0.0
    %3018 = vmatprep.subr.mxu0 0.0
    %3019 = vmatpush2.msra.mxu0 0.0
    %3020 = vmatprep.subr.mxu0 0.0
    %3021 = vmatpush2.msra.mxu0 0.0
    %3022 = vmatprep.subr.mxu0 0.0
    %3023 = vmatpush2.msra.mxu0 0.0
    %3024 = vmatprep.subr.mxu0 0.0
    %3025 = vmatpush2.msra.mxu0 0.0
    %3026 = vmatprep.subr.mxu0 0.0
    %3027 = vmatpush2.msra.mxu0 0.0
    %3028 = vmatprep.mubr.f32.mxu0 0.0
    %3029 = vmatmul.mubr.f32.gmra.mxu0 %v2821
    %v3030 = vpop.f32.mrf.mxu0
    %v3031 = vadd.f32 0.0, %v3030
    %v3032 = vpop.f32.mrf.mxu0
    %v3033 = vadd.f32 0.0, %v3032
    %3034 = vdwg.mxu0
    %v3035 = vadd.f32 %v2825, %v2960
    %v3036 = vadd.f32 %v2826, %v2962
    %v3037 = vadd.f32 %v2827, %v3031
    %v3038 = vadd.f32 %v2828, %v3033
    %v3039 = vxor.u32 %v3035, 2147483648
    %v3040 = vmul.f32 %v3039, 1.442695
    %v3041 = vpow.pop %v3040
    %v3042 = vadd.f32 %v3041, 1.0
    %v3043 = vrcp.pop %v3042
    %v3044 = vmul.f32 1.0, %v3043
    %v3045 = vxor.u32 %v3036, 2147483648
    %v3046 = vmul.f32 %v3045, 1.442695
    %v3047 = vpow.pop %v3046
    %v3048 = vadd.f32 %v3047, 1.0
    %v3049 = vrcp.pop %v3048
    %v3050 = vmul.f32 1.0, %v3049
    %v3051 = vtanh.pop %v3037
    %v3052 = vxor.u32 %v3038, 2147483648
    %v3053 = vmul.f32 %v3052, 1.442695
    %v3054 = vpow.pop %v3053
    %v3055 = vadd.f32 %v3054, 1.0
    %v3056 = vrcp.pop %v3055
    %v3057 = vmul.f32 1.0, %v3056
    %v3058 = vmul.f32 %v3050, %v2819
    %v3059 = vmul.f32 %v3044, %v3051
    %v3060 = vadd.f32 %v3058, %v3059
    %v3061 = vtanh.pop %v3060
    %v3062 = vmul.f32 %v3057, %v3061
    %s3063 = scalar_lea.vmem [#allocation10], 16
    %3064 = vst [vmem:[%s3063] sm:$0xff] %v3062
    %s3065 = scalar_lea.vmem [#allocation3], 96
    %v3066 = vld [vmem:[%s3065] sm:$0xff]
    %v3067 = vld [vmem:[%s3065 + $0x8] sm:$0xff]
    %v3068 = vld [vmem:[%s3065 + $0x10] sm:$0xff]
    %v3069 = vld [vmem:[%s3065 + $0x18] sm:$0xff]
    %v3070 = vld [vmem:[%s2347] sm:$0xff]
    %v3071 = vld [vmem:[%s2347 + $0x8] sm:$0xff]
    %v3072 = vld [vmem:[%s2347 + $0x10] sm:$0xff]
    %v3073 = vld [vmem:[%s2347 + $0x18] sm:$0xff]
    %v3074 = vld [vmem:[%s2347 + $0x20] sm:$0xff]
    %v3075 = vld [vmem:[%s2347 + $0x28] sm:$0xff]
    %v3076 = vld [vmem:[%s2347 + $0x30] sm:$0xff]
    %v3077 = vld [vmem:[%s2347 + $0x38] sm:$0xff]
    %v3078 = vld [vmem:[%s2347 + $0x40] sm:$0xff]
    %v3079 = vld [vmem:[%s2347 + $0x48] sm:$0xff]
    %v3080 = vld [vmem:[%s2347 + $0x50] sm:$0xff]
    %v3081 = vld [vmem:[%s2347 + $0x58] sm:$0xff]
    %v3082 = vld [vmem:[%s2347 + $0x60] sm:$0xff]
    %v3083 = vld [vmem:[%s2347 + $0x68] sm:$0xff]
    %v3084 = vld [vmem:[%s2347 + $0x70] sm:$0xff]
    %v3085 = vld [vmem:[%s2347 + $0x78] sm:$0xff]
    %v3086 = vld [vmem:[%s2347 + $0x80] sm:$0xff]
    %v3087 = vld [vmem:[%s2347 + $0x88] sm:$0xff]
    %v3088 = vld [vmem:[%s2347 + $0x90] sm:$0xff]
    %v3089 = vld [vmem:[%s2347 + $0x98] sm:$0xff]
    %v3090 = vld [vmem:[%s2347 + $0xa0] sm:$0xff]
    %v3091 = vld [vmem:[%s2347 + $0xa8] sm:$0xff]
    %v3092 = vld [vmem:[%s2347 + $0xb0] sm:$0xff]
    %v3093 = vld [vmem:[%s2347 + $0xb8] sm:$0xff]
    %v3094 = vld [vmem:[%s2347 + $0xc0] sm:$0xff]
    %v3095 = vld [vmem:[%s2347 + $0xc8] sm:$0xff]
    %v3096 = vld [vmem:[%s2347 + $0xd0] sm:$0xff]
    %v3097 = vld [vmem:[%s2347 + $0xd8] sm:$0xff]
    %v3098 = vld [vmem:[%s2347 + $0xe0] sm:$0xff]
    %v3099 = vld [vmem:[%s2347 + $0xe8] sm:$0xff]
    %v3100 = vld [vmem:[%s2347 + $0xf0] sm:$0xff]
    %v3101 = vld [vmem:[%s2347 + $0xf8] sm:$0xff]
    %v3102 = vld [vmem:[%s2347 + $0x100] sm:$0xff]
    %v3103 = vld [vmem:[%s2347 + $0x108] sm:$0xff]
    %v3104 = vld [vmem:[%s2347 + $0x110] sm:$0xff]
    %v3105 = vld [vmem:[%s2347 + $0x118] sm:$0xff]
    %v3106 = vld [vmem:[%s2347 + $0x120] sm:$0xff]
    %v3107 = vld [vmem:[%s2347 + $0x128] sm:$0xff]
    %v3108 = vld [vmem:[%s2347 + $0x130] sm:$0xff]
    %v3109 = vld [vmem:[%s2347 + $0x138] sm:$0xff]
    %v3110 = vld [vmem:[%s2347 + $0x140] sm:$0xff]
    %v3111 = vld [vmem:[%s2347 + $0x148] sm:$0xff]
    %v3112 = vld [vmem:[%s2347 + $0x150] sm:$0xff]
    %v3113 = vld [vmem:[%s2347 + $0x158] sm:$0xff]
    %v3114 = vld [vmem:[%s2347 + $0x160] sm:$0xff]
    %v3115 = vld [vmem:[%s2347 + $0x168] sm:$0xff]
    %v3116 = vld [vmem:[%s2347 + $0x170] sm:$0xff]
    %v3117 = vld [vmem:[%s2347 + $0x178] sm:$0xff]
    %v3118 = vld [vmem:[%s2347 + $0x180] sm:$0xff]
    %v3119 = vld [vmem:[%s2347 + $0x188] sm:$0xff]
    %v3120 = vld [vmem:[%s2347 + $0x190] sm:$0xff]
    %v3121 = vld [vmem:[%s2347 + $0x198] sm:$0xff]
    %v3122 = vld [vmem:[%s2347 + $0x1a0] sm:$0xff]
    %v3123 = vld [vmem:[%s2347 + $0x1a8] sm:$0xff]
    %v3124 = vld [vmem:[%s2347 + $0x1b0] sm:$0xff]
    %v3125 = vld [vmem:[%s2347 + $0x1b8] sm:$0xff]
    %v3126 = vld [vmem:[%s2347 + $0x1c0] sm:$0xff]
    %v3127 = vld [vmem:[%s2347 + $0x1c8] sm:$0xff]
    %v3128 = vld [vmem:[%s2347 + $0x1d0] sm:$0xff]
    %v3129 = vld [vmem:[%s2347 + $0x1d8] sm:$0xff]
    %v3130 = vld [vmem:[%s2347 + $0x1e0] sm:$0xff]
    %v3131 = vld [vmem:[%s2347 + $0x1e8] sm:$0xff]
    %v3132 = vld [vmem:[%s2347 + $0x1f0] sm:$0xff]
    %v3133 = vld [vmem:[%s2347 + $0x1f8] sm:$0xff]
    %3134 = vmatprep.subr.mxu0 %v3131
    %3135 = vmatpush1.msra.mxu0 %v3130
    %3136 = vmatprep.subr.mxu0 %v3127
    %3137 = vmatpush1.msra.mxu0 %v3126
    %3138 = vmatprep.subr.mxu0 %v3123
    %3139 = vmatpush1.msra.mxu0 %v3122
    %3140 = vmatprep.subr.mxu0 %v3119
    %3141 = vmatpush1.msra.mxu0 %v3118
    %3142 = vmatprep.subr.mxu0 %v3115
    %3143 = vmatpush1.msra.mxu0 %v3114
    %3144 = vmatprep.subr.mxu0 %v3111
    %3145 = vmatpush1.msra.mxu0 %v3110
    %3146 = vmatprep.subr.mxu0 %v3107
    %3147 = vmatpush1.msra.mxu0 %v3106
    %3148 = vmatprep.subr.mxu0 %v3103
    %3149 = vmatpush1.msra.mxu0 %v3102
    %3150 = vmatprep.subr.mxu0 %v3099
    %3151 = vmatpush1.msra.mxu0 %v3098
    %3152 = vmatprep.subr.mxu0 %v3095
    %3153 = vmatpush1.msra.mxu0 %v3094
    %3154 = vmatprep.subr.mxu0 %v3091
    %3155 = vmatpush1.msra.mxu0 %v3090
    %3156 = vmatprep.subr.mxu0 %v3087
    %3157 = vmatpush1.msra.mxu0 %v3086
    %3158 = vmatprep.subr.mxu0 %v3083
    %3159 = vmatpush1.msra.mxu0 %v3082
    %3160 = vmatprep.subr.mxu0 %v3079
    %3161 = vmatpush1.msra.mxu0 %v3078
    %3162 = vmatprep.subr.mxu0 %v3075
    %3163 = vmatpush1.msra.mxu0 %v3074
    %3164 = vmatprep.subr.mxu0 %v3071
    %3165 = vmatpush1.msra.mxu0 %v3070
    %3166 = vmatprep.subr.mxu0 0.0
    %3167 = vmatpush2.msra.mxu0 0.0
    %3168 = vmatprep.subr.mxu0 0.0
    %3169 = vmatpush2.msra.mxu0 0.0
    %3170 = vmatprep.subr.mxu0 0.0
    %3171 = vmatpush2.msra.mxu0 0.0
    %3172 = vmatprep.subr.mxu0 0.0
    %3173 = vmatpush2.msra.mxu0 0.0
    %3174 = vmatprep.subr.mxu0 0.0
    %3175 = vmatpush2.msra.mxu0 0.0
    %3176 = vmatprep.subr.mxu0 0.0
    %3177 = vmatpush2.msra.mxu0 0.0
    %3178 = vmatprep.subr.mxu0 0.0
    %3179 = vmatpush2.msra.mxu0 0.0
    %3180 = vmatprep.subr.mxu0 0.0
    %3181 = vmatpush2.msra.mxu0 0.0
    %3182 = vmatprep.subr.mxu0 0.0
    %3183 = vmatpush2.msra.mxu0 0.0
    %3184 = vmatprep.subr.mxu0 0.0
    %3185 = vmatpush2.msra.mxu0 0.0
    %3186 = vmatprep.subr.mxu0 0.0
    %3187 = vmatpush2.msra.mxu0 0.0
    %3188 = vmatprep.subr.mxu0 0.0
    %3189 = vmatpush2.msra.mxu0 0.0
    %3190 = vmatprep.subr.mxu0 0.0
    %3191 = vmatpush2.msra.mxu0 0.0
    %3192 = vmatprep.subr.mxu0 0.0
    %3193 = vmatpush2.msra.mxu0 0.0
    %3194 = vmatprep.subr.mxu0 0.0
    %3195 = vmatpush2.msra.mxu0 0.0
    %3196 = vmatprep.subr.mxu0 0.0
    %3197 = vmatpush2.msra.mxu0 0.0
    %3198 = vmatprep.mubr.f32.mxu0 0.0
    %3199 = vmatmul.mubr.f32.gmra.mxu0 %v3062
    %v3200 = vpop.f32.mrf.mxu0
    %v3201 = vadd.f32 0.0, %v3200
    %v3202 = vpop.f32.mrf.mxu0
    %v3203 = vadd.f32 0.0, %v3202
    %3204 = vdwg.mxu0
    %3205 = vmatprep.subr.mxu0 %v3133
    %3206 = vmatpush1.msra.mxu0 %v3132
    %3207 = vmatprep.subr.mxu0 %v3129
    %3208 = vmatpush1.msra.mxu0 %v3128
    %3209 = vmatprep.subr.mxu0 %v3125
    %3210 = vmatpush1.msra.mxu0 %v3124
    %3211 = vmatprep.subr.mxu0 %v3121
    %3212 = vmatpush1.msra.mxu0 %v3120
    %3213 = vmatprep.subr.mxu0 %v3117
    %3214 = vmatpush1.msra.mxu0 %v3116
    %3215 = vmatprep.subr.mxu0 %v3113
    %3216 = vmatpush1.msra.mxu0 %v3112
    %3217 = vmatprep.subr.mxu0 %v3109
    %3218 = vmatpush1.msra.mxu0 %v3108
    %3219 = vmatprep.subr.mxu0 %v3105
    %3220 = vmatpush1.msra.mxu0 %v3104
    %3221 = vmatprep.subr.mxu0 %v3101
    %3222 = vmatpush1.msra.mxu0 %v3100
    %3223 = vmatprep.subr.mxu0 %v3097
    %3224 = vmatpush1.msra.mxu0 %v3096
    %3225 = vmatprep.subr.mxu0 %v3093
    %3226 = vmatpush1.msra.mxu0 %v3092
    %3227 = vmatprep.subr.mxu0 %v3089
    %3228 = vmatpush1.msra.mxu0 %v3088
    %3229 = vmatprep.subr.mxu0 %v3085
    %3230 = vmatpush1.msra.mxu0 %v3084
    %3231 = vmatprep.subr.mxu0 %v3081
    %3232 = vmatpush1.msra.mxu0 %v3080
    %3233 = vmatprep.subr.mxu0 %v3077
    %3234 = vmatpush1.msra.mxu0 %v3076
    %3235 = vmatprep.subr.mxu0 %v3073
    %3236 = vmatpush1.msra.mxu0 %v3072
    %3237 = vmatprep.subr.mxu0 0.0
    %3238 = vmatpush2.msra.mxu0 0.0
    %3239 = vmatprep.subr.mxu0 0.0
    %3240 = vmatpush2.msra.mxu0 0.0
    %3241 = vmatprep.subr.mxu0 0.0
    %3242 = vmatpush2.msra.mxu0 0.0
    %3243 = vmatprep.subr.mxu0 0.0
    %3244 = vmatpush2.msra.mxu0 0.0
    %3245 = vmatprep.subr.mxu0 0.0
    %3246 = vmatpush2.msra.mxu0 0.0
    %3247 = vmatprep.subr.mxu0 0.0
    %3248 = vmatpush2.msra.mxu0 0.0
    %3249 = vmatprep.subr.mxu0 0.0
    %3250 = vmatpush2.msra.mxu0 0.0
    %3251 = vmatprep.subr.mxu0 0.0
    %3252 = vmatpush2.msra.mxu0 0.0
    %3253 = vmatprep.subr.mxu0 0.0
    %3254 = vmatpush2.msra.mxu0 0.0
    %3255 = vmatprep.subr.mxu0 0.0
    %3256 = vmatpush2.msra.mxu0 0.0
    %3257 = vmatprep.subr.mxu0 0.0
    %3258 = vmatpush2.msra.mxu0 0.0
    %3259 = vmatprep.subr.mxu0 0.0
    %3260 = vmatpush2.msra.mxu0 0.0
    %3261 = vmatprep.subr.mxu0 0.0
    %3262 = vmatpush2.msra.mxu0 0.0
    %3263 = vmatprep.subr.mxu0 0.0
    %3264 = vmatpush2.msra.mxu0 0.0
    %3265 = vmatprep.subr.mxu0 0.0
    %3266 = vmatpush2.msra.mxu0 0.0
    %3267 = vmatprep.subr.mxu0 0.0
    %3268 = vmatpush2.msra.mxu0 0.0
    %3269 = vmatprep.mubr.f32.mxu0 0.0
    %3270 = vmatmul.mubr.f32.gmra.mxu0 %v3062
    %v3271 = vpop.f32.mrf.mxu0
    %v3272 = vadd.f32 0.0, %v3271
    %v3273 = vpop.f32.mrf.mxu0
    %v3274 = vadd.f32 0.0, %v3273
    %3275 = vdwg.mxu0
    %v3276 = vadd.f32 %v3066, %v3201
    %v3277 = vadd.f32 %v3067, %v3203
    %v3278 = vadd.f32 %v3068, %v3272
    %v3279 = vadd.f32 %v3069, %v3274
    %v3280 = vxor.u32 %v3276, 2147483648
    %v3281 = vmul.f32 %v3280, 1.442695
    %v3282 = vpow.pop %v3281
    %v3283 = vadd.f32 %v3282, 1.0
    %v3284 = vrcp.pop %v3283
    %v3285 = vmul.f32 1.0, %v3284
    %v3286 = vxor.u32 %v3277, 2147483648
    %v3287 = vmul.f32 %v3286, 1.442695
    %v3288 = vpow.pop %v3287
    %v3289 = vadd.f32 %v3288, 1.0
    %v3290 = vrcp.pop %v3289
    %v3291 = vmul.f32 1.0, %v3290
    %v3292 = vtanh.pop %v3278
    %v3293 = vxor.u32 %v3279, 2147483648
    %v3294 = vmul.f32 %v3293, 1.442695
    %v3295 = vpow.pop %v3294
    %v3296 = vadd.f32 %v3295, 1.0
    %v3297 = vrcp.pop %v3296
    %v3298 = vmul.f32 1.0, %v3297
    %v3299 = vmul.f32 %v3291, %v3060
    %v3300 = vmul.f32 %v3285, %v3292
    %v3301 = vadd.f32 %v3299, %v3300
    %v3302 = vtanh.pop %v3301
    %v3303 = vmul.f32 %v3298, %v3302
    %s3304 = scalar_lea.vmem [#allocation10], 24
    %3305 = vst [vmem:[%s3304] sm:$0xff] %v3303
    %s3306 = scalar_lea.vmem [#allocation3], 128
    %v3307 = vld [vmem:[%s3306] sm:$0xff]
    %v3308 = vld [vmem:[%s3306 + $0x8] sm:$0xff]
    %v3309 = vld [vmem:[%s3306 + $0x10] sm:$0xff]
    %v3310 = vld [vmem:[%s3306 + $0x18] sm:$0xff]
    %v3311 = vld [vmem:[%s2347] sm:$0xff]
    %v3312 = vld [vmem:[%s2347 + $0x8] sm:$0xff]
    %v3313 = vld [vmem:[%s2347 + $0x10] sm:$0xff]
    %v3314 = vld [vmem:[%s2347 + $0x18] sm:$0xff]
    %v3315 = vld [vmem:[%s2347 + $0x20] sm:$0xff]
    %v3316 = vld [vmem:[%s2347 + $0x28] sm:$0xff]
    %v3317 = vld [vmem:[%s2347 + $0x30] sm:$0xff]
    %v3318 = vld [vmem:[%s2347 + $0x38] sm:$0xff]
    %v3319 = vld [vmem:[%s2347 + $0x40] sm:$0xff]
    %v3320 = vld [vmem:[%s2347 + $0x48] sm:$0xff]
    %v3321 = vld [vmem:[%s2347 + $0x50] sm:$0xff]
    %v3322 = vld [vmem:[%s2347 + $0x58] sm:$0xff]
    %v3323 = vld [vmem:[%s2347 + $0x60] sm:$0xff]
    %v3324 = vld [vmem:[%s2347 + $0x68] sm:$0xff]
    %v3325 = vld [vmem:[%s2347 + $0x70] sm:$0xff]
    %v3326 = vld [vmem:[%s2347 + $0x78] sm:$0xff]
    %v3327 = vld [vmem:[%s2347 + $0x80] sm:$0xff]
    %v3328 = vld [vmem:[%s2347 + $0x88] sm:$0xff]
    %v3329 = vld [vmem:[%s2347 + $0x90] sm:$0xff]
    %v3330 = vld [vmem:[%s2347 + $0x98] sm:$0xff]
    %v3331 = vld [vmem:[%s2347 + $0xa0] sm:$0xff]
    %v3332 = vld [vmem:[%s2347 + $0xa8] sm:$0xff]
    %v3333 = vld [vmem:[%s2347 + $0xb0] sm:$0xff]
    %v3334 = vld [vmem:[%s2347 + $0xb8] sm:$0xff]
    %v3335 = vld [vmem:[%s2347 + $0xc0] sm:$0xff]
    %v3336 = vld [vmem:[%s2347 + $0xc8] sm:$0xff]
    %v3337 = vld [vmem:[%s2347 + $0xd0] sm:$0xff]
    %v3338 = vld [vmem:[%s2347 + $0xd8] sm:$0xff]
    %v3339 = vld [vmem:[%s2347 + $0xe0] sm:$0xff]
    %v3340 = vld [vmem:[%s2347 + $0xe8] sm:$0xff]
    %v3341 = vld [vmem:[%s2347 + $0xf0] sm:$0xff]
    %v3342 = vld [vmem:[%s2347 + $0xf8] sm:$0xff]
    %v3343 = vld [vmem:[%s2347 + $0x100] sm:$0xff]
    %v3344 = vld [vmem:[%s2347 + $0x108] sm:$0xff]
    %v3345 = vld [vmem:[%s2347 + $0x110] sm:$0xff]
    %v3346 = vld [vmem:[%s2347 + $0x118] sm:$0xff]
    %v3347 = vld [vmem:[%s2347 + $0x120] sm:$0xff]
    %v3348 = vld [vmem:[%s2347 + $0x128] sm:$0xff]
    %v3349 = vld [vmem:[%s2347 + $0x130] sm:$0xff]
    %v3350 = vld [vmem:[%s2347 + $0x138] sm:$0xff]
    %v3351 = vld [vmem:[%s2347 + $0x140] sm:$0xff]
    %v3352 = vld [vmem:[%s2347 + $0x148] sm:$0xff]
    %v3353 = vld [vmem:[%s2347 + $0x150] sm:$0xff]
    %v3354 = vld [vmem:[%s2347 + $0x158] sm:$0xff]
    %v3355 = vld [vmem:[%s2347 + $0x160] sm:$0xff]
    %v3356 = vld [vmem:[%s2347 + $0x168] sm:$0xff]
    %v3357 = vld [vmem:[%s2347 + $0x170] sm:$0xff]
    %v3358 = vld [vmem:[%s2347 + $0x178] sm:$0xff]
    %v3359 = vld [vmem:[%s2347 + $0x180] sm:$0xff]
    %v3360 = vld [vmem:[%s2347 + $0x188] sm:$0xff]
    %v3361 = vld [vmem:[%s2347 + $0x190] sm:$0xff]
    %v3362 = vld [vmem:[%s2347 + $0x198] sm:$0xff]
    %v3363 = vld [vmem:[%s2347 + $0x1a0] sm:$0xff]
    %v3364 = vld [vmem:[%s2347 + $0x1a8] sm:$0xff]
    %v3365 = vld [vmem:[%s2347 + $0x1b0] sm:$0xff]
    %v3366 = vld [vmem:[%s2347 + $0x1b8] sm:$0xff]
    %v3367 = vld [vmem:[%s2347 + $0x1c0] sm:$0xff]
    %v3368 = vld [vmem:[%s2347 + $0x1c8] sm:$0xff]
    %v3369 = vld [vmem:[%s2347 + $0x1d0] sm:$0xff]
    %v3370 = vld [vmem:[%s2347 + $0x1d8] sm:$0xff]
    %v3371 = vld [vmem:[%s2347 + $0x1e0] sm:$0xff]
    %v3372 = vld [vmem:[%s2347 + $0x1e8] sm:$0xff]
    %v3373 = vld [vmem:[%s2347 + $0x1f0] sm:$0xff]
    %v3374 = vld [vmem:[%s2347 + $0x1f8] sm:$0xff]
    %3375 = vmatprep.subr.mxu0 %v3372
    %3376 = vmatpush1.msra.mxu0 %v3371
    %3377 = vmatprep.subr.mxu0 %v3368
    %3378 = vmatpush1.msra.mxu0 %v3367
    %3379 = vmatprep.subr.mxu0 %v3364
    %3380 = vmatpush1.msra.mxu0 %v3363
    %3381 = vmatprep.subr.mxu0 %v3360
    %3382 = vmatpush1.msra.mxu0 %v3359
    %3383 = vmatprep.subr.mxu0 %v3356
    %3384 = vmatpush1.msra.mxu0 %v3355
    %3385 = vmatprep.subr.mxu0 %v3352
    %3386 = vmatpush1.msra.mxu0 %v3351
    %3387 = vmatprep.subr.mxu0 %v3348
    %3388 = vmatpush1.msra.mxu0 %v3347
    %3389 = vmatprep.subr.mxu0 %v3344
    %3390 = vmatpush1.msra.mxu0 %v3343
    %3391 = vmatprep.subr.mxu0 %v3340
    %3392 = vmatpush1.msra.mxu0 %v3339
    %3393 = vmatprep.subr.mxu0 %v3336
    %3394 = vmatpush1.msra.mxu0 %v3335
    %3395 = vmatprep.subr.mxu0 %v3332
    %3396 = vmatpush1.msra.mxu0 %v3331
    %3397 = vmatprep.subr.mxu0 %v3328
    %3398 = vmatpush1.msra.mxu0 %v3327
    %3399 = vmatprep.subr.mxu0 %v3324
    %3400 = vmatpush1.msra.mxu0 %v3323
    %3401 = vmatprep.subr.mxu0 %v3320
    %3402 = vmatpush1.msra.mxu0 %v3319
    %3403 = vmatprep.subr.mxu0 %v3316
    %3404 = vmatpush1.msra.mxu0 %v3315
    %3405 = vmatprep.subr.mxu0 %v3312
    %3406 = vmatpush1.msra.mxu0 %v3311
    %3407 = vmatprep.subr.mxu0 0.0
    %3408 = vmatpush2.msra.mxu0 0.0
    %3409 = vmatprep.subr.mxu0 0.0
    %3410 = vmatpush2.msra.mxu0 0.0
    %3411 = vmatprep.subr.mxu0 0.0
    %3412 = vmatpush2.msra.mxu0 0.0
    %3413 = vmatprep.subr.mxu0 0.0
    %3414 = vmatpush2.msra.mxu0 0.0
    %3415 = vmatprep.subr.mxu0 0.0
    %3416 = vmatpush2.msra.mxu0 0.0
    %3417 = vmatprep.subr.mxu0 0.0
    %3418 = vmatpush2.msra.mxu0 0.0
    %3419 = vmatprep.subr.mxu0 0.0
    %3420 = vmatpush2.msra.mxu0 0.0
    %3421 = vmatprep.subr.mxu0 0.0
    %3422 = vmatpush2.msra.mxu0 0.0
    %3423 = vmatprep.subr.mxu0 0.0
    %3424 = vmatpush2.msra.mxu0 0.0
    %3425 = vmatprep.subr.mxu0 0.0
    %3426 = vmatpush2.msra.mxu0 0.0
    %3427 = vmatprep.subr.mxu0 0.0
    %3428 = vmatpush2.msra.mxu0 0.0
    %3429 = vmatprep.subr.mxu0 0.0
    %3430 = vmatpush2.msra.mxu0 0.0
    %3431 = vmatprep.subr.mxu0 0.0
    %3432 = vmatpush2.msra.mxu0 0.0
    %3433 = vmatprep.subr.mxu0 0.0
    %3434 = vmatpush2.msra.mxu0 0.0
    %3435 = vmatprep.subr.mxu0 0.0
    %3436 = vmatpush2.msra.mxu0 0.0
    %3437 = vmatprep.subr.mxu0 0.0
    %3438 = vmatpush2.msra.mxu0 0.0
    %3439 = vmatprep.mubr.f32.mxu0 0.0
    %3440 = vmatmul.mubr.f32.gmra.mxu0 %v3303
    %v3441 = vpop.f32.mrf.mxu0
    %v3442 = vadd.f32 0.0, %v3441
    %v3443 = vpop.f32.mrf.mxu0
    %v3444 = vadd.f32 0.0, %v3443
    %3445 = vdwg.mxu0
    %3446 = vmatprep.subr.mxu0 %v3374
    %3447 = vmatpush1.msra.mxu0 %v3373
    %3448 = vmatprep.subr.mxu0 %v3370
    %3449 = vmatpush1.msra.mxu0 %v3369
    %3450 = vmatprep.subr.mxu0 %v3366
    %3451 = vmatpush1.msra.mxu0 %v3365
    %3452 = vmatprep.subr.mxu0 %v3362
    %3453 = vmatpush1.msra.mxu0 %v3361
    %3454 = vmatprep.subr.mxu0 %v3358
    %3455 = vmatpush1.msra.mxu0 %v3357
    %3456 = vmatprep.subr.mxu0 %v3354
    %3457 = vmatpush1.msra.mxu0 %v3353
    %3458 = vmatprep.subr.mxu0 %v3350
    %3459 = vmatpush1.msra.mxu0 %v3349
    %3460 = vmatprep.subr.mxu0 %v3346
    %3461 = vmatpush1.msra.mxu0 %v3345
    %3462 = vmatprep.subr.mxu0 %v3342
    %3463 = vmatpush1.msra.mxu0 %v3341
    %3464 = vmatprep.subr.mxu0 %v3338
    %3465 = vmatpush1.msra.mxu0 %v3337
    %3466 = vmatprep.subr.mxu0 %v3334
    %3467 = vmatpush1.msra.mxu0 %v3333
    %3468 = vmatprep.subr.mxu0 %v3330
    %3469 = vmatpush1.msra.mxu0 %v3329
    %3470 = vmatprep.subr.mxu0 %v3326
    %3471 = vmatpush1.msra.mxu0 %v3325
    %3472 = vmatprep.subr.mxu0 %v3322
    %3473 = vmatpush1.msra.mxu0 %v3321
    %3474 = vmatprep.subr.mxu0 %v3318
    %3475 = vmatpush1.msra.mxu0 %v3317
    %3476 = vmatprep.subr.mxu0 %v3314
    %3477 = vmatpush1.msra.mxu0 %v3313
    %3478 = vmatprep.subr.mxu0 0.0
    %3479 = vmatpush2.msra.mxu0 0.0
    %3480 = vmatprep.subr.mxu0 0.0
    %3481 = vmatpush2.msra.mxu0 0.0
    %3482 = vmatprep.subr.mxu0 0.0
    %3483 = vmatpush2.msra.mxu0 0.0
    %3484 = vmatprep.subr.mxu0 0.0
    %3485 = vmatpush2.msra.mxu0 0.0
    %3486 = vmatprep.subr.mxu0 0.0
    %3487 = vmatpush2.msra.mxu0 0.0
    %3488 = vmatprep.subr.mxu0 0.0
    %3489 = vmatpush2.msra.mxu0 0.0
    %3490 = vmatprep.subr.mxu0 0.0
    %3491 = vmatpush2.msra.mxu0 0.0
    %3492 = vmatprep.subr.mxu0 0.0
    %3493 = vmatpush2.msra.mxu0 0.0
    %3494 = vmatprep.subr.mxu0 0.0
    %3495 = vmatpush2.msra.mxu0 0.0
    %3496 = vmatprep.subr.mxu0 0.0
    %3497 = vmatpush2.msra.mxu0 0.0
    %3498 = vmatprep.subr.mxu0 0.0
    %3499 = vmatpush2.msra.mxu0 0.0
    %3500 = vmatprep.subr.mxu0 0.0
    %3501 = vmatpush2.msra.mxu0 0.0
    %3502 = vmatprep.subr.mxu0 0.0
    %3503 = vmatpush2.msra.mxu0 0.0
    %3504 = vmatprep.subr.mxu0 0.0
    %3505 = vmatpush2.msra.mxu0 0.0
    %3506 = vmatprep.subr.mxu0 0.0
    %3507 = vmatpush2.msra.mxu0 0.0
    %3508 = vmatprep.subr.mxu0 0.0
    %3509 = vmatpush2.msra.mxu0 0.0
    %3510 = vmatprep.mubr.f32.mxu0 0.0
    %3511 = vmatmul.mubr.f32.gmra.mxu0 %v3303
    %v3512 = vpop.f32.mrf.mxu0
    %v3513 = vadd.f32 0.0, %v3512
    %v3514 = vpop.f32.mrf.mxu0
    %v3515 = vadd.f32 0.0, %v3514
    %3516 = vdwg.mxu0
    %v3517 = vadd.f32 %v3307, %v3442
    %v3518 = vadd.f32 %v3308, %v3444
    %v3519 = vadd.f32 %v3309, %v3513
    %v3520 = vadd.f32 %v3310, %v3515
    %v3521 = vxor.u32 %v3517, 2147483648
    %v3522 = vmul.f32 %v3521, 1.442695
    %v3523 = vpow.pop %v3522
    %v3524 = vadd.f32 %v3523, 1.0
    %v3525 = vrcp.pop %v3524
    %v3526 = vmul.f32 1.0, %v3525
    %v3527 = vxor.u32 %v3518, 2147483648
    %v3528 = vmul.f32 %v3527, 1.442695
    %v3529 = vpow.pop %v3528
    %v3530 = vadd.f32 %v3529, 1.0
    %v3531 = vrcp.pop %v3530
    %v3532 = vmul.f32 1.0, %v3531
    %v3533 = vtanh.pop %v3519
    %v3534 = vxor.u32 %v3520, 2147483648
    %v3535 = vmul.f32 %v3534, 1.442695
    %v3536 = vpow.pop %v3535
    %v3537 = vadd.f32 %v3536, 1.0
    %v3538 = vrcp.pop %v3537
    %v3539 = vmul.f32 1.0, %v3538
    %v3540 = vmul.f32 %v3532, %v3301
    %v3541 = vmul.f32 %v3526, %v3533
    %v3542 = vadd.f32 %v3540, %v3541
    %v3543 = vtanh.pop %v3542
    %v3544 = vmul.f32 %v3539, %v3543
    %s3545 = scalar_lea.vmem [#allocation10], 32
    %3546 = vst [vmem:[%s3545] sm:$0xff] %v3544
    %s3547 = scalar_lea.vmem [#allocation3], 160
    %v3548 = vld [vmem:[%s3547] sm:$0xff]
    %v3549 = vld [vmem:[%s3547 + $0x8] sm:$0xff]
    %v3550 = vld [vmem:[%s3547 + $0x10] sm:$0xff]
    %v3551 = vld [vmem:[%s3547 + $0x18] sm:$0xff]
    %v3552 = vld [vmem:[%s2347] sm:$0xff]
    %v3553 = vld [vmem:[%s2347 + $0x8] sm:$0xff]
    %v3554 = vld [vmem:[%s2347 + $0x10] sm:$0xff]
    %v3555 = vld [vmem:[%s2347 + $0x18] sm:$0xff]
    %v3556 = vld [vmem:[%s2347 + $0x20] sm:$0xff]
    %v3557 = vld [vmem:[%s2347 + $0x28] sm:$0xff]
    %v3558 = vld [vmem:[%s2347 + $0x30] sm:$0xff]
    %v3559 = vld [vmem:[%s2347 + $0x38] sm:$0xff]
    %v3560 = vld [vmem:[%s2347 + $0x40] sm:$0xff]
    %v3561 = vld [vmem:[%s2347 + $0x48] sm:$0xff]
    %v3562 = vld [vmem:[%s2347 + $0x50] sm:$0xff]
    %v3563 = vld [vmem:[%s2347 + $0x58] sm:$0xff]
    %v3564 = vld [vmem:[%s2347 + $0x60] sm:$0xff]
    %v3565 = vld [vmem:[%s2347 + $0x68] sm:$0xff]
    %v3566 = vld [vmem:[%s2347 + $0x70] sm:$0xff]
    %v3567 = vld [vmem:[%s2347 + $0x78] sm:$0xff]
    %v3568 = vld [vmem:[%s2347 + $0x80] sm:$0xff]
    %v3569 = vld [vmem:[%s2347 + $0x88] sm:$0xff]
    %v3570 = vld [vmem:[%s2347 + $0x90] sm:$0xff]
    %v3571 = vld [vmem:[%s2347 + $0x98] sm:$0xff]
    %v3572 = vld [vmem:[%s2347 + $0xa0] sm:$0xff]
    %v3573 = vld [vmem:[%s2347 + $0xa8] sm:$0xff]
    %v3574 = vld [vmem:[%s2347 + $0xb0] sm:$0xff]
    %v3575 = vld [vmem:[%s2347 + $0xb8] sm:$0xff]
    %v3576 = vld [vmem:[%s2347 + $0xc0] sm:$0xff]
    %v3577 = vld [vmem:[%s2347 + $0xc8] sm:$0xff]
    %v3578 = vld [vmem:[%s2347 + $0xd0] sm:$0xff]
    %v3579 = vld [vmem:[%s2347 + $0xd8] sm:$0xff]
    %v3580 = vld [vmem:[%s2347 + $0xe0] sm:$0xff]
    %v3581 = vld [vmem:[%s2347 + $0xe8] sm:$0xff]
    %v3582 = vld [vmem:[%s2347 + $0xf0] sm:$0xff]
    %v3583 = vld [vmem:[%s2347 + $0xf8] sm:$0xff]
    %v3584 = vld [vmem:[%s2347 + $0x100] sm:$0xff]
    %v3585 = vld [vmem:[%s2347 + $0x108] sm:$0xff]
    %v3586 = vld [vmem:[%s2347 + $0x110] sm:$0xff]
    %v3587 = vld [vmem:[%s2347 + $0x118] sm:$0xff]
    %v3588 = vld [vmem:[%s2347 + $0x120] sm:$0xff]
    %v3589 = vld [vmem:[%s2347 + $0x128] sm:$0xff]
    %v3590 = vld [vmem:[%s2347 + $0x130] sm:$0xff]
    %v3591 = vld [vmem:[%s2347 + $0x138] sm:$0xff]
    %v3592 = vld [vmem:[%s2347 + $0x140] sm:$0xff]
    %v3593 = vld [vmem:[%s2347 + $0x148] sm:$0xff]
    %v3594 = vld [vmem:[%s2347 + $0x150] sm:$0xff]
    %v3595 = vld [vmem:[%s2347 + $0x158] sm:$0xff]
    %v3596 = vld [vmem:[%s2347 + $0x160] sm:$0xff]
    %v3597 = vld [vmem:[%s2347 + $0x168] sm:$0xff]
    %v3598 = vld [vmem:[%s2347 + $0x170] sm:$0xff]
    %v3599 = vld [vmem:[%s2347 + $0x178] sm:$0xff]
    %v3600 = vld [vmem:[%s2347 + $0x180] sm:$0xff]
    %v3601 = vld [vmem:[%s2347 + $0x188] sm:$0xff]
    %v3602 = vld [vmem:[%s2347 + $0x190] sm:$0xff]
    %v3603 = vld [vmem:[%s2347 + $0x198] sm:$0xff]
    %v3604 = vld [vmem:[%s2347 + $0x1a0] sm:$0xff]
    %v3605 = vld [vmem:[%s2347 + $0x1a8] sm:$0xff]
    %v3606 = vld [vmem:[%s2347 + $0x1b0] sm:$0xff]
    %v3607 = vld [vmem:[%s2347 + $0x1b8] sm:$0xff]
    %v3608 = vld [vmem:[%s2347 + $0x1c0] sm:$0xff]
    %v3609 = vld [vmem:[%s2347 + $0x1c8] sm:$0xff]
    %v3610 = vld [vmem:[%s2347 + $0x1d0] sm:$0xff]
    %v3611 = vld [vmem:[%s2347 + $0x1d8] sm:$0xff]
    %v3612 = vld [vmem:[%s2347 + $0x1e0] sm:$0xff]
    %v3613 = vld [vmem:[%s2347 + $0x1e8] sm:$0xff]
    %v3614 = vld [vmem:[%s2347 + $0x1f0] sm:$0xff]
    %v3615 = vld [vmem:[%s2347 + $0x1f8] sm:$0xff]
    %3616 = vmatprep.subr.mxu0 %v3613
    %3617 = vmatpush1.msra.mxu0 %v3612
    %3618 = vmatprep.subr.mxu0 %v3609
    %3619 = vmatpush1.msra.mxu0 %v3608
    %3620 = vmatprep.subr.mxu0 %v3605
    %3621 = vmatpush1.msra.mxu0 %v3604
    %3622 = vmatprep.subr.mxu0 %v3601
    %3623 = vmatpush1.msra.mxu0 %v3600
    %3624 = vmatprep.subr.mxu0 %v3597
    %3625 = vmatpush1.msra.mxu0 %v3596
    %3626 = vmatprep.subr.mxu0 %v3593
    %3627 = vmatpush1.msra.mxu0 %v3592
    %3628 = vmatprep.subr.mxu0 %v3589
    %3629 = vmatpush1.msra.mxu0 %v3588
    %3630 = vmatprep.subr.mxu0 %v3585
    %3631 = vmatpush1.msra.mxu0 %v3584
    %3632 = vmatprep.subr.mxu0 %v3581
    %3633 = vmatpush1.msra.mxu0 %v3580
    %3634 = vmatprep.subr.mxu0 %v3577
    %3635 = vmatpush1.msra.mxu0 %v3576
    %3636 = vmatprep.subr.mxu0 %v3573
    %3637 = vmatpush1.msra.mxu0 %v3572
    %3638 = vmatprep.subr.mxu0 %v3569
    %3639 = vmatpush1.msra.mxu0 %v3568
    %3640 = vmatprep.subr.mxu0 %v3565
    %3641 = vmatpush1.msra.mxu0 %v3564
    %3642 = vmatprep.subr.mxu0 %v3561
    %3643 = vmatpush1.msra.mxu0 %v3560
    %3644 = vmatprep.subr.mxu0 %v3557
    %3645 = vmatpush1.msra.mxu0 %v3556
    %3646 = vmatprep.subr.mxu0 %v3553
    %3647 = vmatpush1.msra.mxu0 %v3552
    %3648 = vmatprep.subr.mxu0 0.0
    %3649 = vmatpush2.msra.mxu0 0.0
    %3650 = vmatprep.subr.mxu0 0.0
    %3651 = vmatpush2.msra.mxu0 0.0
    %3652 = vmatprep.subr.mxu0 0.0
    %3653 = vmatpush2.msra.mxu0 0.0
    %3654 = vmatprep.subr.mxu0 0.0
    %3655 = vmatpush2.msra.mxu0 0.0
    %3656 = vmatprep.subr.mxu0 0.0
    %3657 = vmatpush2.msra.mxu0 0.0
    %3658 = vmatprep.subr.mxu0 0.0
    %3659 = vmatpush2.msra.mxu0 0.0
    %3660 = vmatprep.subr.mxu0 0.0
    %3661 = vmatpush2.msra.mxu0 0.0
    %3662 = vmatprep.subr.mxu0 0.0
    %3663 = vmatpush2.msra.mxu0 0.0
    %3664 = vmatprep.subr.mxu0 0.0
    %3665 = vmatpush2.msra.mxu0 0.0
    %3666 = vmatprep.subr.mxu0 0.0
    %3667 = vmatpush2.msra.mxu0 0.0
    %3668 = vmatprep.subr.mxu0 0.0
    %3669 = vmatpush2.msra.mxu0 0.0
    %3670 = vmatprep.subr.mxu0 0.0
    %3671 = vmatpush2.msra.mxu0 0.0
    %3672 = vmatprep.subr.mxu0 0.0
    %3673 = vmatpush2.msra.mxu0 0.0
    %3674 = vmatprep.subr.mxu0 0.0
    %3675 = vmatpush2.msra.mxu0 0.0
    %3676 = vmatprep.subr.mxu0 0.0
    %3677 = vmatpush2.msra.mxu0 0.0
    %3678 = vmatprep.subr.mxu0 0.0
    %3679 = vmatpush2.msra.mxu0 0.0
    %3680 = vmatprep.mubr.f32.mxu0 0.0
    %3681 = vmatmul.mubr.f32.gmra.mxu0 %v3544
    %v3682 = vpop.f32.mrf.mxu0
    %v3683 = vadd.f32 0.0, %v3682
    %v3684 = vpop.f32.mrf.mxu0
    %v3685 = vadd.f32 0.0, %v3684
    %3686 = vdwg.mxu0
    %3687 = vmatprep.subr.mxu0 %v3615
    %3688 = vmatpush1.msra.mxu0 %v3614
    %3689 = vmatprep.subr.mxu0 %v3611
    %3690 = vmatpush1.msra.mxu0 %v3610
    %3691 = vmatprep.subr.mxu0 %v3607
    %3692 = vmatpush1.msra.mxu0 %v3606
    %3693 = vmatprep.subr.mxu0 %v3603
    %3694 = vmatpush1.msra.mxu0 %v3602
    %3695 = vmatprep.subr.mxu0 %v3599
    %3696 = vmatpush1.msra.mxu0 %v3598
    %3697 = vmatprep.subr.mxu0 %v3595
    %3698 = vmatpush1.msra.mxu0 %v3594
    %3699 = vmatprep.subr.mxu0 %v3591
    %3700 = vmatpush1.msra.mxu0 %v3590
    %3701 = vmatprep.subr.mxu0 %v3587
    %3702 = vmatpush1.msra.mxu0 %v3586
    %3703 = vmatprep.subr.mxu0 %v3583
    %3704 = vmatpush1.msra.mxu0 %v3582
    %3705 = vmatprep.subr.mxu0 %v3579
    %3706 = vmatpush1.msra.mxu0 %v3578
    %3707 = vmatprep.subr.mxu0 %v3575
    %3708 = vmatpush1.msra.mxu0 %v3574
    %3709 = vmatprep.subr.mxu0 %v3571
    %3710 = vmatpush1.msra.mxu0 %v3570
    %3711 = vmatprep.subr.mxu0 %v3567
    %3712 = vmatpush1.msra.mxu0 %v3566
    %3713 = vmatprep.subr.mxu0 %v3563
    %3714 = vmatpush1.msra.mxu0 %v3562
    %3715 = vmatprep.subr.mxu0 %v3559
    %3716 = vmatpush1.msra.mxu0 %v3558
    %3717 = vmatprep.subr.mxu0 %v3555
    %3718 = vmatpush1.msra.mxu0 %v3554
    %3719 = vmatprep.subr.mxu0 0.0
    %3720 = vmatpush2.msra.mxu0 0.0
    %3721 = vmatprep.subr.mxu0 0.0
    %3722 = vmatpush2.msra.mxu0 0.0
    %3723 = vmatprep.subr.mxu0 0.0
    %3724 = vmatpush2.msra.mxu0 0.0
    %3725 = vmatprep.subr.mxu0 0.0
    %3726 = vmatpush2.msra.mxu0 0.0
    %3727 = vmatprep.subr.mxu0 0.0
    %3728 = vmatpush2.msra.mxu0 0.0
    %3729 = vmatprep.subr.mxu0 0.0
    %3730 = vmatpush2.msra.mxu0 0.0
    %3731 = vmatprep.subr.mxu0 0.0
    %3732 = vmatpush2.msra.mxu0 0.0
    %3733 = vmatprep.subr.mxu0 0.0
    %3734 = vmatpush2.msra.mxu0 0.0
    %3735 = vmatprep.subr.mxu0 0.0
    %3736 = vmatpush2.msra.mxu0 0.0
    %3737 = vmatprep.subr.mxu0 0.0
    %3738 = vmatpush2.msra.mxu0 0.0
    %3739 = vmatprep.subr.mxu0 0.0
    %3740 = vmatpush2.msra.mxu0 0.0
    %3741 = vmatprep.subr.mxu0 0.0
    %3742 = vmatpush2.msra.mxu0 0.0
    %3743 = vmatprep.subr.mxu0 0.0
    %3744 = vmatpush2.msra.mxu0 0.0
    %3745 = vmatprep.subr.mxu0 0.0
    %3746 = vmatpush2.msra.mxu0 0.0
    %3747 = vmatprep.subr.mxu0 0.0
    %3748 = vmatpush2.msra.mxu0 0.0
    %3749 = vmatprep.subr.mxu0 0.0
    %3750 = vmatpush2.msra.mxu0 0.0
    %3751 = vmatprep.mubr.f32.mxu0 0.0
    %3752 = vmatmul.mubr.f32.gmra.mxu0 %v3544
    %v3753 = vpop.f32.mrf.mxu0
    %v3754 = vadd.f32 0.0, %v3753
    %v3755 = vpop.f32.mrf.mxu0
    %v3756 = vadd.f32 0.0, %v3755
    %3757 = vdwg.mxu0
    %v3758 = vadd.f32 %v3548, %v3683
    %v3759 = vadd.f32 %v3549, %v3685
    %v3760 = vadd.f32 %v3550, %v3754
    %v3761 = vadd.f32 %v3551, %v3756
    %v3762 = vxor.u32 %v3758, 2147483648
    %v3763 = vmul.f32 %v3762, 1.442695
    %v3764 = vpow.pop %v3763
    %v3765 = vadd.f32 %v3764, 1.0
    %v3766 = vrcp.pop %v3765
    %v3767 = vmul.f32 1.0, %v3766
    %v3768 = vxor.u32 %v3759, 2147483648
    %v3769 = vmul.f32 %v3768, 1.442695
    %v3770 = vpow.pop %v3769
    %v3771 = vadd.f32 %v3770, 1.0
    %v3772 = vrcp.pop %v3771
    %v3773 = vmul.f32 1.0, %v3772
    %v3774 = vtanh.pop %v3760
    %v3775 = vxor.u32 %v3761, 2147483648
    %v3776 = vmul.f32 %v3775, 1.442695
    %v3777 = vpow.pop %v3776
    %v3778 = vadd.f32 %v3777, 1.0
    %v3779 = vrcp.pop %v3778
    %v3780 = vmul.f32 1.0, %v3779
    %v3781 = vmul.f32 %v3773, %v3542
    %v3782 = vmul.f32 %v3767, %v3774
    %v3783 = vadd.f32 %v3781, %v3782
    %v3784 = vtanh.pop %v3783
    %v3785 = vmul.f32 %v3780, %v3784
    %s3786 = scalar_lea.vmem [#allocation10], 40
    %3787 = vst [vmem:[%s3786] sm:$0xff] %v3785
    %s3788 = scalar_lea.vmem [#allocation3], 192
    %v3789 = vld [vmem:[%s3788] sm:$0xff]
    %v3790 = vld [vmem:[%s3788 + $0x8] sm:$0xff]
    %v3791 = vld [vmem:[%s3788 + $0x10] sm:$0xff]
    %v3792 = vld [vmem:[%s3788 + $0x18] sm:$0xff]
    %v3793 = vld [vmem:[%s2347] sm:$0xff]
    %v3794 = vld [vmem:[%s2347 + $0x8] sm:$0xff]
    %v3795 = vld [vmem:[%s2347 + $0x10] sm:$0xff]
    %v3796 = vld [vmem:[%s2347 + $0x18] sm:$0xff]
    %v3797 = vld [vmem:[%s2347 + $0x20] sm:$0xff]
    %v3798 = vld [vmem:[%s2347 + $0x28] sm:$0xff]
    %v3799 = vld [vmem:[%s2347 + $0x30] sm:$0xff]
    %v3800 = vld [vmem:[%s2347 + $0x38] sm:$0xff]
    %v3801 = vld [vmem:[%s2347 + $0x40] sm:$0xff]
    %v3802 = vld [vmem:[%s2347 + $0x48] sm:$0xff]
    %v3803 = vld [vmem:[%s2347 + $0x50] sm:$0xff]
    %v3804 = vld [vmem:[%s2347 + $0x58] sm:$0xff]
    %v3805 = vld [vmem:[%s2347 + $0x60] sm:$0xff]
    %v3806 = vld [vmem:[%s2347 + $0x68] sm:$0xff]
    %v3807 = vld [vmem:[%s2347 + $0x70] sm:$0xff]
    %v3808 = vld [vmem:[%s2347 + $0x78] sm:$0xff]
    %v3809 = vld [vmem:[%s2347 + $0x80] sm:$0xff]
    %v3810 = vld [vmem:[%s2347 + $0x88] sm:$0xff]
    %v3811 = vld [vmem:[%s2347 + $0x90] sm:$0xff]
    %v3812 = vld [vmem:[%s2347 + $0x98] sm:$0xff]
    %v3813 = vld [vmem:[%s2347 + $0xa0] sm:$0xff]
    %v3814 = vld [vmem:[%s2347 + $0xa8] sm:$0xff]
    %v3815 = vld [vmem:[%s2347 + $0xb0] sm:$0xff]
    %v3816 = vld [vmem:[%s2347 + $0xb8] sm:$0xff]
    %v3817 = vld [vmem:[%s2347 + $0xc0] sm:$0xff]
    %v3818 = vld [vmem:[%s2347 + $0xc8] sm:$0xff]
    %v3819 = vld [vmem:[%s2347 + $0xd0] sm:$0xff]
    %v3820 = vld [vmem:[%s2347 + $0xd8] sm:$0xff]
    %v3821 = vld [vmem:[%s2347 + $0xe0] sm:$0xff]
    %v3822 = vld [vmem:[%s2347 + $0xe8] sm:$0xff]
    %v3823 = vld [vmem:[%s2347 + $0xf0] sm:$0xff]
    %v3824 = vld [vmem:[%s2347 + $0xf8] sm:$0xff]
    %v3825 = vld [vmem:[%s2347 + $0x100] sm:$0xff]
    %v3826 = vld [vmem:[%s2347 + $0x108] sm:$0xff]
    %v3827 = vld [vmem:[%s2347 + $0x110] sm:$0xff]
    %v3828 = vld [vmem:[%s2347 + $0x118] sm:$0xff]
    %v3829 = vld [vmem:[%s2347 + $0x120] sm:$0xff]
    %v3830 = vld [vmem:[%s2347 + $0x128] sm:$0xff]
    %v3831 = vld [vmem:[%s2347 + $0x130] sm:$0xff]
    %v3832 = vld [vmem:[%s2347 + $0x138] sm:$0xff]
    %v3833 = vld [vmem:[%s2347 + $0x140] sm:$0xff]
    %v3834 = vld [vmem:[%s2347 + $0x148] sm:$0xff]
    %v3835 = vld [vmem:[%s2347 + $0x150] sm:$0xff]
    %v3836 = vld [vmem:[%s2347 + $0x158] sm:$0xff]
    %v3837 = vld [vmem:[%s2347 + $0x160] sm:$0xff]
    %v3838 = vld [vmem:[%s2347 + $0x168] sm:$0xff]
    %v3839 = vld [vmem:[%s2347 + $0x170] sm:$0xff]
    %v3840 = vld [vmem:[%s2347 + $0x178] sm:$0xff]
    %v3841 = vld [vmem:[%s2347 + $0x180] sm:$0xff]
    %v3842 = vld [vmem:[%s2347 + $0x188] sm:$0xff]
    %v3843 = vld [vmem:[%s2347 + $0x190] sm:$0xff]
    %v3844 = vld [vmem:[%s2347 + $0x198] sm:$0xff]
    %v3845 = vld [vmem:[%s2347 + $0x1a0] sm:$0xff]
    %v3846 = vld [vmem:[%s2347 + $0x1a8] sm:$0xff]
    %v3847 = vld [vmem:[%s2347 + $0x1b0] sm:$0xff]
    %v3848 = vld [vmem:[%s2347 + $0x1b8] sm:$0xff]
    %v3849 = vld [vmem:[%s2347 + $0x1c0] sm:$0xff]
    %v3850 = vld [vmem:[%s2347 + $0x1c8] sm:$0xff]
    %v3851 = vld [vmem:[%s2347 + $0x1d0] sm:$0xff]
    %v3852 = vld [vmem:[%s2347 + $0x1d8] sm:$0xff]
    %v3853 = vld [vmem:[%s2347 + $0x1e0] sm:$0xff]
    %v3854 = vld [vmem:[%s2347 + $0x1e8] sm:$0xff]
    %v3855 = vld [vmem:[%s2347 + $0x1f0] sm:$0xff]
    %v3856 = vld [vmem:[%s2347 + $0x1f8] sm:$0xff]
    %3857 = vmatprep.subr.mxu0 %v3854
    %3858 = vmatpush1.msra.mxu0 %v3853
    %3859 = vmatprep.subr.mxu0 %v3850
    %3860 = vmatpush1.msra.mxu0 %v3849
    %3861 = vmatprep.subr.mxu0 %v3846
    %3862 = vmatpush1.msra.mxu0 %v3845
    %3863 = vmatprep.subr.mxu0 %v3842
    %3864 = vmatpush1.msra.mxu0 %v3841
    %3865 = vmatprep.subr.mxu0 %v3838
    %3866 = vmatpush1.msra.mxu0 %v3837
    %3867 = vmatprep.subr.mxu0 %v3834
    %3868 = vmatpush1.msra.mxu0 %v3833
    %3869 = vmatprep.subr.mxu0 %v3830
    %3870 = vmatpush1.msra.mxu0 %v3829
    %3871 = vmatprep.subr.mxu0 %v3826
    %3872 = vmatpush1.msra.mxu0 %v3825
    %3873 = vmatprep.subr.mxu0 %v3822
    %3874 = vmatpush1.msra.mxu0 %v3821
    %3875 = vmatprep.subr.mxu0 %v3818
    %3876 = vmatpush1.msra.mxu0 %v3817
    %3877 = vmatprep.subr.mxu0 %v3814
    %3878 = vmatpush1.msra.mxu0 %v3813
    %3879 = vmatprep.subr.mxu0 %v3810
    %3880 = vmatpush1.msra.mxu0 %v3809
    %3881 = vmatprep.subr.mxu0 %v3806
    %3882 = vmatpush1.msra.mxu0 %v3805
    %3883 = vmatprep.subr.mxu0 %v3802
    %3884 = vmatpush1.msra.mxu0 %v3801
    %3885 = vmatprep.subr.mxu0 %v3798
    %3886 = vmatpush1.msra.mxu0 %v3797
    %3887 = vmatprep.subr.mxu0 %v3794
    %3888 = vmatpush1.msra.mxu0 %v3793
    %3889 = vmatprep.subr.mxu0 0.0
    %3890 = vmatpush2.msra.mxu0 0.0
    %3891 = vmatprep.subr.mxu0 0.0
    %3892 = vmatpush2.msra.mxu0 0.0
    %3893 = vmatprep.subr.mxu0 0.0
    %3894 = vmatpush2.msra.mxu0 0.0
    %3895 = vmatprep.subr.mxu0 0.0
    %3896 = vmatpush2.msra.mxu0 0.0
    %3897 = vmatprep.subr.mxu0 0.0
    %3898 = vmatpush2.msra.mxu0 0.0
    %3899 = vmatprep.subr.mxu0 0.0
    %3900 = vmatpush2.msra.mxu0 0.0
    %3901 = vmatprep.subr.mxu0 0.0
    %3902 = vmatpush2.msra.mxu0 0.0
    %3903 = vmatprep.subr.mxu0 0.0
    %3904 = vmatpush2.msra.mxu0 0.0
    %3905 = vmatprep.subr.mxu0 0.0
    %3906 = vmatpush2.msra.mxu0 0.0
    %3907 = vmatprep.subr.mxu0 0.0
    %3908 = vmatpush2.msra.mxu0 0.0
    %3909 = vmatprep.subr.mxu0 0.0
    %3910 = vmatpush2.msra.mxu0 0.0
    %3911 = vmatprep.subr.mxu0 0.0
    %3912 = vmatpush2.msra.mxu0 0.0
    %3913 = vmatprep.subr.mxu0 0.0
    %3914 = vmatpush2.msra.mxu0 0.0
    %3915 = vmatprep.subr.mxu0 0.0
    %3916 = vmatpush2.msra.mxu0 0.0
    %3917 = vmatprep.subr.mxu0 0.0
    %3918 = vmatpush2.msra.mxu0 0.0
    %3919 = vmatprep.subr.mxu0 0.0
    %3920 = vmatpush2.msra.mxu0 0.0
    %3921 = vmatprep.mubr.f32.mxu0 0.0
    %3922 = vmatmul.mubr.f32.gmra.mxu0 %v3785
    %v3923 = vpop.f32.mrf.mxu0
    %v3924 = vadd.f32 0.0, %v3923
    %v3925 = vpop.f32.mrf.mxu0
    %v3926 = vadd.f32 0.0, %v3925
    %3927 = vdwg.mxu0
    %3928 = vmatprep.subr.mxu0 %v3856
    %3929 = vmatpush1.msra.mxu0 %v3855
    %3930 = vmatprep.subr.mxu0 %v3852
    %3931 = vmatpush1.msra.mxu0 %v3851
    %3932 = vmatprep.subr.mxu0 %v3848
    %3933 = vmatpush1.msra.mxu0 %v3847
    %3934 = vmatprep.subr.mxu0 %v3844
    %3935 = vmatpush1.msra.mxu0 %v3843
    %3936 = vmatprep.subr.mxu0 %v3840
    %3937 = vmatpush1.msra.mxu0 %v3839
    %3938 = vmatprep.subr.mxu0 %v3836
    %3939 = vmatpush1.msra.mxu0 %v3835
    %3940 = vmatprep.subr.mxu0 %v3832
    %3941 = vmatpush1.msra.mxu0 %v3831
    %3942 = vmatprep.subr.mxu0 %v3828
    %3943 = vmatpush1.msra.mxu0 %v3827
    %3944 = vmatprep.subr.mxu0 %v3824
    %3945 = vmatpush1.msra.mxu0 %v3823
    %3946 = vmatprep.subr.mxu0 %v3820
    %3947 = vmatpush1.msra.mxu0 %v3819
    %3948 = vmatprep.subr.mxu0 %v3816
    %3949 = vmatpush1.msra.mxu0 %v3815
    %3950 = vmatprep.subr.mxu0 %v3812
    %3951 = vmatpush1.msra.mxu0 %v3811
    %3952 = vmatprep.subr.mxu0 %v3808
    %3953 = vmatpush1.msra.mxu0 %v3807
    %3954 = vmatprep.subr.mxu0 %v3804
    %3955 = vmatpush1.msra.mxu0 %v3803
    %3956 = vmatprep.subr.mxu0 %v3800
    %3957 = vmatpush1.msra.mxu0 %v3799
    %3958 = vmatprep.subr.mxu0 %v3796
    %3959 = vmatpush1.msra.mxu0 %v3795
    %3960 = vmatprep.subr.mxu0 0.0
    %3961 = vmatpush2.msra.mxu0 0.0
    %3962 = vmatprep.subr.mxu0 0.0
    %3963 = vmatpush2.msra.mxu0 0.0
    %3964 = vmatprep.subr.mxu0 0.0
    %3965 = vmatpush2.msra.mxu0 0.0
    %3966 = vmatprep.subr.mxu0 0.0
    %3967 = vmatpush2.msra.mxu0 0.0
    %3968 = vmatprep.subr.mxu0 0.0
    %3969 = vmatpush2.msra.mxu0 0.0
    %3970 = vmatprep.subr.mxu0 0.0
    %3971 = vmatpush2.msra.mxu0 0.0
    %3972 = vmatprep.subr.mxu0 0.0
    %3973 = vmatpush2.msra.mxu0 0.0
    %3974 = vmatprep.subr.mxu0 0.0
    %3975 = vmatpush2.msra.mxu0 0.0
    %3976 = vmatprep.subr.mxu0 0.0
    %3977 = vmatpush2.msra.mxu0 0.0
    %3978 = vmatprep.subr.mxu0 0.0
    %3979 = vmatpush2.msra.mxu0 0.0
    %3980 = vmatprep.subr.mxu0 0.0
    %3981 = vmatpush2.msra.mxu0 0.0
    %3982 = vmatprep.subr.mxu0 0.0
    %3983 = vmatpush2.msra.mxu0 0.0
    %3984 = vmatprep.subr.mxu0 0.0
    %3985 = vmatpush2.msra.mxu0 0.0
    %3986 = vmatprep.subr.mxu0 0.0
    %3987 = vmatpush2.msra.mxu0 0.0
    %3988 = vmatprep.subr.mxu0 0.0
    %3989 = vmatpush2.msra.mxu0 0.0
    %3990 = vmatprep.subr.mxu0 0.0
    %3991 = vmatpush2.msra.mxu0 0.0
    %3992 = vmatprep.mubr.f32.mxu0 0.0
    %3993 = vmatmul.mubr.f32.gmra.mxu0 %v3785
    %v3994 = vpop.f32.mrf.mxu0
    %v3995 = vadd.f32 0.0, %v3994
    %v3996 = vpop.f32.mrf.mxu0
    %v3997 = vadd.f32 0.0, %v3996
    %3998 = vdwg.mxu0
    %v3999 = vadd.f32 %v3789, %v3924
    %v4000 = vadd.f32 %v3790, %v3926
    %v4001 = vadd.f32 %v3791, %v3995
    %v4002 = vadd.f32 %v3792, %v3997
    %v4003 = vxor.u32 %v3999, 2147483648
    %v4004 = vmul.f32 %v4003, 1.442695
    %v4005 = vpow.pop %v4004
    %v4006 = vadd.f32 %v4005, 1.0
    %v4007 = vrcp.pop %v4006
    %v4008 = vmul.f32 1.0, %v4007
    %v4009 = vxor.u32 %v4000, 2147483648
    %v4010 = vmul.f32 %v4009, 1.442695
    %v4011 = vpow.pop %v4010
    %v4012 = vadd.f32 %v4011, 1.0
    %v4013 = vrcp.pop %v4012
    %v4014 = vmul.f32 1.0, %v4013
    %v4015 = vtanh.pop %v4001
    %v4016 = vxor.u32 %v4002, 2147483648
    %v4017 = vmul.f32 %v4016, 1.442695
    %v4018 = vpow.pop %v4017
    %v4019 = vadd.f32 %v4018, 1.0
    %v4020 = vrcp.pop %v4019
    %v4021 = vmul.f32 1.0, %v4020
    %v4022 = vmul.f32 %v4014, %v3783
    %v4023 = vmul.f32 %v4008, %v4015
    %v4024 = vadd.f32 %v4022, %v4023
    %v4025 = vtanh.pop %v4024
    %v4026 = vmul.f32 %v4021, %v4025
    %s4027 = scalar_lea.vmem [#allocation10], 48
    %4028 = vst [vmem:[%s4027] sm:$0xff] %v4026
    %s4029 = scalar_lea.vmem [#allocation3], 224
    %v4030 = vld [vmem:[%s4029] sm:$0xff]
    %v4031 = vld [vmem:[%s4029 + $0x8] sm:$0xff]
    %v4032 = vld [vmem:[%s4029 + $0x10] sm:$0xff]
    %v4033 = vld [vmem:[%s4029 + $0x18] sm:$0xff]
    %v4034 = vld [vmem:[%s2347] sm:$0xff]
    %v4035 = vld [vmem:[%s2347 + $0x8] sm:$0xff]
    %v4036 = vld [vmem:[%s2347 + $0x10] sm:$0xff]
    %v4037 = vld [vmem:[%s2347 + $0x18] sm:$0xff]
    %v4038 = vld [vmem:[%s2347 + $0x20] sm:$0xff]
    %v4039 = vld [vmem:[%s2347 + $0x28] sm:$0xff]
    %v4040 = vld [vmem:[%s2347 + $0x30] sm:$0xff]
    %v4041 = vld [vmem:[%s2347 + $0x38] sm:$0xff]
    %v4042 = vld [vmem:[%s2347 + $0x40] sm:$0xff]
    %v4043 = vld [vmem:[%s2347 + $0x48] sm:$0xff]
    %v4044 = vld [vmem:[%s2347 + $0x50] sm:$0xff]
    %v4045 = vld [vmem:[%s2347 + $0x58] sm:$0xff]
    %v4046 = vld [vmem:[%s2347 + $0x60] sm:$0xff]
    %v4047 = vld [vmem:[%s2347 + $0x68] sm:$0xff]
    %v4048 = vld [vmem:[%s2347 + $0x70] sm:$0xff]
    %v4049 = vld [vmem:[%s2347 + $0x78] sm:$0xff]
    %v4050 = vld [vmem:[%s2347 + $0x80] sm:$0xff]
    %v4051 = vld [vmem:[%s2347 + $0x88] sm:$0xff]
    %v4052 = vld [vmem:[%s2347 + $0x90] sm:$0xff]
    %v4053 = vld [vmem:[%s2347 + $0x98] sm:$0xff]
    %v4054 = vld [vmem:[%s2347 + $0xa0] sm:$0xff]
    %v4055 = vld [vmem:[%s2347 + $0xa8] sm:$0xff]
    %v4056 = vld [vmem:[%s2347 + $0xb0] sm:$0xff]
    %v4057 = vld [vmem:[%s2347 + $0xb8] sm:$0xff]
    %v4058 = vld [vmem:[%s2347 + $0xc0] sm:$0xff]
    %v4059 = vld [vmem:[%s2347 + $0xc8] sm:$0xff]
    %v4060 = vld [vmem:[%s2347 + $0xd0] sm:$0xff]
    %v4061 = vld [vmem:[%s2347 + $0xd8] sm:$0xff]
    %v4062 = vld [vmem:[%s2347 + $0xe0] sm:$0xff]
    %v4063 = vld [vmem:[%s2347 + $0xe8] sm:$0xff]
    %v4064 = vld [vmem:[%s2347 + $0xf0] sm:$0xff]
    %v4065 = vld [vmem:[%s2347 + $0xf8] sm:$0xff]
    %v4066 = vld [vmem:[%s2347 + $0x100] sm:$0xff]
    %v4067 = vld [vmem:[%s2347 + $0x108] sm:$0xff]
    %v4068 = vld [vmem:[%s2347 + $0x110] sm:$0xff]
    %v4069 = vld [vmem:[%s2347 + $0x118] sm:$0xff]
    %v4070 = vld [vmem:[%s2347 + $0x120] sm:$0xff]
    %v4071 = vld [vmem:[%s2347 + $0x128] sm:$0xff]
    %v4072 = vld [vmem:[%s2347 + $0x130] sm:$0xff]
    %v4073 = vld [vmem:[%s2347 + $0x138] sm:$0xff]
    %v4074 = vld [vmem:[%s2347 + $0x140] sm:$0xff]
    %v4075 = vld [vmem:[%s2347 + $0x148] sm:$0xff]
    %v4076 = vld [vmem:[%s2347 + $0x150] sm:$0xff]
    %v4077 = vld [vmem:[%s2347 + $0x158] sm:$0xff]
    %v4078 = vld [vmem:[%s2347 + $0x160] sm:$0xff]
    %v4079 = vld [vmem:[%s2347 + $0x168] sm:$0xff]
    %v4080 = vld [vmem:[%s2347 + $0x170] sm:$0xff]
    %v4081 = vld [vmem:[%s2347 + $0x178] sm:$0xff]
    %v4082 = vld [vmem:[%s2347 + $0x180] sm:$0xff]
    %v4083 = vld [vmem:[%s2347 + $0x188] sm:$0xff]
    %v4084 = vld [vmem:[%s2347 + $0x190] sm:$0xff]
    %v4085 = vld [vmem:[%s2347 + $0x198] sm:$0xff]
    %v4086 = vld [vmem:[%s2347 + $0x1a0] sm:$0xff]
    %v4087 = vld [vmem:[%s2347 + $0x1a8] sm:$0xff]
    %v4088 = vld [vmem:[%s2347 + $0x1b0] sm:$0xff]
    %v4089 = vld [vmem:[%s2347 + $0x1b8] sm:$0xff]
    %v4090 = vld [vmem:[%s2347 + $0x1c0] sm:$0xff]
    %v4091 = vld [vmem:[%s2347 + $0x1c8] sm:$0xff]
    %v4092 = vld [vmem:[%s2347 + $0x1d0] sm:$0xff]
    %v4093 = vld [vmem:[%s2347 + $0x1d8] sm:$0xff]
    %v4094 = vld [vmem:[%s2347 + $0x1e0] sm:$0xff]
    %v4095 = vld [vmem:[%s2347 + $0x1e8] sm:$0xff]
    %v4096 = vld [vmem:[%s2347 + $0x1f0] sm:$0xff]
    %v4097 = vld [vmem:[%s2347 + $0x1f8] sm:$0xff]
    %4098 = vmatprep.subr.mxu0 %v4095
    %4099 = vmatpush1.msra.mxu0 %v4094
    %4100 = vmatprep.subr.mxu0 %v4091
    %4101 = vmatpush1.msra.mxu0 %v4090
    %4102 = vmatprep.subr.mxu0 %v4087
    %4103 = vmatpush1.msra.mxu0 %v4086
    %4104 = vmatprep.subr.mxu0 %v4083
    %4105 = vmatpush1.msra.mxu0 %v4082
    %4106 = vmatprep.subr.mxu0 %v4079
    %4107 = vmatpush1.msra.mxu0 %v4078
    %4108 = vmatprep.subr.mxu0 %v4075
    %4109 = vmatpush1.msra.mxu0 %v4074
    %4110 = vmatprep.subr.mxu0 %v4071
    %4111 = vmatpush1.msra.mxu0 %v4070
    %4112 = vmatprep.subr.mxu0 %v4067
    %4113 = vmatpush1.msra.mxu0 %v4066
    %4114 = vmatprep.subr.mxu0 %v4063
    %4115 = vmatpush1.msra.mxu0 %v4062
    %4116 = vmatprep.subr.mxu0 %v4059
    %4117 = vmatpush1.msra.mxu0 %v4058
    %4118 = vmatprep.subr.mxu0 %v4055
    %4119 = vmatpush1.msra.mxu0 %v4054
    %4120 = vmatprep.subr.mxu0 %v4051
    %4121 = vmatpush1.msra.mxu0 %v4050
    %4122 = vmatprep.subr.mxu0 %v4047
    %4123 = vmatpush1.msra.mxu0 %v4046
    %4124 = vmatprep.subr.mxu0 %v4043
    %4125 = vmatpush1.msra.mxu0 %v4042
    %4126 = vmatprep.subr.mxu0 %v4039
    %4127 = vmatpush1.msra.mxu0 %v4038
    %4128 = vmatprep.subr.mxu0 %v4035
    %4129 = vmatpush1.msra.mxu0 %v4034
    %4130 = vmatprep.subr.mxu0 0.0
    %4131 = vmatpush2.msra.mxu0 0.0
    %4132 = vmatprep.subr.mxu0 0.0
    %4133 = vmatpush2.msra.mxu0 0.0
    %4134 = vmatprep.subr.mxu0 0.0
    %4135 = vmatpush2.msra.mxu0 0.0
    %4136 = vmatprep.subr.mxu0 0.0
    %4137 = vmatpush2.msra.mxu0 0.0
    %4138 = vmatprep.subr.mxu0 0.0
    %4139 = vmatpush2.msra.mxu0 0.0
    %4140 = vmatprep.subr.mxu0 0.0
    %4141 = vmatpush2.msra.mxu0 0.0
    %4142 = vmatprep.subr.mxu0 0.0
    %4143 = vmatpush2.msra.mxu0 0.0
    %4144 = vmatprep.subr.mxu0 0.0
    %4145 = vmatpush2.msra.mxu0 0.0
    %4146 = vmatprep.subr.mxu0 0.0
    %4147 = vmatpush2.msra.mxu0 0.0
    %4148 = vmatprep.subr.mxu0 0.0
    %4149 = vmatpush2.msra.mxu0 0.0
    %4150 = vmatprep.subr.mxu0 0.0
    %4151 = vmatpush2.msra.mxu0 0.0
    %4152 = vmatprep.subr.mxu0 0.0
    %4153 = vmatpush2.msra.mxu0 0.0
    %4154 = vmatprep.subr.mxu0 0.0
    %4155 = vmatpush2.msra.mxu0 0.0
    %4156 = vmatprep.subr.mxu0 0.0
    %4157 = vmatpush2.msra.mxu0 0.0
    %4158 = vmatprep.subr.mxu0 0.0
    %4159 = vmatpush2.msra.mxu0 0.0
    %4160 = vmatprep.subr.mxu0 0.0
    %4161 = vmatpush2.msra.mxu0 0.0
    %4162 = vmatprep.mubr.f32.mxu0 0.0
    %4163 = vmatmul.mubr.f32.gmra.mxu0 %v4026
    %v4164 = vpop.f32.mrf.mxu0
    %v4165 = vadd.f32 0.0, %v4164
    %v4166 = vpop.f32.mrf.mxu0
    %v4167 = vadd.f32 0.0, %v4166
    %4168 = vdwg.mxu0
    %4169 = vmatprep.subr.mxu0 %v4097
    %4170 = vmatpush1.msra.mxu0 %v4096
    %4171 = vmatprep.subr.mxu0 %v4093
    %4172 = vmatpush1.msra.mxu0 %v4092
    %4173 = vmatprep.subr.mxu0 %v4089
    %4174 = vmatpush1.msra.mxu0 %v4088
    %4175 = vmatprep.subr.mxu0 %v4085
    %4176 = vmatpush1.msra.mxu0 %v4084
    %4177 = vmatprep.subr.mxu0 %v4081
    %4178 = vmatpush1.msra.mxu0 %v4080
    %4179 = vmatprep.subr.mxu0 %v4077
    %4180 = vmatpush1.msra.mxu0 %v4076
    %4181 = vmatprep.subr.mxu0 %v4073
    %4182 = vmatpush1.msra.mxu0 %v4072
    %4183 = vmatprep.subr.mxu0 %v4069
    %4184 = vmatpush1.msra.mxu0 %v4068
    %4185 = vmatprep.subr.mxu0 %v4065
    %4186 = vmatpush1.msra.mxu0 %v4064
    %4187 = vmatprep.subr.mxu0 %v4061
    %4188 = vmatpush1.msra.mxu0 %v4060
    %4189 = vmatprep.subr.mxu0 %v4057
    %4190 = vmatpush1.msra.mxu0 %v4056
    %4191 = vmatprep.subr.mxu0 %v4053
    %4192 = vmatpush1.msra.mxu0 %v4052
    %4193 = vmatprep.subr.mxu0 %v4049
    %4194 = vmatpush1.msra.mxu0 %v4048
    %4195 = vmatprep.subr.mxu0 %v4045
    %4196 = vmatpush1.msra.mxu0 %v4044
    %4197 = vmatprep.subr.mxu0 %v4041
    %4198 = vmatpush1.msra.mxu0 %v4040
    %4199 = vmatprep.subr.mxu0 %v4037
    %4200 = vmatpush1.msra.mxu0 %v4036
    %4201 = vmatprep.subr.mxu0 0.0
    %4202 = vmatpush2.msra.mxu0 0.0
    %4203 = vmatprep.subr.mxu0 0.0
    %4204 = vmatpush2.msra.mxu0 0.0
    %4205 = vmatprep.subr.mxu0 0.0
    %4206 = vmatpush2.msra.mxu0 0.0
    %4207 = vmatprep.subr.mxu0 0.0
    %4208 = vmatpush2.msra.mxu0 0.0
    %4209 = vmatprep.subr.mxu0 0.0
    %4210 = vmatpush2.msra.mxu0 0.0
    %4211 = vmatprep.subr.mxu0 0.0
    %4212 = vmatpush2.msra.mxu0 0.0
    %4213 = vmatprep.subr.mxu0 0.0
    %4214 = vmatpush2.msra.mxu0 0.0
    %4215 = vmatprep.subr.mxu0 0.0
    %4216 = vmatpush2.msra.mxu0 0.0
    %4217 = vmatprep.subr.mxu0 0.0
    %4218 = vmatpush2.msra.mxu0 0.0
    %4219 = vmatprep.subr.mxu0 0.0
    %4220 = vmatpush2.msra.mxu0 0.0
    %4221 = vmatprep.subr.mxu0 0.0
    %4222 = vmatpush2.msra.mxu0 0.0
    %4223 = vmatprep.subr.mxu0 0.0
    %4224 = vmatpush2.msra.mxu0 0.0
    %4225 = vmatprep.subr.mxu0 0.0
    %4226 = vmatpush2.msra.mxu0 0.0
    %4227 = vmatprep.subr.mxu0 0.0
    %4228 = vmatpush2.msra.mxu0 0.0
    %4229 = vmatprep.subr.mxu0 0.0
    %4230 = vmatpush2.msra.mxu0 0.0
    %4231 = vmatprep.subr.mxu0 0.0
    %4232 = vmatpush2.msra.mxu0 0.0
    %4233 = vmatprep.mubr.f32.mxu0 0.0
    %4234 = vmatmul.mubr.f32.gmra.mxu0 %v4026
    %v4235 = vpop.f32.mrf.mxu0
    %v4236 = vadd.f32 0.0, %v4235
    %v4237 = vpop.f32.mrf.mxu0
    %v4238 = vadd.f32 0.0, %v4237
    %4239 = vdwg.mxu0
    %v4240 = vadd.f32 %v4030, %v4165
    %v4241 = vadd.f32 %v4031, %v4167
    %v4242 = vadd.f32 %v4032, %v4236
    %v4243 = vadd.f32 %v4033, %v4238
    %v4244 = vxor.u32 %v4240, 2147483648
    %v4245 = vmul.f32 %v4244, 1.442695
    %v4246 = vpow.pop %v4245
    %v4247 = vadd.f32 %v4246, 1.0
    %v4248 = vrcp.pop %v4247
    %v4249 = vmul.f32 1.0, %v4248
    %v4250 = vxor.u32 %v4241, 2147483648
    %v4251 = vmul.f32 %v4250, 1.442695
    %v4252 = vpow.pop %v4251
    %v4253 = vadd.f32 %v4252, 1.0
    %v4254 = vrcp.pop %v4253
    %v4255 = vmul.f32 1.0, %v4254
    %v4256 = vtanh.pop %v4242
    %v4257 = vxor.u32 %v4243, 2147483648
    %v4258 = vmul.f32 %v4257, 1.442695
    %v4259 = vpow.pop %v4258
    %v4260 = vadd.f32 %v4259, 1.0
    %v4261 = vrcp.pop %v4260
    %v4262 = vmul.f32 1.0, %v4261
    %v4263 = vmul.f32 %v4255, %v4024
    %v4264 = vmul.f32 %v4249, %v4256
    %v4265 = vadd.f32 %v4263, %v4264
    %v4266 = vtanh.pop %v4265
    %v4267 = vmul.f32 %v4262, %v4266
    %s4268 = scalar_lea.vmem [#allocation10], 56
    %4269 = vst [vmem:[%s4268] sm:$0xff] %v4267
    %s4270 = scalar_lea.vmem [#allocation11], 8
    %4271 = vst [vmem:[%s4270] sm:$0xff] %v4267
    %s4272 = scalar_lea.vmem [#allocation13], 8
    %4273 = vst [vmem:[%s4272] sm:$0xff] %v4265
    // Predicated region
    $region30: #{tpu_custom_call.1} parent=1 // pred_check
      _
    $region31: #{tpu_custom_call.1} parent=1 // pred_check_branch
      %4275 = sbr.rel (0) target = $region33
    $region32: #{tpu_custom_call.1} parent=1 // pred_region
      %s4277 = ssub.s32 1024, 1024
      %4278 = vsyncadd [#allocation6], %s4277
      %s4279 = sshll.u32 [#allocation10], 4
      %s4280 = int_to_ptr.vmem [resolvable:$true] %s4279
      %4285 = dma.vmem_to_hbm [thread:$0]  %s4280, 1024, %s4, [#allocation6], 128, 128, 8
    $region33: #{tpu_custom_call.1} parent=1 // pred_fallthru
      _
    // Predicated region
    $region34: #{tpu_custom_call.1} parent=1 // pred_check
      _
    $region35: #{tpu_custom_call.1} parent=1 // pred_check_branch
      %4287 = sbr.rel (0) target = $region37
    $region36: #{tpu_custom_call.1} parent=1 // pred_region
      %s4289 = ssub.s32 256, 256
      %4290 = vsyncadd [#allocation12], %s4289
      %s4291 = sshll.u32 [#allocation11], 4
      %s4292 = int_to_ptr.vmem [resolvable:$true] %s4291
      %4297 = dma.vmem_to_hbm [thread:$0]  %s4292, 256, %s5, [#allocation12], 128, 128, 8
    $region37: #{tpu_custom_call.1} parent=1 // pred_fallthru
      _
    // Predicated region
    $region38: #{tpu_custom_call.1} parent=1 // pred_check
      _
    $region39: #{tpu_custom_call.1} parent=1 // pred_check_branch
      %4299 = sbr.rel (0) target = $region41
    $region40: #{tpu_custom_call.1} parent=1 // pred_region
      %s4301 = ssub.s32 256, 256
      %4302 = vsyncadd [#allocation12], %s4301
      %s4303 = sshll.u32 [#allocation13], 4
      %s4304 = int_to_ptr.vmem [resolvable:$true] %s4303
      %4309 = dma.vmem_to_hbm [thread:$0]  %s4304, 256, %s6, [#allocation12], 128, 128, 8
    $region41: #{tpu_custom_call.1} parent=1 // pred_fallthru
      _
    // Predicated region
    $region42: #{tpu_custom_call.1} parent=1 // pred_check
      _
    $region43: #{tpu_custom_call.1} parent=1 // pred_check_branch
      %4311 = sbr.rel (0) target = $region45
    $region44: #{tpu_custom_call.1} parent=1 // pred_region
      %4312 = dma.done [#allocation6], 1024
    $region45: #{tpu_custom_call.1} parent=1 // pred_fallthru
      _
    // Predicated region
    $region46: #{tpu_custom_call.1} parent=1 // pred_check
      _
    $region47: #{tpu_custom_call.1} parent=1 // pred_check_branch
      %4314 = sbr.rel (0) target = $region49
    $region48: #{tpu_custom_call.1} parent=1 // pred_region
      %4315 = dma.done [#allocation12], 256
    $region49: #{tpu_custom_call.1} parent=1 // pred_fallthru
      _
    // Predicated region
    $region50: #{tpu_custom_call.1} parent=1 // pred_check
      _
    $region51: #{tpu_custom_call.1} parent=1 // pred_check_branch
      %4317 = sbr.rel (0) target = $region53
    $region52: #{tpu_custom_call.1} parent=1 // pred_region
      %4318 = dma.done [#allocation12], 256
    $region53: #{tpu_custom_call.1} parent=1 // pred_fallthru
      _
    %4319 = vsyncpa [#allocation5], 1
    %4320 = vsyncpa [#allocation8], 1
    %4321 = vsyncpa [#allocation6], 1
    %4322 = vsyncpa [#allocation12], 1

</llo_original>
